<compile_context>
chip_gen: v7x
topology: tpu7x:2x2x1
jax: 0.10.0
libtpu: 0.0.40
codegen_flags: <defaults>
</compile_context>

<pallas_src>
import functools

import jax
import jax.numpy as jnp
from jax.experimental import pallas as pl
from jax.experimental.pallas import tpu as pltpu

# ----------------------------- model hyperparameters (small) -----------------------------
DIM = 128          # model dim (PyTorch default is 2048; small for the synthetic run)
HEADS = 4
DIM_HEAD = 32
INNER = HEADS * DIM_HEAD      # 128 (lane-dense)
MLP_DIM = 256
DEPTH = 2
# NOTE: the reference Attention scales by dim ** -0.5 (model dim), not dim_head ** -0.5.
SCALE = DIM ** (-0.5)


# ----------------------------------- in-kernel helpers -----------------------------------
def _layernorm(x, g, b):
    # x: (..., D) f32, g/b: (1, D) f32.  eps matches PyTorch nn.LayerNorm default.
    mean = jnp.mean(x, axis=-1, keepdims=True)
    var = jnp.mean(jnp.square(x - mean), axis=-1, keepdims=True)
    return (x - mean) * jax.lax.rsqrt(var + 1e-5) * g + b


def _gelu(x):
    # TODO(synk): PyTorch nn.GELU() default is the exact erf form; tanh approximation
    # used here (lowers to the EUP, avoids depending on an erf lowering in Mosaic).
    c = 0.7978845608028654  # sqrt(2/pi)
    return 0.5 * x * (1.0 + jnp.tanh(c * (x + 0.044715 * x * x * x)))


# ----------------------------------- fused Pallas kernel ---------------------------------
def transformer_kernel(x_ref,
                       ln1g_ref, ln1b_ref, wqkv_ref, wo_ref, bo_ref,
                       ln2g_ref, ln2b_ref, w1_ref, b1_ref, w2_ref, b2_ref,
                       o_ref, *, depth, heads, dim_head, scale):
    # x_ref block: (1, N, D) — one batch row per grid step.
    # Weight refs hold the full per-layer-stacked tensors (depth, ...), bf16 for matmuls.
    x = x_ref[0].astype(jnp.float32)                         # (N, D) residual stream, f32
    inner = heads * dim_head

    for l in range(depth):                                   # static unroll (depth small)
        # ---------------- Residual(PreNorm(Attention)) ----------------
        h = _layernorm(x, ln1g_ref[l], ln1b_ref[l])
        qkv = jnp.dot(h.astype(jnp.bfloat16), wqkv_ref[l],   # (N, 3*inner), f32 accum
                      preferred_element_type=jnp.float32)

        head_outs = []
        for hd in range(heads):                              # static per-head loop
            lo = hd * dim_head
            qh = qkv[:, lo:lo + dim_head].astype(jnp.bfloat16)                        # (N, dh)
            kh = qkv[:, inner + lo:inner + lo + dim_head].astype(jnp.bfloat16)
            vh = qkv[:, 2 * inner + lo:2 * inner + lo + dim_head].astype(jnp.bfloat16)
            # q @ k^T without materializing a transpose (contract last dims on the MXU).
            s = jax.lax.dot_general(qh, kh, (((1,), (1,)), ((), ())),
                                    preferred_element_type=jnp.float32) * scale       # (N, N)
            s = s - jnp.max(s, axis=-1, keepdims=True)
            p = jnp.exp(s)
            p = p * pl.reciprocal(jnp.sum(p, axis=-1, keepdims=True), approx=True)
            head_outs.append(jnp.dot(p.astype(jnp.bfloat16), vh,
                                     preferred_element_type=jnp.float32))             # (N, dh)
        attn = jnp.concatenate(head_outs, axis=-1)           # (N, inner), lane-dense

        proj = jnp.dot(attn.astype(jnp.bfloat16), wo_ref[l],
                       preferred_element_type=jnp.float32) + bo_ref[l]
        x = x + proj

        # ---------------- Residual(PreNorm(FeedForward)) ----------------
        h = _layernorm(x, ln2g_ref[l], ln2b_ref[l])
        h1 = jnp.dot(h.astype(jnp.bfloat16), w1_ref[l],
                     preferred_element_type=jnp.float32) + b1_ref[l]
        g = _gelu(h1)
        x = x + (jnp.dot(g.astype(jnp.bfloat16), w2_ref[l],
                         preferred_element_type=jnp.float32) + b2_ref[l])

    o_ref[0] = x.astype(o_ref.dtype)                         # full (8, 128) unmasked store


# ------------------------------------- wrapper --------------------------------------------
def transformer_forward(x, params, *, heads=HEADS, dim_head=DIM_HEAD, scale=SCALE):
    # TODO(synk): mask path of Attention.forward not implemented (forward uses mask=None);
    #             dropout p=0.0 is the identity at inference, so it is omitted.
    B, N, D = x.shape
    depth = params["wqkv"].shape[0]
    inner = heads * dim_head
    mlp = params["w1"].shape[-1]

    def full(shape):
        n = len(shape)
        # Constant block index across the grid -> weights stay resident in VMEM.
        return pl.BlockSpec(shape, lambda i, _n=n: (0,) * _n)

    kern = functools.partial(transformer_kernel, depth=depth, heads=heads,
                             dim_head=dim_head, scale=scale)

    return pl.pallas_call(
        kern,
        out_shape=jax.ShapeDtypeStruct((B, N, D), x.dtype),
        grid=(B,),
        in_specs=[
            pl.BlockSpec((1, N, D), lambda i: (i, 0, 0)),    # x: one batch row per step
            full((depth, 1, D)),                             # ln1_g
            full((depth, 1, D)),                             # ln1_b
            full((depth, D, 3 * inner)),                     # wqkv (bf16, no bias)
            full((depth, inner, D)),                         # wo   (bf16)
            full((depth, 1, D)),                             # bo
            full((depth, 1, D)),                             # ln2_g
            full((depth, 1, D)),                             # ln2_b
            full((depth, D, mlp)),                           # w1   (bf16)
            full((depth, 1, mlp)),                           # b1
            full((depth, mlp, D)),                           # w2   (bf16)
            full((depth, 1, D)),                             # b2
        ],
        out_specs=pl.BlockSpec((1, N, D), lambda i: (i, 0, 0)),
        compiler_params=pltpu.CompilerParams(
            dimension_semantics=("parallel",),
        ),
    )(x,
      params["ln1_g"], params["ln1_b"], params["wqkv"], params["wo"], params["bo"],
      params["ln2_g"], params["ln2_b"], params["w1"], params["b1"], params["w2"], params["b2"])


# ----------------------------- pure-JAX reference (f32 math) ------------------------------
def transformer_reference(x, params, *, heads=HEADS, dim_head=DIM_HEAD, scale=SCALE):
    depth = params["wqkv"].shape[0]
    B, N, _ = x.shape
    f32 = lambda a: a.astype(jnp.float32)
    x = f32(x)
    for l in range(depth):
        h = _layernorm(x, f32(params["ln1_g"][l]), f32(params["ln1_b"][l]))
        qkv = h @ f32(params["wqkv"][l])                                  # (B, N, 3*inner)
        q, k, v = jnp.split(qkv, 3, axis=-1)
        sp = lambda t: t.reshape(B, N, heads, dim_head).transpose(0, 2, 1, 3)
        q, k, v = map(sp, (q, k, v))
        s = jnp.einsum("bhid,bhjd->bhij", q, k) * scale
        p = jax.nn.softmax(s, axis=-1)
        o = jnp.einsum("bhij,bhjd->bhid", p, v)
        o = o.transpose(0, 2, 1, 3).reshape(B, N, heads * dim_head)
        x = x + (o @ f32(params["wo"][l]) + f32(params["bo"][l]))
        h = _layernorm(x, f32(params["ln2_g"][l]), f32(params["ln2_b"][l]))
        h1 = h @ f32(params["w1"][l]) + f32(params["b1"][l])
        x = x + (_gelu(h1) @ f32(params["w2"][l]) + f32(params["b2"][l]))
    return x


# ------------------------------------- parameters -----------------------------------------
def init_params(key, depth=DEPTH, dim=DIM, heads=HEADS, dim_head=DIM_HEAD, mlp=MLP_DIM):
    inner = heads * dim_head
    ks = jax.random.split(key, 4 * depth)
    f32 = jnp.float32

    def w(k, shape, scale=0.02):
        # bf16 storage for MXU operands; accumulation stays f32 inside the kernel.
        return (jax.random.normal(k, shape, f32) * scale).astype(jnp.bfloat16)

    return dict(
        ln1_g=jnp.ones((depth, 1, dim), f32), ln1_b=jnp.zeros((depth, 1, dim), f32),
        wqkv=jnp.stack([w(ks[4 * i + 0], (dim, 3 * inner)) for i in range(depth)]),
        wo=jnp.stack([w(ks[4 * i + 1], (inner, dim)) for i in range(depth)]),
        bo=jnp.zeros((depth, 1, dim), f32),
        ln2_g=jnp.ones((depth, 1, dim), f32), ln2_b=jnp.zeros((depth, 1, dim), f32),
        w1=jnp.stack([w(ks[4 * i + 2], (dim, mlp)) for i in range(depth)]),
        b1=jnp.zeros((depth, 1, mlp), f32),
        w2=jnp.stack([w(ks[4 * i + 3], (mlp, dim)) for i in range(depth)]),
        b2=jnp.zeros((depth, 1, dim), f32),
    )


# ---------------------------------------- main ---------------------------------------------
if __name__ == "__main__":
    key = jax.random.PRNGKey(0)
    k_x, k_p = jax.random.split(key)

    B, N = 2, 8
    x = jax.random.normal(k_x, (B, N, DIM), jnp.float32)
    params = init_params(k_p)

    fwd = jax.jit(transformer_forward)
    out = jax.block_until_ready(fwd(x, params))

    assert out.shape == (B, N, DIM), out.shape
    assert bool(jnp.all(jnp.isfinite(out)))

    # Numerics check against an all-f32 pure-JAX reference (kernel uses bf16 MXU operands).
    ref = jax.block_until_ready(jax.jit(transformer_reference)(x, params))
    assert bool(jnp.allclose(out, ref, atol=5e-2, rtol=5e-2)), float(jnp.max(jnp.abs(out - ref)))

    print("KERNEL_OK")
</pallas_src>

<mosaic_0001>
module attributes {stable_mosaic.version = 11 : i64} {
  func.func @transformer_kernel(%arg0: i32, %arg1: memref<1x8x128xf32, #tpu.memory_space<vmem>>, %arg2: memref<2x1x128xf32, #tpu.memory_space<vmem>>, %arg3: memref<2x1x128xf32, #tpu.memory_space<vmem>>, %arg4: memref<2x128x384xbf16, #tpu.memory_space<vmem>>, %arg5: memref<2x128x128xbf16, #tpu.memory_space<vmem>>, %arg6: memref<2x1x128xf32, #tpu.memory_space<vmem>>, %arg7: memref<2x1x128xf32, #tpu.memory_space<vmem>>, %arg8: memref<2x1x128xf32, #tpu.memory_space<vmem>>, %arg9: memref<2x128x256xbf16, #tpu.memory_space<vmem>>, %arg10: memref<2x1x256xf32, #tpu.memory_space<vmem>>, %arg11: memref<2x256x128xbf16, #tpu.memory_space<vmem>>, %arg12: memref<2x1x128xf32, #tpu.memory_space<vmem>>, %arg13: memref<1x8x128xf32, #tpu.memory_space<vmem>>) attributes {dimension_semantics = [#tpu.dimension_semantics<parallel>], iteration_bounds = array<i64: 2>, scalar_prefetch = 0 : i64, scratch_operands = 0 : i64, tpu.core_type = #tpu.core_type<tc>, window_params = [{transform_indices = @transform_0, window_bounds = array<i64: 1, 8, 128>}, {pipeline_mode = #tpu.pipeline_mode<synchronous>, transform_indices = @transform_1, window_bounds = array<i64: 2, 1, 128>}, {pipeline_mode = #tpu.pipeline_mode<synchronous>, transform_indices = @transform_2, window_bounds = array<i64: 2, 1, 128>}, {pipeline_mode = #tpu.pipeline_mode<synchronous>, transform_indices = @transform_3, window_bounds = array<i64: 2, 128, 384>}, {pipeline_mode = #tpu.pipeline_mode<synchronous>, transform_indices = @transform_4, window_bounds = array<i64: 2, 128, 128>}, {pipeline_mode = #tpu.pipeline_mode<synchronous>, transform_indices = @transform_5, window_bounds = array<i64: 2, 1, 128>}, {pipeline_mode = #tpu.pipeline_mode<synchronous>, transform_indices = @transform_6, window_bounds = array<i64: 2, 1, 128>}, {pipeline_mode = #tpu.pipeline_mode<synchronous>, transform_indices = @transform_7, window_bounds = array<i64: 2, 1, 128>}, {pipeline_mode = #tpu.pipeline_mode<synchronous>, transform_indices = @transform_8, window_bounds = array<i64: 2, 128, 256>}, {pipeline_mode = #tpu.pipeline_mode<synchronous>, transform_indices = @transform_9, window_bounds = array<i64: 2, 1, 256>}, {pipeline_mode = #tpu.pipeline_mode<synchronous>, transform_indices = @transform_10, window_bounds = array<i64: 2, 256, 128>}, {pipeline_mode = #tpu.pipeline_mode<synchronous>, transform_indices = @transform_11, window_bounds = array<i64: 2, 1, 128>}, {transform_indices = @transform_12, window_bounds = array<i64: 1, 8, 128>}]} {
    %c0 = arith.constant 0 : index
    %c0_0 = arith.constant 0 : index
    %c0_1 = arith.constant 0 : index
    %0 = vector.load %arg1[%c0, %c0_0, %c0_1] : memref<1x8x128xf32, #tpu.memory_space<vmem>>, vector<1x8x128xf32>
    %1 = vector.shape_cast %0 : vector<1x8x128xf32> to vector<8x128xf32>
    %c0_2 = arith.constant 0 : index
    %c0_3 = arith.constant 0 : index
    %c0_4 = arith.constant 0 : index
    %2 = vector.load %arg2[%c0_2, %c0_3, %c0_4] : memref<2x1x128xf32, #tpu.memory_space<vmem>>, vector<1x1x128xf32>
    %3 = vector.shape_cast %2 : vector<1x1x128xf32> to vector<1x128xf32>
    %c0_5 = arith.constant 0 : index
    %c0_6 = arith.constant 0 : index
    %c0_7 = arith.constant 0 : index
    %4 = vector.load %arg3[%c0_5, %c0_6, %c0_7] : memref<2x1x128xf32, #tpu.memory_space<vmem>>, vector<1x1x128xf32>
    %5 = vector.shape_cast %4 : vector<1x1x128xf32> to vector<1x128xf32>
    %cst = arith.constant dense<0.000000e+00> : vector<8xf32>
    %6 = vector.multi_reduction <add>, %1, %cst [1] : vector<8x128xf32> to vector<8xf32>
    %7 = vector.shape_cast %6 : vector<8xf32> to vector<8x1xf32>
    %cst_8 = arith.constant 1.280000e+02 : f32
    %8 = vector.broadcast %cst_8 : f32 to vector<8x1xf32>
    %9 = arith.divf %7, %8 : vector<8x1xf32>
    %10 = vector.broadcast %9 : vector<8x1xf32> to vector<8x128xf32>
    %11 = arith.subf %1, %10 : vector<8x128xf32>
    %12 = arith.mulf %11, %11 : vector<8x128xf32>
    %cst_9 = arith.constant dense<0.000000e+00> : vector<8xf32>
    %13 = vector.multi_reduction <add>, %12, %cst_9 [1] : vector<8x128xf32> to vector<8xf32>
    %14 = vector.shape_cast %13 : vector<8xf32> to vector<8x1xf32>
    %cst_10 = arith.constant 1.280000e+02 : f32
    %15 = vector.broadcast %cst_10 : f32 to vector<8x1xf32>
    %16 = arith.divf %14, %15 : vector<8x1xf32>
    %17 = vector.broadcast %9 : vector<8x1xf32> to vector<8x128xf32>
    %18 = arith.subf %1, %17 : vector<8x128xf32>
    %cst_11 = arith.constant 9.99999974E-6 : f32
    %19 = vector.broadcast %cst_11 : f32 to vector<8x1xf32>
    %20 = arith.addf %16, %19 : vector<8x1xf32>
    %21 = math.rsqrt %20 : vector<8x1xf32>
    %22 = vector.broadcast %21 : vector<8x1xf32> to vector<8x128xf32>
    %23 = arith.mulf %18, %22 : vector<8x128xf32>
    %24 = vector.broadcast %3 : vector<1x128xf32> to vector<8x128xf32>
    %25 = arith.mulf %23, %24 : vector<8x128xf32>
    %26 = vector.broadcast %5 : vector<1x128xf32> to vector<8x128xf32>
    %27 = arith.addf %25, %26 : vector<8x128xf32>
    %28 = arith.truncf %27 : vector<8x128xf32> to vector<8x128xbf16>
    %c0_12 = arith.constant 0 : index
    %c0_13 = arith.constant 0 : index
    %c0_14 = arith.constant 0 : index
    %29 = vector.load %arg4[%c0_12, %c0_13, %c0_14] : memref<2x128x384xbf16, #tpu.memory_space<vmem>>, vector<1x128x384xbf16>
    %30 = vector.shape_cast %29 : vector<1x128x384xbf16> to vector<128x384xbf16>
    %cst_15 = arith.constant dense<0.000000e+00> : vector<8x384xf32>
    %31 = tpu.matmul %28, %30, %cst_15 {dimension_numbers = #tpu.dot_dimension_numbers<[1], [0], [0], [1], [0, 0, 1, 1], [], []>} : vector<8x128xbf16>, vector<128x384xbf16>, vector<8x384xf32> -> vector<8x384xf32>
    %32 = vector.extract_strided_slice %31 {offsets = [0, 0], sizes = [8, 32], strides = [1, 1]} : vector<8x384xf32> to vector<8x32xf32>
    %33 = arith.truncf %32 : vector<8x32xf32> to vector<8x32xbf16>
    %34 = vector.extract_strided_slice %31 {offsets = [0, 128], sizes = [8, 32], strides = [1, 1]} : vector<8x384xf32> to vector<8x32xf32>
    %35 = arith.truncf %34 : vector<8x32xf32> to vector<8x32xbf16>
    %36 = vector.extract_strided_slice %31 {offsets = [0, 256], sizes = [8, 32], strides = [1, 1]} : vector<8x384xf32> to vector<8x32xf32>
    %37 = arith.truncf %36 : vector<8x32xf32> to vector<8x32xbf16>
    %cst_16 = arith.constant dense<0.000000e+00> : vector<8x8xf32>
    %38 = tpu.matmul %33, %35, %cst_16 {dimension_numbers = #tpu.dot_dimension_numbers<[1], [1], [0], [0], [0, 0, 1, 0], [], []>} : vector<8x32xbf16>, vector<8x32xbf16>, vector<8x8xf32> -> vector<8x8xf32>
    %cst_17 = arith.constant 0.0883883461 : f32
    %39 = vector.broadcast %cst_17 : f32 to vector<8x8xf32>
    %40 = arith.mulf %38, %39 : vector<8x8xf32>
    %cst_18 = arith.constant dense<0xFF800000> : vector<8xf32>
    %41 = vector.multi_reduction <maximumf>, %40, %cst_18 [1] : vector<8x8xf32> to vector<8xf32>
    %42 = vector.shape_cast %41 : vector<8xf32> to vector<8x1xf32>
    %43 = vector.broadcast %42 : vector<8x1xf32> to vector<8x8xf32>
    %44 = arith.subf %40, %43 : vector<8x8xf32>
    %45 = math.exp %44 : vector<8x8xf32>
    %cst_19 = arith.constant dense<0.000000e+00> : vector<8xf32>
    %46 = vector.multi_reduction <add>, %45, %cst_19 [1] : vector<8x8xf32> to vector<8xf32>
    %47 = vector.shape_cast %46 : vector<8xf32> to vector<8x1xf32>
    %48 = tpu.reciprocal %47 {approx = true} : vector<8x1xf32> -> vector<8x1xf32>
    %49 = vector.broadcast %48 : vector<8x1xf32> to vector<8x8xf32>
    %50 = arith.mulf %45, %49 : vector<8x8xf32>
    %51 = arith.truncf %50 : vector<8x8xf32> to vector<8x8xbf16>
    %cst_20 = arith.constant dense<0.000000e+00> : vector<8x32xf32>
    %52 = tpu.matmul %51, %37, %cst_20 {dimension_numbers = #tpu.dot_dimension_numbers<[1], [0], [0], [1], [0, 0, 1, 1], [], []>} : vector<8x8xbf16>, vector<8x32xbf16>, vector<8x32xf32> -> vector<8x32xf32>
    %53 = vector.extract_strided_slice %31 {offsets = [0, 32], sizes = [8, 32], strides = [1, 1]} : vector<8x384xf32> to vector<8x32xf32>
    %54 = arith.truncf %53 : vector<8x32xf32> to vector<8x32xbf16>
    %55 = vector.extract_strided_slice %31 {offsets = [0, 160], sizes = [8, 32], strides = [1, 1]} : vector<8x384xf32> to vector<8x32xf32>
    %56 = arith.truncf %55 : vector<8x32xf32> to vector<8x32xbf16>
    %57 = vector.extract_strided_slice %31 {offsets = [0, 288], sizes = [8, 32], strides = [1, 1]} : vector<8x384xf32> to vector<8x32xf32>
    %58 = arith.truncf %57 : vector<8x32xf32> to vector<8x32xbf16>
    %cst_21 = arith.constant dense<0.000000e+00> : vector<8x8xf32>
    %59 = tpu.matmul %54, %56, %cst_21 {dimension_numbers = #tpu.dot_dimension_numbers<[1], [1], [0], [0], [0, 0, 1, 0], [], []>} : vector<8x32xbf16>, vector<8x32xbf16>, vector<8x8xf32> -> vector<8x8xf32>
    %cst_22 = arith.constant 0.0883883461 : f32
    %60 = vector.broadcast %cst_22 : f32 to vector<8x8xf32>
    %61 = arith.mulf %59, %60 : vector<8x8xf32>
    %cst_23 = arith.constant dense<0xFF800000> : vector<8xf32>
    %62 = vector.multi_reduction <maximumf>, %61, %cst_23 [1] : vector<8x8xf32> to vector<8xf32>
    %63 = vector.shape_cast %62 : vector<8xf32> to vector<8x1xf32>
    %64 = vector.broadcast %63 : vector<8x1xf32> to vector<8x8xf32>
    %65 = arith.subf %61, %64 : vector<8x8xf32>
    %66 = math.exp %65 : vector<8x8xf32>
    %cst_24 = arith.constant dense<0.000000e+00> : vector<8xf32>
    %67 = vector.multi_reduction <add>, %66, %cst_24 [1] : vector<8x8xf32> to vector<8xf32>
    %68 = vector.shape_cast %67 : vector<8xf32> to vector<8x1xf32>
    %69 = tpu.reciprocal %68 {approx = true} : vector<8x1xf32> -> vector<8x1xf32>
    %70 = vector.broadcast %69 : vector<8x1xf32> to vector<8x8xf32>
    %71 = arith.mulf %66, %70 : vector<8x8xf32>
    %72 = arith.truncf %71 : vector<8x8xf32> to vector<8x8xbf16>
    %cst_25 = arith.constant dense<0.000000e+00> : vector<8x32xf32>
    %73 = tpu.matmul %72, %58, %cst_25 {dimension_numbers = #tpu.dot_dimension_numbers<[1], [0], [0], [1], [0, 0, 1, 1], [], []>} : vector<8x8xbf16>, vector<8x32xbf16>, vector<8x32xf32> -> vector<8x32xf32>
    %74 = vector.extract_strided_slice %31 {offsets = [0, 64], sizes = [8, 32], strides = [1, 1]} : vector<8x384xf32> to vector<8x32xf32>
    %75 = arith.truncf %74 : vector<8x32xf32> to vector<8x32xbf16>
    %76 = vector.extract_strided_slice %31 {offsets = [0, 192], sizes = [8, 32], strides = [1, 1]} : vector<8x384xf32> to vector<8x32xf32>
    %77 = arith.truncf %76 : vector<8x32xf32> to vector<8x32xbf16>
    %78 = vector.extract_strided_slice %31 {offsets = [0, 320], sizes = [8, 32], strides = [1, 1]} : vector<8x384xf32> to vector<8x32xf32>
    %79 = arith.truncf %78 : vector<8x32xf32> to vector<8x32xbf16>
    %cst_26 = arith.constant dense<0.000000e+00> : vector<8x8xf32>
    %80 = tpu.matmul %75, %77, %cst_26 {dimension_numbers = #tpu.dot_dimension_numbers<[1], [1], [0], [0], [0, 0, 1, 0], [], []>} : vector<8x32xbf16>, vector<8x32xbf16>, vector<8x8xf32> -> vector<8x8xf32>
    %cst_27 = arith.constant 0.0883883461 : f32
    %81 = vector.broadcast %cst_27 : f32 to vector<8x8xf32>
    %82 = arith.mulf %80, %81 : vector<8x8xf32>
    %cst_28 = arith.constant dense<0xFF800000> : vector<8xf32>
    %83 = vector.multi_reduction <maximumf>, %82, %cst_28 [1] : vector<8x8xf32> to vector<8xf32>
    %84 = vector.shape_cast %83 : vector<8xf32> to vector<8x1xf32>
    %85 = vector.broadcast %84 : vector<8x1xf32> to vector<8x8xf32>
    %86 = arith.subf %82, %85 : vector<8x8xf32>
    %87 = math.exp %86 : vector<8x8xf32>
    %cst_29 = arith.constant dense<0.000000e+00> : vector<8xf32>
    %88 = vector.multi_reduction <add>, %87, %cst_29 [1] : vector<8x8xf32> to vector<8xf32>
    %89 = vector.shape_cast %88 : vector<8xf32> to vector<8x1xf32>
    %90 = tpu.reciprocal %89 {approx = true} : vector<8x1xf32> -> vector<8x1xf32>
    %91 = vector.broadcast %90 : vector<8x1xf32> to vector<8x8xf32>
    %92 = arith.mulf %87, %91 : vector<8x8xf32>
    %93 = arith.truncf %92 : vector<8x8xf32> to vector<8x8xbf16>
    %cst_30 = arith.constant dense<0.000000e+00> : vector<8x32xf32>
    %94 = tpu.matmul %93, %79, %cst_30 {dimension_numbers = #tpu.dot_dimension_numbers<[1], [0], [0], [1], [0, 0, 1, 1], [], []>} : vector<8x8xbf16>, vector<8x32xbf16>, vector<8x32xf32> -> vector<8x32xf32>
    %95 = vector.extract_strided_slice %31 {offsets = [0, 96], sizes = [8, 32], strides = [1, 1]} : vector<8x384xf32> to vector<8x32xf32>
    %96 = arith.truncf %95 : vector<8x32xf32> to vector<8x32xbf16>
    %97 = vector.extract_strided_slice %31 {offsets = [0, 224], sizes = [8, 32], strides = [1, 1]} : vector<8x384xf32> to vector<8x32xf32>
    %98 = arith.truncf %97 : vector<8x32xf32> to vector<8x32xbf16>
    %99 = vector.extract_strided_slice %31 {offsets = [0, 352], sizes = [8, 32], strides = [1, 1]} : vector<8x384xf32> to vector<8x32xf32>
    %100 = arith.truncf %99 : vector<8x32xf32> to vector<8x32xbf16>
    %cst_31 = arith.constant dense<0.000000e+00> : vector<8x8xf32>
    %101 = tpu.matmul %96, %98, %cst_31 {dimension_numbers = #tpu.dot_dimension_numbers<[1], [1], [0], [0], [0, 0, 1, 0], [], []>} : vector<8x32xbf16>, vector<8x32xbf16>, vector<8x8xf32> -> vector<8x8xf32>
    %cst_32 = arith.constant 0.0883883461 : f32
    %102 = vector.broadcast %cst_32 : f32 to vector<8x8xf32>
    %103 = arith.mulf %101, %102 : vector<8x8xf32>
    %cst_33 = arith.constant dense<0xFF800000> : vector<8xf32>
    %104 = vector.multi_reduction <maximumf>, %103, %cst_33 [1] : vector<8x8xf32> to vector<8xf32>
    %105 = vector.shape_cast %104 : vector<8xf32> to vector<8x1xf32>
    %106 = vector.broadcast %105 : vector<8x1xf32> to vector<8x8xf32>
    %107 = arith.subf %103, %106 : vector<8x8xf32>
    %108 = math.exp %107 : vector<8x8xf32>
    %cst_34 = arith.constant dense<0.000000e+00> : vector<8xf32>
    %109 = vector.multi_reduction <add>, %108, %cst_34 [1] : vector<8x8xf32> to vector<8xf32>
    %110 = vector.shape_cast %109 : vector<8xf32> to vector<8x1xf32>
    %111 = tpu.reciprocal %110 {approx = true} : vector<8x1xf32> -> vector<8x1xf32>
    %112 = vector.broadcast %111 : vector<8x1xf32> to vector<8x8xf32>
    %113 = arith.mulf %108, %112 : vector<8x8xf32>
    %114 = arith.truncf %113 : vector<8x8xf32> to vector<8x8xbf16>
    %cst_35 = arith.constant dense<0.000000e+00> : vector<8x32xf32>
    %115 = tpu.matmul %114, %100, %cst_35 {dimension_numbers = #tpu.dot_dimension_numbers<[1], [0], [0], [1], [0, 0, 1, 1], [], []>} : vector<8x8xbf16>, vector<8x32xbf16>, vector<8x32xf32> -> vector<8x32xf32>
    %116 = tpu.concatenate %52, %73, %94, %115 in 1 : vector<8x32xf32>, vector<8x32xf32>, vector<8x32xf32>, vector<8x32xf32> -> vector<8x128xf32>
    %117 = arith.truncf %116 : vector<8x128xf32> to vector<8x128xbf16>
    %c0_36 = arith.constant 0 : index
    %c0_37 = arith.constant 0 : index
    %c0_38 = arith.constant 0 : index
    %118 = vector.load %arg5[%c0_36, %c0_37, %c0_38] : memref<2x128x128xbf16, #tpu.memory_space<vmem>>, vector<1x128x128xbf16>
    %119 = vector.shape_cast %118 : vector<1x128x128xbf16> to vector<128x128xbf16>
    %cst_39 = arith.constant dense<0.000000e+00> : vector<8x128xf32>
    %120 = tpu.matmul %117, %119, %cst_39 {dimension_numbers = #tpu.dot_dimension_numbers<[1], [0], [0], [1], [0, 0, 1, 1], [], []>} : vector<8x128xbf16>, vector<128x128xbf16>, vector<8x128xf32> -> vector<8x128xf32>
    %c0_40 = arith.constant 0 : index
    %c0_41 = arith.constant 0 : index
    %c0_42 = arith.constant 0 : index
    %121 = vector.load %arg6[%c0_40, %c0_41, %c0_42] : memref<2x1x128xf32, #tpu.memory_space<vmem>>, vector<1x1x128xf32>
    %122 = vector.shape_cast %121 : vector<1x1x128xf32> to vector<1x128xf32>
    %123 = vector.broadcast %122 : vector<1x128xf32> to vector<8x128xf32>
    %124 = arith.addf %120, %123 : vector<8x128xf32>
    %125 = arith.addf %1, %124 : vector<8x128xf32>
    %c0_43 = arith.constant 0 : index
    %c0_44 = arith.constant 0 : index
    %c0_45 = arith.constant 0 : index
    %126 = vector.load %arg7[%c0_43, %c0_44, %c0_45] : memref<2x1x128xf32, #tpu.memory_space<vmem>>, vector<1x1x128xf32>
    %127 = vector.shape_cast %126 : vector<1x1x128xf32> to vector<1x128xf32>
    %c0_46 = arith.constant 0 : index
    %c0_47 = arith.constant 0 : index
    %c0_48 = arith.constant 0 : index
    %128 = vector.load %arg8[%c0_46, %c0_47, %c0_48] : memref<2x1x128xf32, #tpu.memory_space<vmem>>, vector<1x1x128xf32>
    %129 = vector.shape_cast %128 : vector<1x1x128xf32> to vector<1x128xf32>
    %cst_49 = arith.constant dense<0.000000e+00> : vector<8xf32>
    %130 = vector.multi_reduction <add>, %125, %cst_49 [1] : vector<8x128xf32> to vector<8xf32>
    %131 = vector.shape_cast %130 : vector<8xf32> to vector<8x1xf32>
    %cst_50 = arith.constant 1.280000e+02 : f32
    %132 = vector.broadcast %cst_50 : f32 to vector<8x1xf32>
    %133 = arith.divf %131, %132 : vector<8x1xf32>
    %134 = vector.broadcast %133 : vector<8x1xf32> to vector<8x128xf32>
    %135 = arith.subf %125, %134 : vector<8x128xf32>
    %136 = arith.mulf %135, %135 : vector<8x128xf32>
    %cst_51 = arith.constant dense<0.000000e+00> : vector<8xf32>
    %137 = vector.multi_reduction <add>, %136, %cst_51 [1] : vector<8x128xf32> to vector<8xf32>
    %138 = vector.shape_cast %137 : vector<8xf32> to vector<8x1xf32>
    %cst_52 = arith.constant 1.280000e+02 : f32
    %139 = vector.broadcast %cst_52 : f32 to vector<8x1xf32>
    %140 = arith.divf %138, %139 : vector<8x1xf32>
    %141 = vector.broadcast %133 : vector<8x1xf32> to vector<8x128xf32>
    %142 = arith.subf %125, %141 : vector<8x128xf32>
    %cst_53 = arith.constant 9.99999974E-6 : f32
    %143 = vector.broadcast %cst_53 : f32 to vector<8x1xf32>
    %144 = arith.addf %140, %143 : vector<8x1xf32>
    %145 = math.rsqrt %144 : vector<8x1xf32>
    %146 = vector.broadcast %145 : vector<8x1xf32> to vector<8x128xf32>
    %147 = arith.mulf %142, %146 : vector<8x128xf32>
    %148 = vector.broadcast %127 : vector<1x128xf32> to vector<8x128xf32>
    %149 = arith.mulf %147, %148 : vector<8x128xf32>
    %150 = vector.broadcast %129 : vector<1x128xf32> to vector<8x128xf32>
    %151 = arith.addf %149, %150 : vector<8x128xf32>
    %152 = arith.truncf %151 : vector<8x128xf32> to vector<8x128xbf16>
    %c0_54 = arith.constant 0 : index
    %c0_55 = arith.constant 0 : index
    %c0_56 = arith.constant 0 : index
    %153 = vector.load %arg9[%c0_54, %c0_55, %c0_56] : memref<2x128x256xbf16, #tpu.memory_space<vmem>>, vector<1x128x256xbf16>
    %154 = vector.shape_cast %153 : vector<1x128x256xbf16> to vector<128x256xbf16>
    %cst_57 = arith.constant dense<0.000000e+00> : vector<8x256xf32>
    %155 = tpu.matmul %152, %154, %cst_57 {dimension_numbers = #tpu.dot_dimension_numbers<[1], [0], [0], [1], [0, 0, 1, 1], [], []>} : vector<8x128xbf16>, vector<128x256xbf16>, vector<8x256xf32> -> vector<8x256xf32>
    %c0_58 = arith.constant 0 : index
    %c0_59 = arith.constant 0 : index
    %c0_60 = arith.constant 0 : index
    %156 = vector.load %arg10[%c0_58, %c0_59, %c0_60] : memref<2x1x256xf32, #tpu.memory_space<vmem>>, vector<1x1x256xf32>
    %157 = vector.shape_cast %156 : vector<1x1x256xf32> to vector<1x256xf32>
    %158 = vector.broadcast %157 : vector<1x256xf32> to vector<8x256xf32>
    %159 = arith.addf %155, %158 : vector<8x256xf32>
    %cst_61 = arith.constant 5.000000e-01 : f32
    %160 = vector.broadcast %cst_61 : f32 to vector<8x256xf32>
    %161 = arith.mulf %160, %159 : vector<8x256xf32>
    %cst_62 = arith.constant 4.471500e-02 : f32
    %162 = vector.broadcast %cst_62 : f32 to vector<8x256xf32>
    %163 = arith.mulf %162, %159 : vector<8x256xf32>
    %164 = arith.mulf %163, %159 : vector<8x256xf32>
    %165 = arith.mulf %164, %159 : vector<8x256xf32>
    %166 = arith.addf %159, %165 : vector<8x256xf32>
    %cst_63 = arith.constant 0.797884583 : f32
    %167 = vector.broadcast %cst_63 : f32 to vector<8x256xf32>
    %168 = arith.mulf %167, %166 : vector<8x256xf32>
    %169 = math.tanh %168 : vector<8x256xf32>
    %cst_64 = arith.constant 1.000000e+00 : f32
    %170 = vector.broadcast %cst_64 : f32 to vector<8x256xf32>
    %171 = arith.addf %170, %169 : vector<8x256xf32>
    %172 = arith.mulf %161, %171 : vector<8x256xf32>
    %173 = arith.truncf %172 : vector<8x256xf32> to vector<8x256xbf16>
    %c0_65 = arith.constant 0 : index
    %c0_66 = arith.constant 0 : index
    %c0_67 = arith.constant 0 : index
    %174 = vector.load %arg11[%c0_65, %c0_66, %c0_67] : memref<2x256x128xbf16, #tpu.memory_space<vmem>>, vector<1x256x128xbf16>
    %175 = vector.shape_cast %174 : vector<1x256x128xbf16> to vector<256x128xbf16>
    %cst_68 = arith.constant dense<0.000000e+00> : vector<8x128xf32>
    %176 = tpu.matmul %173, %175, %cst_68 {dimension_numbers = #tpu.dot_dimension_numbers<[1], [0], [0], [1], [0, 0, 1, 1], [], []>} : vector<8x256xbf16>, vector<256x128xbf16>, vector<8x128xf32> -> vector<8x128xf32>
    %c0_69 = arith.constant 0 : index
    %c0_70 = arith.constant 0 : index
    %c0_71 = arith.constant 0 : index
    %177 = vector.load %arg12[%c0_69, %c0_70, %c0_71] : memref<2x1x128xf32, #tpu.memory_space<vmem>>, vector<1x1x128xf32>
    %178 = vector.shape_cast %177 : vector<1x1x128xf32> to vector<1x128xf32>
    %179 = vector.broadcast %178 : vector<1x128xf32> to vector<8x128xf32>
    %180 = arith.addf %176, %179 : vector<8x128xf32>
    %181 = arith.addf %125, %180 : vector<8x128xf32>
    %c1 = arith.constant 1 : index
    %c0_72 = arith.constant 0 : index
    %c0_73 = arith.constant 0 : index
    %182 = vector.load %arg2[%c1, %c0_72, %c0_73] : memref<2x1x128xf32, #tpu.memory_space<vmem>>, vector<1x1x128xf32>
    %183 = vector.shape_cast %182 : vector<1x1x128xf32> to vector<1x128xf32>
    %c1_74 = arith.constant 1 : index
    %c0_75 = arith.constant 0 : index
    %c0_76 = arith.constant 0 : index
    %184 = vector.load %arg3[%c1_74, %c0_75, %c0_76] : memref<2x1x128xf32, #tpu.memory_space<vmem>>, vector<1x1x128xf32>
    %185 = vector.shape_cast %184 : vector<1x1x128xf32> to vector<1x128xf32>
    %cst_77 = arith.constant dense<0.000000e+00> : vector<8xf32>
    %186 = vector.multi_reduction <add>, %181, %cst_77 [1] : vector<8x128xf32> to vector<8xf32>
    %187 = vector.shape_cast %186 : vector<8xf32> to vector<8x1xf32>
    %cst_78 = arith.constant 1.280000e+02 : f32
    %188 = vector.broadcast %cst_78 : f32 to vector<8x1xf32>
    %189 = arith.divf %187, %188 : vector<8x1xf32>
    %190 = vector.broadcast %189 : vector<8x1xf32> to vector<8x128xf32>
    %191 = arith.subf %181, %190 : vector<8x128xf32>
    %192 = arith.mulf %191, %191 : vector<8x128xf32>
    %cst_79 = arith.constant dense<0.000000e+00> : vector<8xf32>
    %193 = vector.multi_reduction <add>, %192, %cst_79 [1] : vector<8x128xf32> to vector<8xf32>
    %194 = vector.shape_cast %193 : vector<8xf32> to vector<8x1xf32>
    %cst_80 = arith.constant 1.280000e+02 : f32
    %195 = vector.broadcast %cst_80 : f32 to vector<8x1xf32>
    %196 = arith.divf %194, %195 : vector<8x1xf32>
    %197 = vector.broadcast %189 : vector<8x1xf32> to vector<8x128xf32>
    %198 = arith.subf %181, %197 : vector<8x128xf32>
    %cst_81 = arith.constant 9.99999974E-6 : f32
    %199 = vector.broadcast %cst_81 : f32 to vector<8x1xf32>
    %200 = arith.addf %196, %199 : vector<8x1xf32>
    %201 = math.rsqrt %200 : vector<8x1xf32>
    %202 = vector.broadcast %201 : vector<8x1xf32> to vector<8x128xf32>
    %203 = arith.mulf %198, %202 : vector<8x128xf32>
    %204 = vector.broadcast %183 : vector<1x128xf32> to vector<8x128xf32>
    %205 = arith.mulf %203, %204 : vector<8x128xf32>
    %206 = vector.broadcast %185 : vector<1x128xf32> to vector<8x128xf32>
    %207 = arith.addf %205, %206 : vector<8x128xf32>
    %208 = arith.truncf %207 : vector<8x128xf32> to vector<8x128xbf16>
    %c1_82 = arith.constant 1 : index
    %c0_83 = arith.constant 0 : index
    %c0_84 = arith.constant 0 : index
    %209 = vector.load %arg4[%c1_82, %c0_83, %c0_84] : memref<2x128x384xbf16, #tpu.memory_space<vmem>>, vector<1x128x384xbf16>
    %210 = vector.shape_cast %209 : vector<1x128x384xbf16> to vector<128x384xbf16>
    %cst_85 = arith.constant dense<0.000000e+00> : vector<8x384xf32>
    %211 = tpu.matmul %208, %210, %cst_85 {dimension_numbers = #tpu.dot_dimension_numbers<[1], [0], [0], [1], [0, 0, 1, 1], [], []>} : vector<8x128xbf16>, vector<128x384xbf16>, vector<8x384xf32> -> vector<8x384xf32>
    %212 = vector.extract_strided_slice %211 {offsets = [0, 0], sizes = [8, 32], strides = [1, 1]} : vector<8x384xf32> to vector<8x32xf32>
    %213 = arith.truncf %212 : vector<8x32xf32> to vector<8x32xbf16>
    %214 = vector.extract_strided_slice %211 {offsets = [0, 128], sizes = [8, 32], strides = [1, 1]} : vector<8x384xf32> to vector<8x32xf32>
    %215 = arith.truncf %214 : vector<8x32xf32> to vector<8x32xbf16>
    %216 = vector.extract_strided_slice %211 {offsets = [0, 256], sizes = [8, 32], strides = [1, 1]} : vector<8x384xf32> to vector<8x32xf32>
    %217 = arith.truncf %216 : vector<8x32xf32> to vector<8x32xbf16>
    %cst_86 = arith.constant dense<0.000000e+00> : vector<8x8xf32>
    %218 = tpu.matmul %213, %215, %cst_86 {dimension_numbers = #tpu.dot_dimension_numbers<[1], [1], [0], [0], [0, 0, 1, 0], [], []>} : vector<8x32xbf16>, vector<8x32xbf16>, vector<8x8xf32> -> vector<8x8xf32>
    %cst_87 = arith.constant 0.0883883461 : f32
    %219 = vector.broadcast %cst_87 : f32 to vector<8x8xf32>
    %220 = arith.mulf %218, %219 : vector<8x8xf32>
    %cst_88 = arith.constant dense<0xFF800000> : vector<8xf32>
    %221 = vector.multi_reduction <maximumf>, %220, %cst_88 [1] : vector<8x8xf32> to vector<8xf32>
    %222 = vector.shape_cast %221 : vector<8xf32> to vector<8x1xf32>
    %223 = vector.broadcast %222 : vector<8x1xf32> to vector<8x8xf32>
    %224 = arith.subf %220, %223 : vector<8x8xf32>
    %225 = math.exp %224 : vector<8x8xf32>
    %cst_89 = arith.constant dense<0.000000e+00> : vector<8xf32>
    %226 = vector.multi_reduction <add>, %225, %cst_89 [1] : vector<8x8xf32> to vector<8xf32>
    %227 = vector.shape_cast %226 : vector<8xf32> to vector<8x1xf32>
    %228 = tpu.reciprocal %227 {approx = true} : vector<8x1xf32> -> vector<8x1xf32>
    %229 = vector.broadcast %228 : vector<8x1xf32> to vector<8x8xf32>
    %230 = arith.mulf %225, %229 : vector<8x8xf32>
    %231 = arith.truncf %230 : vector<8x8xf32> to vector<8x8xbf16>
    %cst_90 = arith.constant dense<0.000000e+00> : vector<8x32xf32>
    %232 = tpu.matmul %231, %217, %cst_90 {dimension_numbers = #tpu.dot_dimension_numbers<[1], [0], [0], [1], [0, 0, 1, 1], [], []>} : vector<8x8xbf16>, vector<8x32xbf16>, vector<8x32xf32> -> vector<8x32xf32>
    %233 = vector.extract_strided_slice %211 {offsets = [0, 32], sizes = [8, 32], strides = [1, 1]} : vector<8x384xf32> to vector<8x32xf32>
    %234 = arith.truncf %233 : vector<8x32xf32> to vector<8x32xbf16>
    %235 = vector.extract_strided_slice %211 {offsets = [0, 160], sizes = [8, 32], strides = [1, 1]} : vector<8x384xf32> to vector<8x32xf32>
    %236 = arith.truncf %235 : vector<8x32xf32> to vector<8x32xbf16>
    %237 = vector.extract_strided_slice %211 {offsets = [0, 288], sizes = [8, 32], strides = [1, 1]} : vector<8x384xf32> to vector<8x32xf32>
    %238 = arith.truncf %237 : vector<8x32xf32> to vector<8x32xbf16>
    %cst_91 = arith.constant dense<0.000000e+00> : vector<8x8xf32>
    %239 = tpu.matmul %234, %236, %cst_91 {dimension_numbers = #tpu.dot_dimension_numbers<[1], [1], [0], [0], [0, 0, 1, 0], [], []>} : vector<8x32xbf16>, vector<8x32xbf16>, vector<8x8xf32> -> vector<8x8xf32>
    %cst_92 = arith.constant 0.0883883461 : f32
    %240 = vector.broadcast %cst_92 : f32 to vector<8x8xf32>
    %241 = arith.mulf %239, %240 : vector<8x8xf32>
    %cst_93 = arith.constant dense<0xFF800000> : vector<8xf32>
    %242 = vector.multi_reduction <maximumf>, %241, %cst_93 [1] : vector<8x8xf32> to vector<8xf32>
    %243 = vector.shape_cast %242 : vector<8xf32> to vector<8x1xf32>
    %244 = vector.broadcast %243 : vector<8x1xf32> to vector<8x8xf32>
    %245 = arith.subf %241, %244 : vector<8x8xf32>
    %246 = math.exp %245 : vector<8x8xf32>
    %cst_94 = arith.constant dense<0.000000e+00> : vector<8xf32>
    %247 = vector.multi_reduction <add>, %246, %cst_94 [1] : vector<8x8xf32> to vector<8xf32>
    %248 = vector.shape_cast %247 : vector<8xf32> to vector<8x1xf32>
    %249 = tpu.reciprocal %248 {approx = true} : vector<8x1xf32> -> vector<8x1xf32>
    %250 = vector.broadcast %249 : vector<8x1xf32> to vector<8x8xf32>
    %251 = arith.mulf %246, %250 : vector<8x8xf32>
    %252 = arith.truncf %251 : vector<8x8xf32> to vector<8x8xbf16>
    %cst_95 = arith.constant dense<0.000000e+00> : vector<8x32xf32>
    %253 = tpu.matmul %252, %238, %cst_95 {dimension_numbers = #tpu.dot_dimension_numbers<[1], [0], [0], [1], [0, 0, 1, 1], [], []>} : vector<8x8xbf16>, vector<8x32xbf16>, vector<8x32xf32> -> vector<8x32xf32>
    %254 = vector.extract_strided_slice %211 {offsets = [0, 64], sizes = [8, 32], strides = [1, 1]} : vector<8x384xf32> to vector<8x32xf32>
    %255 = arith.truncf %254 : vector<8x32xf32> to vector<8x32xbf16>
    %256 = vector.extract_strided_slice %211 {offsets = [0, 192], sizes = [8, 32], strides = [1, 1]} : vector<8x384xf32> to vector<8x32xf32>
    %257 = arith.truncf %256 : vector<8x32xf32> to vector<8x32xbf16>
    %258 = vector.extract_strided_slice %211 {offsets = [0, 320], sizes = [8, 32], strides = [1, 1]} : vector<8x384xf32> to vector<8x32xf32>
    %259 = arith.truncf %258 : vector<8x32xf32> to vector<8x32xbf16>
    %cst_96 = arith.constant dense<0.000000e+00> : vector<8x8xf32>
    %260 = tpu.matmul %255, %257, %cst_96 {dimension_numbers = #tpu.dot_dimension_numbers<[1], [1], [0], [0], [0, 0, 1, 0], [], []>} : vector<8x32xbf16>, vector<8x32xbf16>, vector<8x8xf32> -> vector<8x8xf32>
    %cst_97 = arith.constant 0.0883883461 : f32
    %261 = vector.broadcast %cst_97 : f32 to vector<8x8xf32>
    %262 = arith.mulf %260, %261 : vector<8x8xf32>
    %cst_98 = arith.constant dense<0xFF800000> : vector<8xf32>
    %263 = vector.multi_reduction <maximumf>, %262, %cst_98 [1] : vector<8x8xf32> to vector<8xf32>
    %264 = vector.shape_cast %263 : vector<8xf32> to vector<8x1xf32>
    %265 = vector.broadcast %264 : vector<8x1xf32> to vector<8x8xf32>
    %266 = arith.subf %262, %265 : vector<8x8xf32>
    %267 = math.exp %266 : vector<8x8xf32>
    %cst_99 = arith.constant dense<0.000000e+00> : vector<8xf32>
    %268 = vector.multi_reduction <add>, %267, %cst_99 [1] : vector<8x8xf32> to vector<8xf32>
    %269 = vector.shape_cast %268 : vector<8xf32> to vector<8x1xf32>
    %270 = tpu.reciprocal %269 {approx = true} : vector<8x1xf32> -> vector<8x1xf32>
    %271 = vector.broadcast %270 : vector<8x1xf32> to vector<8x8xf32>
    %272 = arith.mulf %267, %271 : vector<8x8xf32>
    %273 = arith.truncf %272 : vector<8x8xf32> to vector<8x8xbf16>
    %cst_100 = arith.constant dense<0.000000e+00> : vector<8x32xf32>
    %274 = tpu.matmul %273, %259, %cst_100 {dimension_numbers = #tpu.dot_dimension_numbers<[1], [0], [0], [1], [0, 0, 1, 1], [], []>} : vector<8x8xbf16>, vector<8x32xbf16>, vector<8x32xf32> -> vector<8x32xf32>
    %275 = vector.extract_strided_slice %211 {offsets = [0, 96], sizes = [8, 32], strides = [1, 1]} : vector<8x384xf32> to vector<8x32xf32>
    %276 = arith.truncf %275 : vector<8x32xf32> to vector<8x32xbf16>
    %277 = vector.extract_strided_slice %211 {offsets = [0, 224], sizes = [8, 32], strides = [1, 1]} : vector<8x384xf32> to vector<8x32xf32>
    %278 = arith.truncf %277 : vector<8x32xf32> to vector<8x32xbf16>
    %279 = vector.extract_strided_slice %211 {offsets = [0, 352], sizes = [8, 32], strides = [1, 1]} : vector<8x384xf32> to vector<8x32xf32>
    %280 = arith.truncf %279 : vector<8x32xf32> to vector<8x32xbf16>
    %cst_101 = arith.constant dense<0.000000e+00> : vector<8x8xf32>
    %281 = tpu.matmul %276, %278, %cst_101 {dimension_numbers = #tpu.dot_dimension_numbers<[1], [1], [0], [0], [0, 0, 1, 0], [], []>} : vector<8x32xbf16>, vector<8x32xbf16>, vector<8x8xf32> -> vector<8x8xf32>
    %cst_102 = arith.constant 0.0883883461 : f32
    %282 = vector.broadcast %cst_102 : f32 to vector<8x8xf32>
    %283 = arith.mulf %281, %282 : vector<8x8xf32>
    %cst_103 = arith.constant dense<0xFF800000> : vector<8xf32>
    %284 = vector.multi_reduction <maximumf>, %283, %cst_103 [1] : vector<8x8xf32> to vector<8xf32>
    %285 = vector.shape_cast %284 : vector<8xf32> to vector<8x1xf32>
    %286 = vector.broadcast %285 : vector<8x1xf32> to vector<8x8xf32>
    %287 = arith.subf %283, %286 : vector<8x8xf32>
    %288 = math.exp %287 : vector<8x8xf32>
    %cst_104 = arith.constant dense<0.000000e+00> : vector<8xf32>
    %289 = vector.multi_reduction <add>, %288, %cst_104 [1] : vector<8x8xf32> to vector<8xf32>
    %290 = vector.shape_cast %289 : vector<8xf32> to vector<8x1xf32>
    %291 = tpu.reciprocal %290 {approx = true} : vector<8x1xf32> -> vector<8x1xf32>
    %292 = vector.broadcast %291 : vector<8x1xf32> to vector<8x8xf32>
    %293 = arith.mulf %288, %292 : vector<8x8xf32>
    %294 = arith.truncf %293 : vector<8x8xf32> to vector<8x8xbf16>
    %cst_105 = arith.constant dense<0.000000e+00> : vector<8x32xf32>
    %295 = tpu.matmul %294, %280, %cst_105 {dimension_numbers = #tpu.dot_dimension_numbers<[1], [0], [0], [1], [0, 0, 1, 1], [], []>} : vector<8x8xbf16>, vector<8x32xbf16>, vector<8x32xf32> -> vector<8x32xf32>
    %296 = tpu.concatenate %232, %253, %274, %295 in 1 : vector<8x32xf32>, vector<8x32xf32>, vector<8x32xf32>, vector<8x32xf32> -> vector<8x128xf32>
    %297 = arith.truncf %296 : vector<8x128xf32> to vector<8x128xbf16>
    %c1_106 = arith.constant 1 : index
    %c0_107 = arith.constant 0 : index
    %c0_108 = arith.constant 0 : index
    %298 = vector.load %arg5[%c1_106, %c0_107, %c0_108] : memref<2x128x128xbf16, #tpu.memory_space<vmem>>, vector<1x128x128xbf16>
    %299 = vector.shape_cast %298 : vector<1x128x128xbf16> to vector<128x128xbf16>
    %cst_109 = arith.constant dense<0.000000e+00> : vector<8x128xf32>
    %300 = tpu.matmul %297, %299, %cst_109 {dimension_numbers = #tpu.dot_dimension_numbers<[1], [0], [0], [1], [0, 0, 1, 1], [], []>} : vector<8x128xbf16>, vector<128x128xbf16>, vector<8x128xf32> -> vector<8x128xf32>
    %c1_110 = arith.constant 1 : index
    %c0_111 = arith.constant 0 : index
    %c0_112 = arith.constant 0 : index
    %301 = vector.load %arg6[%c1_110, %c0_111, %c0_112] : memref<2x1x128xf32, #tpu.memory_space<vmem>>, vector<1x1x128xf32>
    %302 = vector.shape_cast %301 : vector<1x1x128xf32> to vector<1x128xf32>
    %303 = vector.broadcast %302 : vector<1x128xf32> to vector<8x128xf32>
    %304 = arith.addf %300, %303 : vector<8x128xf32>
    %305 = arith.addf %181, %304 : vector<8x128xf32>
    %c1_113 = arith.constant 1 : index
    %c0_114 = arith.constant 0 : index
    %c0_115 = arith.constant 0 : index
    %306 = vector.load %arg7[%c1_113, %c0_114, %c0_115] : memref<2x1x128xf32, #tpu.memory_space<vmem>>, vector<1x1x128xf32>
    %307 = vector.shape_cast %306 : vector<1x1x128xf32> to vector<1x128xf32>
    %c1_116 = arith.constant 1 : index
    %c0_117 = arith.constant 0 : index
    %c0_118 = arith.constant 0 : index
    %308 = vector.load %arg8[%c1_116, %c0_117, %c0_118] : memref<2x1x128xf32, #tpu.memory_space<vmem>>, vector<1x1x128xf32>
    %309 = vector.shape_cast %308 : vector<1x1x128xf32> to vector<1x128xf32>
    %cst_119 = arith.constant dense<0.000000e+00> : vector<8xf32>
    %310 = vector.multi_reduction <add>, %305, %cst_119 [1] : vector<8x128xf32> to vector<8xf32>
    %311 = vector.shape_cast %310 : vector<8xf32> to vector<8x1xf32>
    %cst_120 = arith.constant 1.280000e+02 : f32
    %312 = vector.broadcast %cst_120 : f32 to vector<8x1xf32>
    %313 = arith.divf %311, %312 : vector<8x1xf32>
    %314 = vector.broadcast %313 : vector<8x1xf32> to vector<8x128xf32>
    %315 = arith.subf %305, %314 : vector<8x128xf32>
    %316 = arith.mulf %315, %315 : vector<8x128xf32>
    %cst_121 = arith.constant dense<0.000000e+00> : vector<8xf32>
    %317 = vector.multi_reduction <add>, %316, %cst_121 [1] : vector<8x128xf32> to vector<8xf32>
    %318 = vector.shape_cast %317 : vector<8xf32> to vector<8x1xf32>
    %cst_122 = arith.constant 1.280000e+02 : f32
    %319 = vector.broadcast %cst_122 : f32 to vector<8x1xf32>
    %320 = arith.divf %318, %319 : vector<8x1xf32>
    %321 = vector.broadcast %313 : vector<8x1xf32> to vector<8x128xf32>
    %322 = arith.subf %305, %321 : vector<8x128xf32>
    %cst_123 = arith.constant 9.99999974E-6 : f32
    %323 = vector.broadcast %cst_123 : f32 to vector<8x1xf32>
    %324 = arith.addf %320, %323 : vector<8x1xf32>
    %325 = math.rsqrt %324 : vector<8x1xf32>
    %326 = vector.broadcast %325 : vector<8x1xf32> to vector<8x128xf32>
    %327 = arith.mulf %322, %326 : vector<8x128xf32>
    %328 = vector.broadcast %307 : vector<1x128xf32> to vector<8x128xf32>
    %329 = arith.mulf %327, %328 : vector<8x128xf32>
    %330 = vector.broadcast %309 : vector<1x128xf32> to vector<8x128xf32>
    %331 = arith.addf %329, %330 : vector<8x128xf32>
    %332 = arith.truncf %331 : vector<8x128xf32> to vector<8x128xbf16>
    %c1_124 = arith.constant 1 : index
    %c0_125 = arith.constant 0 : index
    %c0_126 = arith.constant 0 : index
    %333 = vector.load %arg9[%c1_124, %c0_125, %c0_126] : memref<2x128x256xbf16, #tpu.memory_space<vmem>>, vector<1x128x256xbf16>
    %334 = vector.shape_cast %333 : vector<1x128x256xbf16> to vector<128x256xbf16>
    %cst_127 = arith.constant dense<0.000000e+00> : vector<8x256xf32>
    %335 = tpu.matmul %332, %334, %cst_127 {dimension_numbers = #tpu.dot_dimension_numbers<[1], [0], [0], [1], [0, 0, 1, 1], [], []>} : vector<8x128xbf16>, vector<128x256xbf16>, vector<8x256xf32> -> vector<8x256xf32>
    %c1_128 = arith.constant 1 : index
    %c0_129 = arith.constant 0 : index
    %c0_130 = arith.constant 0 : index
    %336 = vector.load %arg10[%c1_128, %c0_129, %c0_130] : memref<2x1x256xf32, #tpu.memory_space<vmem>>, vector<1x1x256xf32>
    %337 = vector.shape_cast %336 : vector<1x1x256xf32> to vector<1x256xf32>
    %338 = vector.broadcast %337 : vector<1x256xf32> to vector<8x256xf32>
    %339 = arith.addf %335, %338 : vector<8x256xf32>
    %cst_131 = arith.constant 5.000000e-01 : f32
    %340 = vector.broadcast %cst_131 : f32 to vector<8x256xf32>
    %341 = arith.mulf %340, %339 : vector<8x256xf32>
    %cst_132 = arith.constant 4.471500e-02 : f32
    %342 = vector.broadcast %cst_132 : f32 to vector<8x256xf32>
    %343 = arith.mulf %342, %339 : vector<8x256xf32>
    %344 = arith.mulf %343, %339 : vector<8x256xf32>
    %345 = arith.mulf %344, %339 : vector<8x256xf32>
    %346 = arith.addf %339, %345 : vector<8x256xf32>
    %cst_133 = arith.constant 0.797884583 : f32
    %347 = vector.broadcast %cst_133 : f32 to vector<8x256xf32>
    %348 = arith.mulf %347, %346 : vector<8x256xf32>
    %349 = math.tanh %348 : vector<8x256xf32>
    %cst_134 = arith.constant 1.000000e+00 : f32
    %350 = vector.broadcast %cst_134 : f32 to vector<8x256xf32>
    %351 = arith.addf %350, %349 : vector<8x256xf32>
    %352 = arith.mulf %341, %351 : vector<8x256xf32>
    %353 = arith.truncf %352 : vector<8x256xf32> to vector<8x256xbf16>
    %c1_135 = arith.constant 1 : index
    %c0_136 = arith.constant 0 : index
    %c0_137 = arith.constant 0 : index
    %354 = vector.load %arg11[%c1_135, %c0_136, %c0_137] : memref<2x256x128xbf16, #tpu.memory_space<vmem>>, vector<1x256x128xbf16>
    %355 = vector.shape_cast %354 : vector<1x256x128xbf16> to vector<256x128xbf16>
    %cst_138 = arith.constant dense<0.000000e+00> : vector<8x128xf32>
    %356 = tpu.matmul %353, %355, %cst_138 {dimension_numbers = #tpu.dot_dimension_numbers<[1], [0], [0], [1], [0, 0, 1, 1], [], []>} : vector<8x256xbf16>, vector<256x128xbf16>, vector<8x128xf32> -> vector<8x128xf32>
    %c1_139 = arith.constant 1 : index
    %c0_140 = arith.constant 0 : index
    %c0_141 = arith.constant 0 : index
    %357 = vector.load %arg12[%c1_139, %c0_140, %c0_141] : memref<2x1x128xf32, #tpu.memory_space<vmem>>, vector<1x1x128xf32>
    %358 = vector.shape_cast %357 : vector<1x1x128xf32> to vector<1x128xf32>
    %359 = vector.broadcast %358 : vector<1x128xf32> to vector<8x128xf32>
    %360 = arith.addf %356, %359 : vector<8x128xf32>
    %361 = arith.addf %305, %360 : vector<8x128xf32>
    %c0_142 = arith.constant 0 : index
    %c0_143 = arith.constant 0 : index
    %c0_144 = arith.constant 0 : index
    %362 = vector.load %arg13[%c0_142, %c0_143, %c0_144] : memref<1x8x128xf32, #tpu.memory_space<vmem>>, vector<1x8x128xf32>
    %363 = vector.shape_cast %362 : vector<1x8x128xf32> to vector<8x128xf32>
    %364 = vector.shape_cast %361 : vector<8x128xf32> to vector<1x8x128xf32>
    tpu.vector_store %arg13[%c0_142, %c0_143, %c0_144], %364 {strides = array<i32>} : memref<1x8x128xf32, #tpu.memory_space<vmem>>, vector<1x8x128xf32>,
    return
  }
  func.func @transform_0(%arg0: i32) -> (i32, i32, i32) {
    %c0_i32 = arith.constant 0 : i32
    %c0_i32_0 = arith.constant 0 : i32
    %c0_i32_1 = arith.constant 0 : i32
    return %arg0, %c0_i32, %c0_i32_0 : i32, i32, i32
  }
  func.func @transform_1(%arg0: i32) -> (i32, i32, i32) {
    %c0_i32 = arith.constant 0 : i32
    %c0_i32_0 = arith.constant 0 : i32
    %c0_i32_1 = arith.constant 0 : i32
    %c0_i32_2 = arith.constant 0 : i32
    return %c0_i32, %c0_i32_0, %c0_i32_1 : i32, i32, i32
  }
  func.func @transform_2(%arg0: i32) -> (i32, i32, i32) {
    %c0_i32 = arith.constant 0 : i32
    %c0_i32_0 = arith.constant 0 : i32
    %c0_i32_1 = arith.constant 0 : i32
    %c0_i32_2 = arith.constant 0 : i32
    return %c0_i32, %c0_i32_0, %c0_i32_1 : i32, i32, i32
  }
  func.func @transform_3(%arg0: i32) -> (i32, i32, i32) {
    %c0_i32 = arith.constant 0 : i32
    %c0_i32_0 = arith.constant 0 : i32
    %c0_i32_1 = arith.constant 0 : i32
    %c0_i32_2 = arith.constant 0 : i32
    return %c0_i32, %c0_i32_0, %c0_i32_1 : i32, i32, i32
  }
  func.func @transform_4(%arg0: i32) -> (i32, i32, i32) {
    %c0_i32 = arith.constant 0 : i32
    %c0_i32_0 = arith.constant 0 : i32
    %c0_i32_1 = arith.constant 0 : i32
    %c0_i32_2 = arith.constant 0 : i32
    return %c0_i32, %c0_i32_0, %c0_i32_1 : i32, i32, i32
  }
  func.func @transform_5(%arg0: i32) -> (i32, i32, i32) {
    %c0_i32 = arith.constant 0 : i32
    %c0_i32_0 = arith.constant 0 : i32
    %c0_i32_1 = arith.constant 0 : i32
    %c0_i32_2 = arith.constant 0 : i32
    return %c0_i32, %c0_i32_0, %c0_i32_1 : i32, i32, i32
  }
  func.func @transform_6(%arg0: i32) -> (i32, i32, i32) {
    %c0_i32 = arith.constant 0 : i32
    %c0_i32_0 = arith.constant 0 : i32
    %c0_i32_1 = arith.constant 0 : i32
    %c0_i32_2 = arith.constant 0 : i32
    return %c0_i32, %c0_i32_0, %c0_i32_1 : i32, i32, i32
  }
  func.func @transform_7(%arg0: i32) -> (i32, i32, i32) {
    %c0_i32 = arith.constant 0 : i32
    %c0_i32_0 = arith.constant 0 : i32
    %c0_i32_1 = arith.constant 0 : i32
    %c0_i32_2 = arith.constant 0 : i32
    return %c0_i32, %c0_i32_0, %c0_i32_1 : i32, i32, i32
  }
  func.func @transform_8(%arg0: i32) -> (i32, i32, i32) {
    %c0_i32 = arith.constant 0 : i32
    %c0_i32_0 = arith.constant 0 : i32
    %c0_i32_1 = arith.constant 0 : i32
    %c0_i32_2 = arith.constant 0 : i32
    return %c0_i32, %c0_i32_0, %c0_i32_1 : i32, i32, i32
  }
  func.func @transform_9(%arg0: i32) -> (i32, i32, i32) {
    %c0_i32 = arith.constant 0 : i32
    %c0_i32_0 = arith.constant 0 : i32
    %c0_i32_1 = arith.constant 0 : i32
    %c0_i32_2 = arith.constant 0 : i32
    return %c0_i32, %c0_i32_0, %c0_i32_1 : i32, i32, i32
  }
  func.func @transform_10(%arg0: i32) -> (i32, i32, i32) {
    %c0_i32 = arith.constant 0 : i32
    %c0_i32_0 = arith.constant 0 : i32
    %c0_i32_1 = arith.constant 0 : i32
    %c0_i32_2 = arith.constant 0 : i32
    return %c0_i32, %c0_i32_0, %c0_i32_1 : i32, i32, i32
  }
  func.func @transform_11(%arg0: i32) -> (i32, i32, i32) {
    %c0_i32 = arith.constant 0 : i32
    %c0_i32_0 = arith.constant 0 : i32
    %c0_i32_1 = arith.constant 0 : i32
    %c0_i32_2 = arith.constant 0 : i32
    return %c0_i32, %c0_i32_0, %c0_i32_1 : i32, i32, i32
  }
  func.func @transform_12(%arg0: i32) -> (i32, i32, i32) {
    %c0_i32 = arith.constant 0 : i32
    %c0_i32_0 = arith.constant 0 : i32
    %c0_i32_1 = arith.constant 0 : i32
    return %arg0, %c0_i32, %c0_i32_0 : i32, i32, i32
  }
}

</mosaic_0001>

<llo_original>
// kernel: transformer_forward.1
$region0: #{transformer_forward.1}
  #allocation0 [shape = 'u32[]', space=smem, size = 0x4, offset = 0x4, fixed_abs, tag = 'smem constant byte address 0x4 - core index']
  #allocation1 [shape = 'u32[144,128]{1,0:T(1,128)}', space=vmem, size = 0x12000, scoped, tag = 'internal scratch']
  %s0 = inlined_call_operand.hbm [shape: f32[2,8,128], index: 0, kind: input, shape index: {}]
  %s1 = inlined_call_operand.vmem [shape: f32[2,1,128], index: 1, kind: input, shape index: {}]
  %s2 = inlined_call_operand.vmem [shape: f32[2,1,128], index: 2, kind: input, shape index: {}]
  %s3 = inlined_call_operand.hbm [shape: bf16[2,128,384], index: 3, kind: input, shape index: {}]
  %s4 = inlined_call_operand.hbm [shape: bf16[2,128,128], index: 4, kind: input, shape index: {}]
  %s5 = inlined_call_operand.vmem [shape: f32[2,1,128], index: 5, kind: input, shape index: {}]
  %s6 = inlined_call_operand.vmem [shape: f32[2,1,128], index: 6, kind: input, shape index: {}]
  %s7 = inlined_call_operand.vmem [shape: f32[2,1,128], index: 7, kind: input, shape index: {}]
  %s8 = inlined_call_operand.hbm [shape: bf16[2,128,256], index: 8, kind: input, shape index: {}]
  %s9 = inlined_call_operand.hbm [shape: f32[2,1,256], index: 9, kind: input, shape index: {}]
  %s10 = inlined_call_operand.hbm [shape: bf16[2,256,128], index: 10, kind: input, shape index: {}]
  %s11 = inlined_call_operand.hbm [shape: f32[2,1,128], index: 11, kind: input, shape index: {}]
  %s12 = inlined_call_operand.hbm [shape: f32[2,8,128], index: 12, kind: output, shape index: {}]
  %s13 = sld [smem:[#allocation0]]
  $region109: #{transformer_forward.1} parent=0
    _
  %s15 = ssub.s32 1, %s13
  %s16 = scalar_select 0, %s15, %s13
  $region1: #{transformer_forward.1} parent=0
    #allocation2 [shape = 'u8[8192]{0}', space=vmem, size = 0x2000, scoped, tag = 'input window, operand 0']
    #allocation3 [shape = 's32[2]{0}', space=sflag, size = 0x8, scoped, tag = 'scoped memory for transformer_forward.1']
    #allocation4 [shape = 's32[2]{0}', space=sflag, size = 0x8, scoped, tag = 'scoped memory for transformer_forward.1']
    #allocation5 [shape = 'u8[196608]{0}', space=vmem, size = 0x30000, scoped, tag = 'input window, operand 3, single buffered']
    #allocation6 [shape = 's32[1]{0}', space=sflag, size = 0x4, scoped, tag = 'scoped memory for transformer_forward.1']
    #allocation7 [shape = 'u8[65536]{0}', space=vmem, size = 0x10000, scoped, tag = 'input window, operand 4, single buffered']
    #allocation8 [shape = 'u8[131072]{0}', space=vmem, size = 0x20000, scoped, tag = 'input window, operand 8, single buffered']
    #allocation9 [shape = 's32[1]{0}', space=sflag, size = 0x4, scoped, tag = 'scoped memory for transformer_forward.1']
    #allocation10 [shape = 'u8[2048]{0}', space=vmem, size = 0x800, scoped, tag = 'input window, operand 9, single buffered']
    #allocation11 [shape = 'u8[131072]{0}', space=vmem, size = 0x20000, scoped, tag = 'input window, operand 10, single buffered']
    #allocation12 [shape = 's32[1]{0}', space=sflag, size = 0x4, scoped, tag = 'scoped memory for transformer_forward.1']
    #allocation13 [shape = 'u8[1024]{0}', space=vmem, size = 0x400, scoped, tag = 'input window, operand 11, single buffered']
    #allocation14 [shape = 'u8[8192]{0}', space=vmem, size = 0x2000, scoped, tag = 'output window, operand 0']
    %17 = vsyncpa [#allocation3], 0
    %s18 = scalar_lea.sflag [#allocation3], 1
    %19 = vsyncpa %s18, 0
    %20 = vsyncpa [#allocation6], 0
    %21 = vsyncpa [#allocation9], 0
    %22 = vsyncpa [#allocation12], 0
    %23 = vsyncpa [#allocation4], 0
    %s24 = scalar_lea.sflag [#allocation4], 1
    %25 = vsyncpa %s24, 0
    loop: start=0, step=1, limit=4
    $region2: #{transformer_forward.1} parent=1 // loop_pre_header
      _
    $region3: #{transformer_forward.1} parent=1 // loop_header
      %s27 = sphi 0, %s31
      %p28 = scmp.ge.s32.totalorder %s27, 4
      %s37 = sphi 0, %s39
      %s40 = sphi 0, %s37
      %s41 = sphi 0, %s40
      %s57 = sphi 0, %s41
      %s61 = sphi 0, %s61
      %s63 = sphi 0, %s61
      %s64 = sphi 0, %s63
      %s78 = sphi 0, %s64
      %s82 = sphi 0, %s82
      %s84 = sphi 0, %s82
      %s85 = sphi 0, %s84
      %s99 = sphi 0, %s85
      %s103 = sphi 0, %s103
      %s105 = sphi 0, %s103
      %s106 = sphi 0, %s105
      %s120 = sphi 0, %s106
      %s124 = sphi 0, %s124
      %s126 = sphi 0, %s124
      %s127 = sphi 0, %s126
      %s141 = sphi 0, %s127
      %s145 = sphi 0, %s145
      %s147 = sphi 0, %s145
      %s148 = sphi 0, %s147
      %s162 = sphi 0, %s148
      %s166 = sphi 0, %s166
      %s168 = sphi 0, %s166
      %s169 = sphi 0, %s168
      %s183 = sphi 0, %s169
      %s187 = sphi 0, %s187
      %s189 = sphi 0, %s187
      %s190 = sphi 0, %s189
      %s204 = sphi 0, %s190
      %s208 = sphi 0, %s208
      %s210 = sphi 0, %s208
      %s211 = sphi 0, %s210
      %s225 = sphi 0, %s211
      %s229 = sphi 0, %s229
      %s231 = sphi 0, %s229
      %s232 = sphi 0, %s231
      %s246 = sphi 0, %s232
      %s250 = sphi 0, %s250
      %s252 = sphi 0, %s250
      %s253 = sphi 0, %s252
      %s267 = sphi 0, %s253
      %s271 = sphi 0, %s271
      %s273 = sphi 0, %s271
      %s274 = sphi 0, %s273
      %s288 = sphi 0, %s274
      %s294 = sphi 0, %s296
      %s297 = sphi 0, %s294
      %s298 = sphi 0, %s297
      %s314 = sphi 0, %s298
    $region4: #{transformer_forward.1} parent=1 // loop_header_branch
      %30 = sbr.rel (%p28) target = $region8
    $region5: #{transformer_forward.1} parent=1 // loop_body
      %s32 = ssub.s32 %s27, 1
      %s33 = ssub.s32 %s27, 2
      %s34 = sadd.s32 %s27, 1
      %s35 = ssub.s32 %s27, %s34
      %p36 = scmp.eq.s32.totalorder %s35, 0
      %s38 = sadd.s32 %s37, 1
      %s39 = scalar_select %p36, %s37, %s38
      %p42 = pneg %p36
      %p43 = scmp.eq.s32.totalorder %s27, 1
      %p44 = por %p42, %p43
      %p45 = scmp.ne.s32.totalorder %s37, %s40
      %p46 = scmp.eq.s32.totalorder %s27, 0
      %p47 = por %p45, %p46
      %p48 = scmp.ne.s32.totalorder %s37, %s40
      %p49 = scmp.eq.s32.totalorder %s32, 1
      %p50 = por %p48, %p49
      %p51 = scmp.ne.s32.totalorder %s40, %s41
      %p52 = scmp.eq.s32.totalorder %s32, 0
      %p53 = por %p51, %p52
      %p54 = scmp.ne.s32.totalorder %s40, %s41
      %p55 = scmp.eq.s32.totalorder %s33, 1
      %p56 = por %p54, %p55
      %p58 = scmp.ne.s32.totalorder %s41, %s57
      %p59 = scmp.eq.s32.totalorder %s33, 0
      %p60 = por %p58, %p59
      %s62 = sadd.s32 %s61, 1
      %p65 = scmp.eq.s32.totalorder %s27, 1
      %p66 = scmp.ne.s32.totalorder %s61, %s63
      %p67 = scmp.eq.s32.totalorder %s27, 0
      %p68 = por %p66, %p67
      %p69 = scmp.ne.s32.totalorder %s61, %s63
      %p70 = scmp.eq.s32.totalorder %s32, 1
      %p71 = por %p69, %p70
      %p72 = scmp.ne.s32.totalorder %s63, %s64
      %p73 = scmp.eq.s32.totalorder %s32, 0
      %p74 = por %p72, %p73
      %p75 = scmp.ne.s32.totalorder %s63, %s64
      %p76 = scmp.eq.s32.totalorder %s33, 1
      %p77 = por %p75, %p76
      %p79 = scmp.ne.s32.totalorder %s64, %s78
      %p80 = scmp.eq.s32.totalorder %s33, 0
      %p81 = por %p79, %p80
      %s83 = sadd.s32 %s82, 1
      %p86 = scmp.eq.s32.totalorder %s27, 1
      %p87 = scmp.ne.s32.totalorder %s82, %s84
      %p88 = scmp.eq.s32.totalorder %s27, 0
      %p89 = por %p87, %p88
      %p90 = scmp.ne.s32.totalorder %s82, %s84
      %p91 = scmp.eq.s32.totalorder %s32, 1
      %p92 = por %p90, %p91
      %p93 = scmp.ne.s32.totalorder %s84, %s85
      %p94 = scmp.eq.s32.totalorder %s32, 0
      %p95 = por %p93, %p94
      %p96 = scmp.ne.s32.totalorder %s84, %s85
      %p97 = scmp.eq.s32.totalorder %s33, 1
      %p98 = por %p96, %p97
      %p100 = scmp.ne.s32.totalorder %s85, %s99
      %p101 = scmp.eq.s32.totalorder %s33, 0
      %p102 = por %p100, %p101
      %s104 = sadd.s32 %s103, 1
      %p107 = scmp.eq.s32.totalorder %s27, 1
      %p108 = scmp.ne.s32.totalorder %s103, %s105
      %p109 = scmp.eq.s32.totalorder %s27, 0
      %p110 = por %p108, %p109
      %p111 = scmp.ne.s32.totalorder %s103, %s105
      %p112 = scmp.eq.s32.totalorder %s32, 1
      %p113 = por %p111, %p112
      %p114 = scmp.ne.s32.totalorder %s105, %s106
      %p115 = scmp.eq.s32.totalorder %s32, 0
      %p116 = por %p114, %p115
      %p117 = scmp.ne.s32.totalorder %s105, %s106
      %p118 = scmp.eq.s32.totalorder %s33, 1
      %p119 = por %p117, %p118
      %p121 = scmp.ne.s32.totalorder %s106, %s120
      %p122 = scmp.eq.s32.totalorder %s33, 0
      %p123 = por %p121, %p122
      %s125 = sadd.s32 %s124, 1
      %p128 = scmp.eq.s32.totalorder %s27, 1
      %p129 = scmp.ne.s32.totalorder %s124, %s126
      %p130 = scmp.eq.s32.totalorder %s27, 0
      %p131 = por %p129, %p130
      %p132 = scmp.ne.s32.totalorder %s124, %s126
      %p133 = scmp.eq.s32.totalorder %s32, 1
      %p134 = por %p132, %p133
      %p135 = scmp.ne.s32.totalorder %s126, %s127
      %p136 = scmp.eq.s32.totalorder %s32, 0
      %p137 = por %p135, %p136
      %p138 = scmp.ne.s32.totalorder %s126, %s127
      %p139 = scmp.eq.s32.totalorder %s33, 1
      %p140 = por %p138, %p139
      %p142 = scmp.ne.s32.totalorder %s127, %s141
      %p143 = scmp.eq.s32.totalorder %s33, 0
      %p144 = por %p142, %p143
      %s146 = sadd.s32 %s145, 1
      %p149 = scmp.eq.s32.totalorder %s27, 1
      %p150 = scmp.ne.s32.totalorder %s145, %s147
      %p151 = scmp.eq.s32.totalorder %s27, 0
      %p152 = por %p150, %p151
      %p153 = scmp.ne.s32.totalorder %s145, %s147
      %p154 = scmp.eq.s32.totalorder %s32, 1
      %p155 = por %p153, %p154
      %p156 = scmp.ne.s32.totalorder %s147, %s148
      %p157 = scmp.eq.s32.totalorder %s32, 0
      %p158 = por %p156, %p157
      %p159 = scmp.ne.s32.totalorder %s147, %s148
      %p160 = scmp.eq.s32.totalorder %s33, 1
      %p161 = por %p159, %p160
      %p163 = scmp.ne.s32.totalorder %s148, %s162
      %p164 = scmp.eq.s32.totalorder %s33, 0
      %p165 = por %p163, %p164
      %s167 = sadd.s32 %s166, 1
      %p170 = scmp.eq.s32.totalorder %s27, 1
      %p171 = scmp.ne.s32.totalorder %s166, %s168
      %p172 = scmp.eq.s32.totalorder %s27, 0
      %p173 = por %p171, %p172
      %p174 = scmp.ne.s32.totalorder %s166, %s168
      %p175 = scmp.eq.s32.totalorder %s32, 1
      %p176 = por %p174, %p175
      %p177 = scmp.ne.s32.totalorder %s168, %s169
      %p178 = scmp.eq.s32.totalorder %s32, 0
      %p179 = por %p177, %p178
      %p180 = scmp.ne.s32.totalorder %s168, %s169
      %p181 = scmp.eq.s32.totalorder %s33, 1
      %p182 = por %p180, %p181
      %p184 = scmp.ne.s32.totalorder %s169, %s183
      %p185 = scmp.eq.s32.totalorder %s33, 0
      %p186 = por %p184, %p185
      %s188 = sadd.s32 %s187, 1
      %p191 = scmp.eq.s32.totalorder %s27, 1
      %p192 = scmp.ne.s32.totalorder %s187, %s189
      %p193 = scmp.eq.s32.totalorder %s27, 0
      %p194 = por %p192, %p193
      %p195 = scmp.ne.s32.totalorder %s187, %s189
      %p196 = scmp.eq.s32.totalorder %s32, 1
      %p197 = por %p195, %p196
      %p198 = scmp.ne.s32.totalorder %s189, %s190
      %p199 = scmp.eq.s32.totalorder %s32, 0
      %p200 = por %p198, %p199
      %p201 = scmp.ne.s32.totalorder %s189, %s190
      %p202 = scmp.eq.s32.totalorder %s33, 1
      %p203 = por %p201, %p202
      %p205 = scmp.ne.s32.totalorder %s190, %s204
      %p206 = scmp.eq.s32.totalorder %s33, 0
      %p207 = por %p205, %p206
      %s209 = sadd.s32 %s208, 1
      %p212 = scmp.eq.s32.totalorder %s27, 1
      %p213 = scmp.ne.s32.totalorder %s208, %s210
      %p214 = scmp.eq.s32.totalorder %s27, 0
      %p215 = por %p213, %p214
      %p216 = scmp.ne.s32.totalorder %s208, %s210
      %p217 = scmp.eq.s32.totalorder %s32, 1
      %p218 = por %p216, %p217
      %p219 = scmp.ne.s32.totalorder %s210, %s211
      %p220 = scmp.eq.s32.totalorder %s32, 0
      %p221 = por %p219, %p220
      %p222 = scmp.ne.s32.totalorder %s210, %s211
      %p223 = scmp.eq.s32.totalorder %s33, 1
      %p224 = por %p222, %p223
      %p226 = scmp.ne.s32.totalorder %s211, %s225
      %p227 = scmp.eq.s32.totalorder %s33, 0
      %p228 = por %p226, %p227
      %s230 = sadd.s32 %s229, 1
      %p233 = scmp.eq.s32.totalorder %s27, 1
      %p234 = scmp.ne.s32.totalorder %s229, %s231
      %p235 = scmp.eq.s32.totalorder %s27, 0
      %p236 = por %p234, %p235
      %p237 = scmp.ne.s32.totalorder %s229, %s231
      %p238 = scmp.eq.s32.totalorder %s32, 1
      %p239 = por %p237, %p238
      %p240 = scmp.ne.s32.totalorder %s231, %s232
      %p241 = scmp.eq.s32.totalorder %s32, 0
      %p242 = por %p240, %p241
      %p243 = scmp.ne.s32.totalorder %s231, %s232
      %p244 = scmp.eq.s32.totalorder %s33, 1
      %p245 = por %p243, %p244
      %p247 = scmp.ne.s32.totalorder %s232, %s246
      %p248 = scmp.eq.s32.totalorder %s33, 0
      %p249 = por %p247, %p248
      %s251 = sadd.s32 %s250, 1
      %p254 = scmp.eq.s32.totalorder %s27, 1
      %p255 = scmp.ne.s32.totalorder %s250, %s252
      %p256 = scmp.eq.s32.totalorder %s27, 0
      %p257 = por %p255, %p256
      %p258 = scmp.ne.s32.totalorder %s250, %s252
      %p259 = scmp.eq.s32.totalorder %s32, 1
      %p260 = por %p258, %p259
      %p261 = scmp.ne.s32.totalorder %s252, %s253
      %p262 = scmp.eq.s32.totalorder %s32, 0
      %p263 = por %p261, %p262
      %p264 = scmp.ne.s32.totalorder %s252, %s253
      %p265 = scmp.eq.s32.totalorder %s33, 1
      %p266 = por %p264, %p265
      %p268 = scmp.ne.s32.totalorder %s253, %s267
      %p269 = scmp.eq.s32.totalorder %s33, 0
      %p270 = por %p268, %p269
      %s272 = sadd.s32 %s271, 1
      %p275 = scmp.eq.s32.totalorder %s27, 1
      %p276 = scmp.ne.s32.totalorder %s271, %s273
      %p277 = scmp.eq.s32.totalorder %s27, 0
      %p278 = por %p276, %p277
      %p279 = scmp.ne.s32.totalorder %s271, %s273
      %p280 = scmp.eq.s32.totalorder %s32, 1
      %p281 = por %p279, %p280
      %p282 = scmp.ne.s32.totalorder %s273, %s274
      %p283 = scmp.eq.s32.totalorder %s32, 0
      %p284 = por %p282, %p283
      %p285 = scmp.ne.s32.totalorder %s273, %s274
      %p286 = scmp.eq.s32.totalorder %s33, 1
      %p287 = por %p285, %p286
      %p289 = scmp.ne.s32.totalorder %s274, %s288
      %p290 = scmp.eq.s32.totalorder %s33, 0
      %p291 = por %p289, %p290
      %s292 = ssub.s32 %s27, %s34
      %p293 = scmp.eq.s32.totalorder %s292, 0
      %s295 = sadd.s32 %s294, 1
      %s296 = scalar_select %p293, %s294, %s295
      %p299 = pneg %p293
      %p300 = scmp.eq.s32.totalorder %s27, 1
      %p301 = por %p299, %p300
      %p302 = scmp.ne.s32.totalorder %s294, %s297
      %p303 = scmp.eq.s32.totalorder %s27, 0
      %p304 = por %p302, %p303
      %p305 = scmp.ne.s32.totalorder %s294, %s297
      %p306 = scmp.eq.s32.totalorder %s32, 1
      %p307 = por %p305, %p306
      %p308 = scmp.ne.s32.totalorder %s297, %s298
      %p309 = scmp.eq.s32.totalorder %s32, 0
      %p310 = por %p308, %p309
      %p311 = scmp.ne.s32.totalorder %s297, %s298
      %p312 = scmp.eq.s32.totalorder %s33, 1
      %p313 = por %p311, %p312
      %p315 = scmp.ne.s32.totalorder %s298, %s314
      %p316 = scmp.eq.s32.totalorder %s33, 0
      %p317 = por %p315, %p316
      %p318 = scmp.le.s32.totalorder 1, %s27
      %p319 = scmp.lt.s32.totalorder %s27, 3
      %p320 = pnand %p318, %p319
      %p321 = pneg %p320
      // Predicated region
      $region9: #{transformer_forward.1} parent=5 // pred_check
        _
      $region10: #{transformer_forward.1} parent=5 // pred_check_branch
        %323 = sbr.rel (%p320) target = $region12
      $region11: #{transformer_forward.1} parent=5 // pred_region
        %s324 = ssub.s32 %s27, 1
        // Predicated region
        $region13: #{transformer_forward.1} parent=11 // pred_check
          %p325 = pneg %p74
        $region14: #{transformer_forward.1} parent=11 // pred_check_branch
          %327 = sbr.rel (%p325) target = $region16
        $region15: #{transformer_forward.1} parent=11 // pred_region
          _
        $region16: #{transformer_forward.1} parent=11 // pred_fallthru
          _
        // Predicated region
        $region17: #{transformer_forward.1} parent=11 // pred_check
          %p328 = pneg %p95
        $region18: #{transformer_forward.1} parent=11 // pred_check_branch
          %330 = sbr.rel (%p328) target = $region20
        $region19: #{transformer_forward.1} parent=11 // pred_region
          _
        $region20: #{transformer_forward.1} parent=11 // pred_fallthru
          _
        // Predicated region
        $region21: #{transformer_forward.1} parent=11 // pred_check
          %p331 = pneg %p116
        $region22: #{transformer_forward.1} parent=11 // pred_check_branch
          %333 = sbr.rel (%p331) target = $region24
        $region23: #{transformer_forward.1} parent=11 // pred_region
          %s335 = ssub.s32 6144, 6144
          %336 = vsyncadd [#allocation6], %s335
          %s337 = sshll.u32 [#allocation5], 4
          %s338 = int_to_ptr.vmem [resolvable:$true] %s337
          %343 = dma.hbm_to_vmem [thread:$0]  %s3, 6144, %s338, [#allocation6], 192, 192, 12
        $region24: #{transformer_forward.1} parent=11 // pred_fallthru
          _
        // Predicated region
        $region25: #{transformer_forward.1} parent=11 // pred_check
          %p344 = pneg %p137
        $region26: #{transformer_forward.1} parent=11 // pred_check_branch
          %346 = sbr.rel (%p344) target = $region28
        $region27: #{transformer_forward.1} parent=11 // pred_region
          %s348 = ssub.s32 2048, 2048
          %349 = vsyncadd [#allocation6], %s348
          %s350 = sshll.u32 [#allocation7], 4
          %s351 = int_to_ptr.vmem [resolvable:$true] %s350
          %356 = dma.hbm_to_vmem [thread:$0]  %s4, 2048, %s351, [#allocation6], 64, 64, 4
        $region28: #{transformer_forward.1} parent=11 // pred_fallthru
          _
        // Predicated region
        $region29: #{transformer_forward.1} parent=11 // pred_check
          %p357 = pneg %p158
        $region30: #{transformer_forward.1} parent=11 // pred_check_branch
          %359 = sbr.rel (%p357) target = $region32
        $region31: #{transformer_forward.1} parent=11 // pred_region
          _
        $region32: #{transformer_forward.1} parent=11 // pred_fallthru
          _
        // Predicated region
        $region33: #{transformer_forward.1} parent=11 // pred_check
          %p360 = pneg %p179
        $region34: #{transformer_forward.1} parent=11 // pred_check_branch
          %362 = sbr.rel (%p360) target = $region36
        $region35: #{transformer_forward.1} parent=11 // pred_region
          _
        $region36: #{transformer_forward.1} parent=11 // pred_fallthru
          _
        // Predicated region
        $region37: #{transformer_forward.1} parent=11 // pred_check
          %p363 = pneg %p200
        $region38: #{transformer_forward.1} parent=11 // pred_check_branch
          %365 = sbr.rel (%p363) target = $region40
        $region39: #{transformer_forward.1} parent=11 // pred_region
          _
        $region40: #{transformer_forward.1} parent=11 // pred_fallthru
          _
        // Predicated region
        $region41: #{transformer_forward.1} parent=11 // pred_check
          %p366 = pneg %p221
        $region42: #{transformer_forward.1} parent=11 // pred_check_branch
          %368 = sbr.rel (%p366) target = $region44
        $region43: #{transformer_forward.1} parent=11 // pred_region
          %s370 = ssub.s32 4096, 4096
          %371 = vsyncadd [#allocation9], %s370
          %s372 = sshll.u32 [#allocation8], 4
          %s373 = int_to_ptr.vmem [resolvable:$true] %s372
          %378 = dma.hbm_to_vmem [thread:$0]  %s8, 4096, %s373, [#allocation9], 128, 128, 8
        $region44: #{transformer_forward.1} parent=11 // pred_fallthru
          _
        // Predicated region
        $region45: #{transformer_forward.1} parent=11 // pred_check
          %p379 = pneg %p242
        $region46: #{transformer_forward.1} parent=11 // pred_check_branch
          %381 = sbr.rel (%p379) target = $region48
        $region47: #{transformer_forward.1} parent=11 // pred_region
          %s383 = ssub.s32 64, 64
          %384 = vsyncadd [#allocation9], %s383
          %s385 = sshll.u32 [#allocation10], 4
          %s386 = int_to_ptr.vmem [resolvable:$true] %s385
          %391 = dma.hbm_to_vmem [thread:$0]  %s9, 64, %s386, [#allocation9], 32, 32, 2
        $region48: #{transformer_forward.1} parent=11 // pred_fallthru
          _
        // Predicated region
        $region49: #{transformer_forward.1} parent=11 // pred_check
          %p392 = pneg %p263
        $region50: #{transformer_forward.1} parent=11 // pred_check_branch
          %394 = sbr.rel (%p392) target = $region52
        $region51: #{transformer_forward.1} parent=11 // pred_region
          %s396 = ssub.s32 4096, 4096
          %397 = vsyncadd [#allocation12], %s396
          %s398 = sshll.u32 [#allocation11], 4
          %s399 = int_to_ptr.vmem [resolvable:$true] %s398
          %404 = dma.hbm_to_vmem [thread:$0]  %s10, 4096, %s399, [#allocation12], 64, 64, 4
        $region52: #{transformer_forward.1} parent=11 // pred_fallthru
          _
        // Predicated region
        $region53: #{transformer_forward.1} parent=11 // pred_check
          %p405 = pneg %p284
        $region54: #{transformer_forward.1} parent=11 // pred_check_branch
          %407 = sbr.rel (%p405) target = $region56
        $region55: #{transformer_forward.1} parent=11 // pred_region
          %s409 = ssub.s32 32, 32
          %410 = vsyncadd [#allocation12], %s409
          %s411 = sshll.u32 [#allocation13], 4
          %s412 = int_to_ptr.vmem [resolvable:$true] %s411
          %417 = dma.hbm_to_vmem [thread:$0]  %s11, 32, %s412, [#allocation12], 16, 16, 1
        $region56: #{transformer_forward.1} parent=11 // pred_fallthru
          _
      $region12: #{transformer_forward.1} parent=5 // pred_fallthru
        _
      %p418 = scmp.lt.s32.totalorder %s27, 2
      // Predicated region
      $region57: #{transformer_forward.1} parent=5 // pred_check
        %p419 = pneg %p418
      $region58: #{transformer_forward.1} parent=5 // pred_check_branch
        %421 = sbr.rel (%p419) target = $region60
      $region59: #{transformer_forward.1} parent=5 // pred_region
        // Predicated region
        $region61: #{transformer_forward.1} parent=59 // pred_check
          %p422 = pneg %p47
        $region62: #{transformer_forward.1} parent=59 // pred_check_branch
          %424 = sbr.rel (%p422) target = $region64
        $region63: #{transformer_forward.1} parent=59 // pred_region
          %s425 = sand.u32 %s37, 1
          %s426 = scalar_lea.sflag [#allocation3], %s425
          %s427 = sand.u32 %s37, 1
          %s428 = smul.addr %s427, 8
          %s429 = scalar_lea.vmem [#allocation2], %s428
          %s431 = ssub.s32 128, 128
          %432 = vsyncadd %s426, %s431
          %s433 = smul.addr %s27, 128
          %s434 = scalar_lea.hbm %s0, %s433
          %s436 = sshll.u32 %s429, 4
          %s437 = int_to_ptr.vmem [resolvable:$true] %s436
          %439 = dma.hbm_to_vmem [thread:$0]  %s434, 128, %s437, %s426
        $region64: #{transformer_forward.1} parent=59 // pred_fallthru
          _
      $region60: #{transformer_forward.1} parent=5 // pred_fallthru
        _
      %p440 = scmp.le.s32.totalorder 1, %s27
      %p441 = scmp.lt.s32.totalorder %s27, 3
      %p442 = pnand %p440, %p441
      %p443 = pneg %p442
      // Predicated region
      $region65: #{transformer_forward.1} parent=5 // pred_check
        _
      $region66: #{transformer_forward.1} parent=5 // pred_check_branch
        %445 = sbr.rel (%p442) target = $region68
      $region67: #{transformer_forward.1} parent=5 // pred_region
        %s446 = ssub.s32 %s27, 1
        %s447 = sand.u32 %s40, 1
        %s448 = scalar_lea.sflag [#allocation3], %s447
        %s449 = sand.u32 %s40, 1
        %s450 = smul.addr %s449, 8
        %s451 = scalar_lea.vmem [#allocation2], %s450
        // Predicated region
        $region69: #{transformer_forward.1} parent=67 // pred_check
          %p452 = pneg %p53
        $region70: #{transformer_forward.1} parent=67 // pred_check_branch
          %454 = sbr.rel (%p452) target = $region72
        $region71: #{transformer_forward.1} parent=67 // pred_region
          %455 = dma.done %s448, 128
        $region72: #{transformer_forward.1} parent=67 // pred_fallthru
          _
        // Predicated region
        $region73: #{transformer_forward.1} parent=67 // pred_check
          %p456 = pneg %p116
        $region74: #{transformer_forward.1} parent=67 // pred_check_branch
          %458 = sbr.rel (%p456) target = $region76
        $region75: #{transformer_forward.1} parent=67 // pred_region
          %459 = dma.done [#allocation6], 6144
        $region76: #{transformer_forward.1} parent=67 // pred_fallthru
          _
        // Predicated region
        $region77: #{transformer_forward.1} parent=67 // pred_check
          %p460 = pneg %p137
        $region78: #{transformer_forward.1} parent=67 // pred_check_branch
          %462 = sbr.rel (%p460) target = $region80
        $region79: #{transformer_forward.1} parent=67 // pred_region
          %463 = dma.done [#allocation6], 2048
        $region80: #{transformer_forward.1} parent=67 // pred_fallthru
          _
        // Predicated region
        $region81: #{transformer_forward.1} parent=67 // pred_check
          %p464 = pneg %p221
        $region82: #{transformer_forward.1} parent=67 // pred_check_branch
          %466 = sbr.rel (%p464) target = $region84
        $region83: #{transformer_forward.1} parent=67 // pred_region
          %467 = dma.done [#allocation9], 4096
        $region84: #{transformer_forward.1} parent=67 // pred_fallthru
          _
        // Predicated region
        $region85: #{transformer_forward.1} parent=67 // pred_check
          %p468 = pneg %p242
        $region86: #{transformer_forward.1} parent=67 // pred_check_branch
          %470 = sbr.rel (%p468) target = $region88
        $region87: #{transformer_forward.1} parent=67 // pred_region
          %471 = dma.done [#allocation9], 64
        $region88: #{transformer_forward.1} parent=67 // pred_fallthru
          _
        // Predicated region
        $region89: #{transformer_forward.1} parent=67 // pred_check
          %p472 = pneg %p263
        $region90: #{transformer_forward.1} parent=67 // pred_check_branch
          %474 = sbr.rel (%p472) target = $region92
        $region91: #{transformer_forward.1} parent=67 // pred_region
          %475 = dma.done [#allocation12], 4096
        $region92: #{transformer_forward.1} parent=67 // pred_fallthru
          _
        // Predicated region
        $region93: #{transformer_forward.1} parent=67 // pred_check
          %p476 = pneg %p284
        $region94: #{transformer_forward.1} parent=67 // pred_check_branch
          %478 = sbr.rel (%p476) target = $region96
        $region95: #{transformer_forward.1} parent=67 // pred_region
          %479 = dma.done [#allocation12], 32
        $region96: #{transformer_forward.1} parent=67 // pred_fallthru
          _
        %s480 = sand.u32 %s40, 1
        %s481 = scalar_lea.sflag [#allocation3], %s480
        %s482 = sand.u32 %s40, 1
        %s483 = smul.addr %s482, 8
        %s484 = scalar_lea.vmem [#allocation2], %s483
        %p485 = pneg %p53
        %p486 = pneg %p50
        %p487 = pneg %p74
        %p488 = pneg %p71
        %p489 = pneg %p95
        %p490 = pneg %p92
        %p491 = pneg %p116
        %p492 = pneg %p113
        %p493 = pneg %p137
        %p494 = pneg %p134
        %p495 = pneg %p158
        %p496 = pneg %p155
        %p497 = pneg %p179
        %p498 = pneg %p176
        %p499 = pneg %p200
        %p500 = pneg %p197
        %p501 = pneg %p221
        %p502 = pneg %p218
        %p503 = pneg %p242
        %p504 = pneg %p239
        %p505 = pneg %p263
        %p506 = pneg %p260
        %p507 = pneg %p284
        %p508 = pneg %p281
        %p509 = pneg %p310
        %p510 = pneg %p307
        %s511 = sand.u32 %s297, 1
        %s512 = scalar_lea.sflag [#allocation4], %s511
        %s513 = sand.u32 %s297, 1
        %s514 = smul.addr %s513, 8
        %s515 = scalar_lea.vmem [#allocation14], %s514
        %v517 = vld [vmem:[%s451] sm:$0xff]
        %v518 = vld [vmem:[%s1] sm:$0x1]
        %v519 = vld [vmem:[%s2] sm:$0x1]
        %520 = vadd.xlane.f32.xlu0 %v517
        %v521 = vpop.xlane.xlu0 %520
        %v522 = vrcp.pop 128.0
        %v523 = vmul.f32 %v521, %v522
        %v524 = vsub.f32 %v517, %v523
        %v525 = vmul.f32 %v524, %v524
        %526 = vadd.xlane.f32.xlu0 %v525
        %v527 = vpop.xlane.xlu0 %526
        %v528 = vmul.f32 %v527, %v522
        %v529 = vadd.f32 %v528, 1e-05
        %v530 = vrsqrt.pop %v529
        %v531 = vmul.f32 %v524, %v530
        %v533 = vlaneseq
        %v534 = vshrl.u32 %v533, 7
        %v535 = vsub.s32 0, %v534
        %v536 = vrot.slane %v518, %v535
        %v538 = vmul.f32 %v531, %v536
        %v540 = vlaneseq
        %v541 = vshrl.u32 %v540, 7
        %v542 = vsub.s32 0, %v541
        %v543 = vrot.slane %v519, %v542
        %v545 = vadd.f32 %v538, %v543
        %v546 = vpack.c.bf16 %v545, %v545
        %v547 = vld [vmem:[#allocation5] sm:$0xff]
        %v548 = vld [vmem:[#allocation5 + $0x8] sm:$0xf]
        %v549 = vld [vmem:[#allocation5 + $0xc] sm:$0xff]
        %v550 = vld [vmem:[#allocation5 + $0x14] sm:$0xf]
        %v551 = vld [vmem:[#allocation5 + $0x18] sm:$0xff]
        %v552 = vld [vmem:[#allocation5 + $0x20] sm:$0xf]
        %v553 = vld [vmem:[#allocation5 + $0x24] sm:$0xff]
        %v554 = vld [vmem:[#allocation5 + $0x2c] sm:$0xf]
        %v555 = vld [vmem:[#allocation5 + $0x30] sm:$0xff]
        %v556 = vld [vmem:[#allocation5 + $0x38] sm:$0xf]
        %v557 = vld [vmem:[#allocation5 + $0x3c] sm:$0xff]
        %v558 = vld [vmem:[#allocation5 + $0x44] sm:$0xf]
        %v559 = vld [vmem:[#allocation5 + $0x48] sm:$0xff]
        %v560 = vld [vmem:[#allocation5 + $0x50] sm:$0xf]
        %v561 = vld [vmem:[#allocation5 + $0x54] sm:$0xff]
        %v562 = vld [vmem:[#allocation5 + $0x5c] sm:$0xf]
        %v563 = vld [vmem:[#allocation5 + $0x60] sm:$0xff]
        %v564 = vld [vmem:[#allocation5 + $0x68] sm:$0xf]
        %v565 = vld [vmem:[#allocation5 + $0x6c] sm:$0xff]
        %v566 = vld [vmem:[#allocation5 + $0x74] sm:$0xf]
        %v567 = vld [vmem:[#allocation5 + $0x78] sm:$0xff]
        %v568 = vld [vmem:[#allocation5 + $0x80] sm:$0xf]
        %v569 = vld [vmem:[#allocation5 + $0x84] sm:$0xff]
        %v570 = vld [vmem:[#allocation5 + $0x8c] sm:$0xf]
        %v571 = vld [vmem:[#allocation5 + $0x90] sm:$0xff]
        %v572 = vld [vmem:[#allocation5 + $0x98] sm:$0xf]
        %v573 = vld [vmem:[#allocation5 + $0x9c] sm:$0xff]
        %v574 = vld [vmem:[#allocation5 + $0xa4] sm:$0xf]
        %v575 = vld [vmem:[#allocation5 + $0xa8] sm:$0xff]
        %v576 = vld [vmem:[#allocation5 + $0xb0] sm:$0xf]
        %v577 = vld [vmem:[#allocation5 + $0xb4] sm:$0xff]
        %v578 = vld [vmem:[#allocation5 + $0xbc] sm:$0xf]
        %v611 = vunpack.c.l.b16 %v547
        %v612 = vunpack.c.h.b16 %v547
        %v613 = vunpack.c.l.b16 %v548
        %v614 = vunpack.c.l.b16 %v549
        %v615 = vunpack.c.h.b16 %v549
        %v616 = vunpack.c.l.b16 %v550
        %v617 = vunpack.c.l.b16 %v551
        %v618 = vunpack.c.h.b16 %v551
        %v619 = vunpack.c.l.b16 %v552
        %v620 = vunpack.c.l.b16 %v553
        %v621 = vunpack.c.h.b16 %v553
        %v622 = vunpack.c.l.b16 %v554
        %v623 = vunpack.c.l.b16 %v555
        %v624 = vunpack.c.h.b16 %v555
        %v625 = vunpack.c.l.b16 %v556
        %v626 = vunpack.c.l.b16 %v557
        %v627 = vunpack.c.h.b16 %v557
        %v628 = vunpack.c.l.b16 %v558
        %v629 = vunpack.c.l.b16 %v559
        %v630 = vunpack.c.h.b16 %v559
        %v631 = vunpack.c.l.b16 %v560
        %v632 = vunpack.c.l.b16 %v561
        %v633 = vunpack.c.h.b16 %v561
        %v634 = vunpack.c.l.b16 %v562
        %v635 = vunpack.c.l.b16 %v563
        %v636 = vunpack.c.h.b16 %v563
        %v637 = vunpack.c.l.b16 %v564
        %v638 = vunpack.c.l.b16 %v565
        %v639 = vunpack.c.h.b16 %v565
        %v640 = vunpack.c.l.b16 %v566
        %v641 = vunpack.c.l.b16 %v567
        %v642 = vunpack.c.h.b16 %v567
        %v643 = vunpack.c.l.b16 %v568
        %v644 = vunpack.c.l.b16 %v569
        %v645 = vunpack.c.h.b16 %v569
        %v646 = vunpack.c.l.b16 %v570
        %v647 = vunpack.c.l.b16 %v571
        %v648 = vunpack.c.h.b16 %v571
        %v649 = vunpack.c.l.b16 %v572
        %v650 = vunpack.c.l.b16 %v573
        %v651 = vunpack.c.h.b16 %v573
        %v652 = vunpack.c.l.b16 %v574
        %v653 = vunpack.c.l.b16 %v575
        %v654 = vunpack.c.h.b16 %v575
        %v655 = vunpack.c.l.b16 %v576
        %v656 = vunpack.c.l.b16 %v577
        %v657 = vunpack.c.h.b16 %v577
        %v658 = vunpack.c.l.b16 %v578
        %v659 = vpack.c.b16 %v614, %v611
        %v660 = vpack.c.b16 %v615, %v612
        %v661 = vpack.c.b16 %v616, %v613
        %v662 = vpack.c.b16 %v620, %v617
        %v663 = vpack.c.b16 %v621, %v618
        %v664 = vpack.c.b16 %v622, %v619
        %v665 = vpack.c.b16 %v626, %v623
        %v666 = vpack.c.b16 %v627, %v624
        %v667 = vpack.c.b16 %v628, %v625
        %v668 = vpack.c.b16 %v632, %v629
        %v669 = vpack.c.b16 %v633, %v630
        %v670 = vpack.c.b16 %v634, %v631
        %v671 = vpack.c.b16 %v638, %v635
        %v672 = vpack.c.b16 %v639, %v636
        %v673 = vpack.c.b16 %v640, %v637
        %v674 = vpack.c.b16 %v644, %v641
        %v675 = vpack.c.b16 %v645, %v642
        %v676 = vpack.c.b16 %v646, %v643
        %v677 = vpack.c.b16 %v650, %v647
        %v678 = vpack.c.b16 %v651, %v648
        %v679 = vpack.c.b16 %v652, %v649
        %v680 = vpack.c.b16 %v656, %v653
        %v681 = vpack.c.b16 %v657, %v654
        %v682 = vpack.c.b16 %v658, %v655
        %707 = vmatprep.subr.bf16.mxu0 %v660
        %708 = vmatpush1.bf16.msra.mxu0 %v659
        %709 = vmatprep.subr.bf16.mxu0 %v663
        %710 = vmatpush1.bf16.msra.mxu0 %v662
        %711 = vmatprep.subr.bf16.mxu0 %v666
        %712 = vmatpush1.bf16.msra.mxu0 %v665
        %713 = vmatprep.subr.bf16.mxu0 %v669
        %714 = vmatpush1.bf16.msra.mxu0 %v668
        %715 = vmatprep.subr.bf16.mxu0 %v672
        %716 = vmatpush1.bf16.msra.mxu0 %v671
        %717 = vmatprep.subr.bf16.mxu0 %v675
        %718 = vmatpush1.bf16.msra.mxu0 %v674
        %719 = vmatprep.subr.bf16.mxu0 %v678
        %720 = vmatpush1.bf16.msra.mxu0 %v677
        %721 = vmatprep.subr.bf16.mxu0 %v681
        %722 = vmatpush1.bf16.msra.mxu0 %v680
        %723 = vmatprep.subr.bf16.mxu0 0
        %724 = vmatpush1.bf16.msra.mxu0 0
        %725 = vmatprep.subr.bf16.mxu0 0
        %726 = vmatpush1.bf16.msra.mxu0 0
        %727 = vmatprep.subr.bf16.mxu0 0
        %728 = vmatpush1.bf16.msra.mxu0 0
        %729 = vmatprep.subr.bf16.mxu0 0
        %730 = vmatpush1.bf16.msra.mxu0 0
        %731 = vmatprep.subr.bf16.mxu0 0
        %732 = vmatpush1.bf16.msra.mxu0 0
        %733 = vmatprep.subr.bf16.mxu0 0
        %734 = vmatpush1.bf16.msra.mxu0 0
        %735 = vmatprep.subr.bf16.mxu0 0
        %736 = vmatpush1.bf16.msra.mxu0 0
        %737 = vmatprep.subr.bf16.mxu0 0
        %738 = vmatpush1.bf16.msra.mxu0 0
        %739 = vmatprep.mubr.bf16.mxu0 0
        %740 = vmatmul.mubr.bf16.gmra.mrb[0].mxu0 %v546
        %v741 = vpop.f32.mrb[0].mxu0
        %v742 = vadd.f32 0.0, %v741
        %v743 = vpop.f32.mrb[0].mxu0
        %v744 = vadd.f32 0.0, %v743
        %v745 = vpop.f32.mrb[0].mxu0
        %v746 = vpop.f32.mrb[0].mxu0
        %747 = vdwg.mxu0
        %748 = vmatprep.subr.bf16.mxu0 0
        %749 = vmatpush1.bf16.msra.mxu0 %v661
        %750 = vmatprep.subr.bf16.mxu0 0
        %751 = vmatpush1.bf16.msra.mxu0 %v664
        %752 = vmatprep.subr.bf16.mxu0 0
        %753 = vmatpush1.bf16.msra.mxu0 %v667
        %754 = vmatprep.subr.bf16.mxu0 0
        %755 = vmatpush1.bf16.msra.mxu0 %v670
        %756 = vmatprep.subr.bf16.mxu0 0
        %757 = vmatpush1.bf16.msra.mxu0 %v673
        %758 = vmatprep.subr.bf16.mxu0 0
        %759 = vmatpush1.bf16.msra.mxu0 %v676
        %760 = vmatprep.subr.bf16.mxu0 0
        %761 = vmatpush1.bf16.msra.mxu0 %v679
        %762 = vmatprep.subr.bf16.mxu0 0
        %763 = vmatpush1.bf16.msra.mxu0 %v682
        %764 = vmatprep.subr.bf16.mxu0 0
        %765 = vmatpush1.bf16.msra.mxu0 0
        %766 = vmatprep.subr.bf16.mxu0 0
        %767 = vmatpush1.bf16.msra.mxu0 0
        %768 = vmatprep.subr.bf16.mxu0 0
        %769 = vmatpush1.bf16.msra.mxu0 0
        %770 = vmatprep.subr.bf16.mxu0 0
        %771 = vmatpush1.bf16.msra.mxu0 0
        %772 = vmatprep.subr.bf16.mxu0 0
        %773 = vmatpush1.bf16.msra.mxu0 0
        %774 = vmatprep.subr.bf16.mxu0 0
        %775 = vmatpush1.bf16.msra.mxu0 0
        %776 = vmatprep.subr.bf16.mxu0 0
        %777 = vmatpush1.bf16.msra.mxu0 0
        %778 = vmatprep.subr.bf16.mxu0 0
        %779 = vmatpush1.bf16.msra.mxu0 0
        %780 = vmatprep.mubr.bf16.mxu0 0
        %781 = vmatmul.mubr.bf16.gmra.mrb[0].mxu0 %v546
        %v782 = vpop.f32.mrb[0].mxu0
        %v783 = vadd.f32 0.0, %v782
        %v784 = vpop.f32.mrb[0].mxu0
        %v785 = vpop.f32.mrb[0].mxu0
        %v786 = vpop.f32.mrb[0].mxu0
        %787 = vdwg.mxu0
        %v788 = vpack.c.bf16 %v742, %v742
        %v789 = vpack.c.bf16 %v744, %v744
        %v790 = vpack.c.bf16 %v783, %v783
        %vm791 = vcmask 261120
        %v793 = vsel %vm791, %v788, 0
        %v796 = vsel %vm791, %v789, 0
        %798 = vmatprep.subr.bf16.mxu0 0
        %799 = vmatpush1.bf16.xpose.msra.mxu0 %v796
        %800 = vmatprep.subr.bf16.mxu0 0
        %801 = vmatpush1.bf16.xpose.msra.mxu0 0
        %802 = vmatprep.subr.bf16.mxu0 0
        %803 = vmatpush1.bf16.xpose.msra.mxu0 0
        %804 = vmatprep.subr.bf16.mxu0 0
        %805 = vmatpush1.bf16.xpose.msra.mxu0 0
        %806 = vmatprep.subr.bf16.mxu0 0
        %807 = vmatpush1.bf16.xpose.msra.mxu0 0
        %808 = vmatprep.subr.bf16.mxu0 0
        %809 = vmatpush1.bf16.xpose.msra.mxu0 0
        %810 = vmatprep.subr.bf16.mxu0 0
        %811 = vmatpush1.bf16.xpose.msra.mxu0 0
        %812 = vmatprep.subr.bf16.mxu0 0
        %813 = vmatpush1.bf16.xpose.msra.mxu0 0
        %814 = vmatprep.subr.bf16.mxu0 0
        %815 = vmatpush1.bf16.xpose.msra.mxu0 0
        %816 = vmatprep.subr.bf16.mxu0 0
        %817 = vmatpush1.bf16.xpose.msra.mxu0 0
        %818 = vmatprep.subr.bf16.mxu0 0
        %819 = vmatpush1.bf16.xpose.msra.mxu0 0
        %820 = vmatprep.subr.bf16.mxu0 0
        %821 = vmatpush1.bf16.xpose.msra.mxu0 0
        %822 = vmatprep.subr.bf16.mxu0 0
        %823 = vmatpush1.bf16.xpose.msra.mxu0 0
        %824 = vmatprep.subr.bf16.mxu0 0
        %825 = vmatpush1.bf16.xpose.msra.mxu0 0
        %826 = vmatprep.subr.bf16.mxu0 0
        %827 = vmatpush1.bf16.xpose.msra.mxu0 0
        %828 = vmatprep.subr.bf16.mxu0 0
        %829 = vmatpush1.bf16.xpose.msra.mxu0 0
        %830 = vmatprep.mubr.bf16.mxu0 0
        %831 = vmatmul.mubr.bf16.gmra.mrb[0].mxu0 %v793
        %v832 = vpop.f32.mrb[0].mxu0
        %v833 = vadd.f32 0.0, %v832
        %v834 = vpop.f32.mrb[0].mxu0
        %v835 = vpop.f32.mrb[0].mxu0
        %v836 = vpop.f32.mrb[0].mxu0
        %837 = vdwg.mxu0
        %v838 = vmul.f32 %v833, 0.088388346
        %vm839 = vcmask 64512
        %v840 = vsel %vm839, %v838, -inf
        %841 = vmax.xlane.f32.xlu0 %v840
        %v842 = vpop.xlane.xlu0 %841
        %v843 = vsub.f32 %v838, %v842
        %v844 = vmul.f32 %v843, 1.442695
        %v845 = vpow.pop %v844
        %v846 = vsel %vm839, %v845, 0.0
        %847 = vadd.xlane.f32.xlu0 %v846
        %v848 = vpop.xlane.xlu0 %847
        %v849 = vrcp.pop %v848
        %v850 = vmul.f32 %v845, %v849
        %v851 = vpack.c.bf16 %v850, %v850
        %v853 = vsel %vm839, %v851, 0
        %vm855 = vcmask 1043456
        %v857 = vsel %vm855, %v790, 0
        %859 = vmatprep.subr.bf16.mxu0 0
        %860 = vmatpush1.bf16.msra.mxu0 %v857
        %861 = vmatprep.subr.bf16.mxu0 0
        %862 = vmatpush1.bf16.msra.mxu0 0
        %863 = vmatprep.subr.bf16.mxu0 0
        %864 = vmatpush1.bf16.msra.mxu0 0
        %865 = vmatprep.subr.bf16.mxu0 0
        %866 = vmatpush1.bf16.msra.mxu0 0
        %867 = vmatprep.subr.bf16.mxu0 0
        %868 = vmatpush1.bf16.msra.mxu0 0
        %869 = vmatprep.subr.bf16.mxu0 0
        %870 = vmatpush1.bf16.msra.mxu0 0
        %871 = vmatprep.subr.bf16.mxu0 0
        %872 = vmatpush1.bf16.msra.mxu0 0
        %873 = vmatprep.subr.bf16.mxu0 0
        %874 = vmatpush1.bf16.msra.mxu0 0
        %875 = vmatprep.subr.bf16.mxu0 0
        %876 = vmatpush1.bf16.msra.mxu0 0
        %877 = vmatprep.subr.bf16.mxu0 0
        %878 = vmatpush1.bf16.msra.mxu0 0
        %879 = vmatprep.subr.bf16.mxu0 0
        %880 = vmatpush1.bf16.msra.mxu0 0
        %881 = vmatprep.subr.bf16.mxu0 0
        %882 = vmatpush1.bf16.msra.mxu0 0
        %883 = vmatprep.subr.bf16.mxu0 0
        %884 = vmatpush1.bf16.msra.mxu0 0
        %885 = vmatprep.subr.bf16.mxu0 0
        %886 = vmatpush1.bf16.msra.mxu0 0
        %887 = vmatprep.subr.bf16.mxu0 0
        %888 = vmatpush1.bf16.msra.mxu0 0
        %889 = vmatprep.subr.bf16.mxu0 0
        %890 = vmatpush1.bf16.msra.mxu0 0
        %891 = vmatprep.mubr.bf16.mxu0 0
        %892 = vmatmul.mubr.bf16.gmra.mrb[0].mxu0 %v853
        %v893 = vpop.f32.mrb[0].mxu0
        %v894 = vadd.f32 0.0, %v893
        %v895 = vpop.f32.mrb[0].mxu0
        %v896 = vpop.f32.mrb[0].mxu0
        %v897 = vpop.f32.mrb[0].mxu0
        %898 = vdwg.mxu0
        %900 = vrot.lane.b32.xlu0 %v788, 96
        %v901 = vpop.permute.xlu0 %900
        %903 = vrot.lane.b32.xlu0 %v789, 96
        %v904 = vpop.permute.xlu0 %903
        %v906 = vsel %vm791, %v901, 0
        %v909 = vsel %vm791, %v904, 0
        %911 = vmatprep.subr.bf16.mxu0 0
        %912 = vmatpush1.bf16.xpose.msra.mxu0 %v909
        %913 = vmatprep.subr.bf16.mxu0 0
        %914 = vmatpush1.bf16.xpose.msra.mxu0 0
        %915 = vmatprep.subr.bf16.mxu0 0
        %916 = vmatpush1.bf16.xpose.msra.mxu0 0
        %917 = vmatprep.subr.bf16.mxu0 0
        %918 = vmatpush1.bf16.xpose.msra.mxu0 0
        %919 = vmatprep.subr.bf16.mxu0 0
        %920 = vmatpush1.bf16.xpose.msra.mxu0 0
        %921 = vmatprep.subr.bf16.mxu0 0
        %922 = vmatpush1.bf16.xpose.msra.mxu0 0
        %923 = vmatprep.subr.bf16.mxu0 0
        %924 = vmatpush1.bf16.xpose.msra.mxu0 0
        %925 = vmatprep.subr.bf16.mxu0 0
        %926 = vmatpush1.bf16.xpose.msra.mxu0 0
        %927 = vmatprep.subr.bf16.mxu0 0
        %928 = vmatpush1.bf16.xpose.msra.mxu0 0
        %929 = vmatprep.subr.bf16.mxu0 0
        %930 = vmatpush1.bf16.xpose.msra.mxu0 0
        %931 = vmatprep.subr.bf16.mxu0 0
        %932 = vmatpush1.bf16.xpose.msra.mxu0 0
        %933 = vmatprep.subr.bf16.mxu0 0
        %934 = vmatpush1.bf16.xpose.msra.mxu0 0
        %935 = vmatprep.subr.bf16.mxu0 0
        %936 = vmatpush1.bf16.xpose.msra.mxu0 0
        %937 = vmatprep.subr.bf16.mxu0 0
        %938 = vmatpush1.bf16.xpose.msra.mxu0 0
        %939 = vmatprep.subr.bf16.mxu0 0
        %940 = vmatpush1.bf16.xpose.msra.mxu0 0
        %941 = vmatprep.subr.bf16.mxu0 0
        %942 = vmatpush1.bf16.xpose.msra.mxu0 0
        %943 = vmatprep.mubr.bf16.mxu0 0
        %944 = vmatmul.mubr.bf16.gmra.mrb[0].mxu0 %v906
        %v945 = vpop.f32.mrb[0].mxu0
        %v946 = vadd.f32 0.0, %v945
        %v947 = vpop.f32.mrb[0].mxu0
        %v948 = vpop.f32.mrb[0].mxu0
        %v949 = vpop.f32.mrb[0].mxu0
        %950 = vdwg.mxu0
        %v951 = vmul.f32 %v946, 0.088388346
        %v952 = vsel %vm839, %v951, -inf
        %953 = vmax.xlane.f32.xlu0 %v952
        %v954 = vpop.xlane.xlu0 %953
        %v955 = vsub.f32 %v951, %v954
        %v956 = vmul.f32 %v955, 1.442695
        %v957 = vpow.pop %v956
        %v958 = vsel %vm839, %v957, 0.0
        %959 = vadd.xlane.f32.xlu0 %v958
        %v960 = vpop.xlane.xlu0 %959
        %v961 = vrcp.pop %v960
        %v962 = vmul.f32 %v957, %v961
        %v963 = vpack.c.bf16 %v962, %v962
        %965 = vrot.lane.b32.xlu0 %v790, 96
        %v966 = vpop.permute.xlu0 %965
        %v968 = vsel %vm839, %v963, 0
        %v971 = vsel %vm855, %v966, 0
        %973 = vmatprep.subr.bf16.mxu0 0
        %974 = vmatpush1.bf16.msra.mxu0 %v971
        %975 = vmatprep.subr.bf16.mxu0 0
        %976 = vmatpush1.bf16.msra.mxu0 0
        %977 = vmatprep.subr.bf16.mxu0 0
        %978 = vmatpush1.bf16.msra.mxu0 0
        %979 = vmatprep.subr.bf16.mxu0 0
        %980 = vmatpush1.bf16.msra.mxu0 0
        %981 = vmatprep.subr.bf16.mxu0 0
        %982 = vmatpush1.bf16.msra.mxu0 0
        %983 = vmatprep.subr.bf16.mxu0 0
        %984 = vmatpush1.bf16.msra.mxu0 0
        %985 = vmatprep.subr.bf16.mxu0 0
        %986 = vmatpush1.bf16.msra.mxu0 0
        %987 = vmatprep.subr.bf16.mxu0 0
        %988 = vmatpush1.bf16.msra.mxu0 0
        %989 = vmatprep.subr.bf16.mxu0 0
        %990 = vmatpush1.bf16.msra.mxu0 0
        %991 = vmatprep.subr.bf16.mxu0 0
        %992 = vmatpush1.bf16.msra.mxu0 0
        %993 = vmatprep.subr.bf16.mxu0 0
        %994 = vmatpush1.bf16.msra.mxu0 0
        %995 = vmatprep.subr.bf16.mxu0 0
        %996 = vmatpush1.bf16.msra.mxu0 0
        %997 = vmatprep.subr.bf16.mxu0 0
        %998 = vmatpush1.bf16.msra.mxu0 0
        %999 = vmatprep.subr.bf16.mxu0 0
        %1000 = vmatpush1.bf16.msra.mxu0 0
        %1001 = vmatprep.subr.bf16.mxu0 0
        %1002 = vmatpush1.bf16.msra.mxu0 0
        %1003 = vmatprep.subr.bf16.mxu0 0
        %1004 = vmatpush1.bf16.msra.mxu0 0
        %1005 = vmatprep.mubr.bf16.mxu0 0
        %1006 = vmatmul.mubr.bf16.gmra.mrb[0].mxu0 %v968
        %v1007 = vpop.f32.mrb[0].mxu0
        %v1008 = vadd.f32 0.0, %v1007
        %v1009 = vpop.f32.mrb[0].mxu0
        %v1010 = vpop.f32.mrb[0].mxu0
        %v1011 = vpop.f32.mrb[0].mxu0
        %1012 = vdwg.mxu0
        %1013 = vrot.lane.b32.xlu0 %v788, 64
        %v1014 = vpop.permute.xlu0 %1013
        %1015 = vrot.lane.b32.xlu0 %v789, 64
        %v1016 = vpop.permute.xlu0 %1015
        %v1018 = vsel %vm791, %v1014, 0
        %v1021 = vsel %vm791, %v1016, 0
        %1023 = vmatprep.subr.bf16.mxu0 0
        %1024 = vmatpush1.bf16.xpose.msra.mxu0 %v1021
        %1025 = vmatprep.subr.bf16.mxu0 0
        %1026 = vmatpush1.bf16.xpose.msra.mxu0 0
        %1027 = vmatprep.subr.bf16.mxu0 0
        %1028 = vmatpush1.bf16.xpose.msra.mxu0 0
        %1029 = vmatprep.subr.bf16.mxu0 0
        %1030 = vmatpush1.bf16.xpose.msra.mxu0 0
        %1031 = vmatprep.subr.bf16.mxu0 0
        %1032 = vmatpush1.bf16.xpose.msra.mxu0 0
        %1033 = vmatprep.subr.bf16.mxu0 0
        %1034 = vmatpush1.bf16.xpose.msra.mxu0 0
        %1035 = vmatprep.subr.bf16.mxu0 0
        %1036 = vmatpush1.bf16.xpose.msra.mxu0 0
        %1037 = vmatprep.subr.bf16.mxu0 0
        %1038 = vmatpush1.bf16.xpose.msra.mxu0 0
        %1039 = vmatprep.subr.bf16.mxu0 0
        %1040 = vmatpush1.bf16.xpose.msra.mxu0 0
        %1041 = vmatprep.subr.bf16.mxu0 0
        %1042 = vmatpush1.bf16.xpose.msra.mxu0 0
        %1043 = vmatprep.subr.bf16.mxu0 0
        %1044 = vmatpush1.bf16.xpose.msra.mxu0 0
        %1045 = vmatprep.subr.bf16.mxu0 0
        %1046 = vmatpush1.bf16.xpose.msra.mxu0 0
        %1047 = vmatprep.subr.bf16.mxu0 0
        %1048 = vmatpush1.bf16.xpose.msra.mxu0 0
        %1049 = vmatprep.subr.bf16.mxu0 0
        %1050 = vmatpush1.bf16.xpose.msra.mxu0 0
        %1051 = vmatprep.subr.bf16.mxu0 0
        %1052 = vmatpush1.bf16.xpose.msra.mxu0 0
        %1053 = vmatprep.subr.bf16.mxu0 0
        %1054 = vmatpush1.bf16.xpose.msra.mxu0 0
        %1055 = vmatprep.mubr.bf16.mxu0 0
        %1056 = vmatmul.mubr.bf16.gmra.mrb[0].mxu0 %v1018
        %v1057 = vpop.f32.mrb[0].mxu0
        %v1058 = vadd.f32 0.0, %v1057
        %v1059 = vpop.f32.mrb[0].mxu0
        %v1060 = vpop.f32.mrb[0].mxu0
        %v1061 = vpop.f32.mrb[0].mxu0
        %1062 = vdwg.mxu0
        %v1063 = vmul.f32 %v1058, 0.088388346
        %v1064 = vsel %vm839, %v1063, -inf
        %1065 = vmax.xlane.f32.xlu0 %v1064
        %v1066 = vpop.xlane.xlu0 %1065
        %v1067 = vsub.f32 %v1063, %v1066
        %v1068 = vmul.f32 %v1067, 1.442695
        %v1069 = vpow.pop %v1068
        %v1070 = vsel %vm839, %v1069, 0.0
        %1071 = vadd.xlane.f32.xlu0 %v1070
        %v1072 = vpop.xlane.xlu0 %1071
        %v1073 = vrcp.pop %v1072
        %v1074 = vmul.f32 %v1069, %v1073
        %v1075 = vpack.c.bf16 %v1074, %v1074
        %1076 = vrot.lane.b32.xlu0 %v790, 64
        %v1077 = vpop.permute.xlu0 %1076
        %v1079 = vsel %vm839, %v1075, 0
        %v1082 = vsel %vm855, %v1077, 0
        %1084 = vmatprep.subr.bf16.mxu0 0
        %1085 = vmatpush1.bf16.msra.mxu0 %v1082
        %1086 = vmatprep.subr.bf16.mxu0 0
        %1087 = vmatpush1.bf16.msra.mxu0 0
        %1088 = vmatprep.subr.bf16.mxu0 0
        %1089 = vmatpush1.bf16.msra.mxu0 0
        %1090 = vmatprep.subr.bf16.mxu0 0
        %1091 = vmatpush1.bf16.msra.mxu0 0
        %1092 = vmatprep.subr.bf16.mxu0 0
        %1093 = vmatpush1.bf16.msra.mxu0 0
        %1094 = vmatprep.subr.bf16.mxu0 0
        %1095 = vmatpush1.bf16.msra.mxu0 0
        %1096 = vmatprep.subr.bf16.mxu0 0
        %1097 = vmatpush1.bf16.msra.mxu0 0
        %1098 = vmatprep.subr.bf16.mxu0 0
        %1099 = vmatpush1.bf16.msra.mxu0 0
        %1100 = vmatprep.subr.bf16.mxu0 0
        %1101 = vmatpush1.bf16.msra.mxu0 0
        %1102 = vmatprep.subr.bf16.mxu0 0
        %1103 = vmatpush1.bf16.msra.mxu0 0
        %1104 = vmatprep.subr.bf16.mxu0 0
        %1105 = vmatpush1.bf16.msra.mxu0 0
        %1106 = vmatprep.subr.bf16.mxu0 0
        %1107 = vmatpush1.bf16.msra.mxu0 0
        %1108 = vmatprep.subr.bf16.mxu0 0
        %1109 = vmatpush1.bf16.msra.mxu0 0
        %1110 = vmatprep.subr.bf16.mxu0 0
        %1111 = vmatpush1.bf16.msra.mxu0 0
        %1112 = vmatprep.subr.bf16.mxu0 0
        %1113 = vmatpush1.bf16.msra.mxu0 0
        %1114 = vmatprep.subr.bf16.mxu0 0
        %1115 = vmatpush1.bf16.msra.mxu0 0
        %1116 = vmatprep.mubr.bf16.mxu0 0
        %1117 = vmatmul.mubr.bf16.gmra.mrb[0].mxu0 %v1079
        %v1118 = vpop.f32.mrb[0].mxu0
        %v1119 = vadd.f32 0.0, %v1118
        %v1120 = vpop.f32.mrb[0].mxu0
        %v1121 = vpop.f32.mrb[0].mxu0
        %v1122 = vpop.f32.mrb[0].mxu0
        %1123 = vdwg.mxu0
        %1124 = vrot.lane.b32.xlu0 %v788, 32
        %v1125 = vpop.permute.xlu0 %1124
        %1126 = vrot.lane.b32.xlu0 %v789, 32
        %v1127 = vpop.permute.xlu0 %1126
        %v1129 = vsel %vm791, %v1125, 0
        %v1132 = vsel %vm791, %v1127, 0
        %1134 = vmatprep.subr.bf16.mxu0 0
        %1135 = vmatpush1.bf16.xpose.msra.mxu0 %v1132
        %1136 = vmatprep.subr.bf16.mxu0 0
        %1137 = vmatpush1.bf16.xpose.msra.mxu0 0
        %1138 = vmatprep.subr.bf16.mxu0 0
        %1139 = vmatpush1.bf16.xpose.msra.mxu0 0
        %1140 = vmatprep.subr.bf16.mxu0 0
        %1141 = vmatpush1.bf16.xpose.msra.mxu0 0
        %1142 = vmatprep.subr.bf16.mxu0 0
        %1143 = vmatpush1.bf16.xpose.msra.mxu0 0
        %1144 = vmatprep.subr.bf16.mxu0 0
        %1145 = vmatpush1.bf16.xpose.msra.mxu0 0
        %1146 = vmatprep.subr.bf16.mxu0 0
        %1147 = vmatpush1.bf16.xpose.msra.mxu0 0
        %1148 = vmatprep.subr.bf16.mxu0 0
        %1149 = vmatpush1.bf16.xpose.msra.mxu0 0
        %1150 = vmatprep.subr.bf16.mxu0 0
        %1151 = vmatpush1.bf16.xpose.msra.mxu0 0
        %1152 = vmatprep.subr.bf16.mxu0 0
        %1153 = vmatpush1.bf16.xpose.msra.mxu0 0
        %1154 = vmatprep.subr.bf16.mxu0 0
        %1155 = vmatpush1.bf16.xpose.msra.mxu0 0
        %1156 = vmatprep.subr.bf16.mxu0 0
        %1157 = vmatpush1.bf16.xpose.msra.mxu0 0
        %1158 = vmatprep.subr.bf16.mxu0 0
        %1159 = vmatpush1.bf16.xpose.msra.mxu0 0
        %1160 = vmatprep.subr.bf16.mxu0 0
        %1161 = vmatpush1.bf16.xpose.msra.mxu0 0
        %1162 = vmatprep.subr.bf16.mxu0 0
        %1163 = vmatpush1.bf16.xpose.msra.mxu0 0
        %1164 = vmatprep.subr.bf16.mxu0 0
        %1165 = vmatpush1.bf16.xpose.msra.mxu0 0
        %1166 = vmatprep.mubr.bf16.mxu0 0
        %1167 = vmatmul.mubr.bf16.gmra.mrb[0].mxu0 %v1129
        %v1168 = vpop.f32.mrb[0].mxu0
        %v1169 = vadd.f32 0.0, %v1168
        %v1170 = vpop.f32.mrb[0].mxu0
        %v1171 = vpop.f32.mrb[0].mxu0
        %v1172 = vpop.f32.mrb[0].mxu0
        %1173 = vdwg.mxu0
        %v1174 = vmul.f32 %v1169, 0.088388346
        %v1175 = vsel %vm839, %v1174, -inf
        %1176 = vmax.xlane.f32.xlu0 %v1175
        %v1177 = vpop.xlane.xlu0 %1176
        %v1178 = vsub.f32 %v1174, %v1177
        %v1179 = vmul.f32 %v1178, 1.442695
        %v1180 = vpow.pop %v1179
        %v1181 = vsel %vm839, %v1180, 0.0
        %1182 = vadd.xlane.f32.xlu0 %v1181
        %v1183 = vpop.xlane.xlu0 %1182
        %v1184 = vrcp.pop %v1183
        %v1185 = vmul.f32 %v1180, %v1184
        %v1186 = vpack.c.bf16 %v1185, %v1185
        %1187 = vrot.lane.b32.xlu0 %v790, 32
        %v1188 = vpop.permute.xlu0 %1187
        %v1190 = vsel %vm839, %v1186, 0
        %v1193 = vsel %vm855, %v1188, 0
        %1195 = vmatprep.subr.bf16.mxu0 0
        %1196 = vmatpush1.bf16.msra.mxu0 %v1193
        %1197 = vmatprep.subr.bf16.mxu0 0
        %1198 = vmatpush1.bf16.msra.mxu0 0
        %1199 = vmatprep.subr.bf16.mxu0 0
        %1200 = vmatpush1.bf16.msra.mxu0 0
        %1201 = vmatprep.subr.bf16.mxu0 0
        %1202 = vmatpush1.bf16.msra.mxu0 0
        %1203 = vmatprep.subr.bf16.mxu0 0
        %1204 = vmatpush1.bf16.msra.mxu0 0
        %1205 = vmatprep.subr.bf16.mxu0 0
        %1206 = vmatpush1.bf16.msra.mxu0 0
        %1207 = vmatprep.subr.bf16.mxu0 0
        %1208 = vmatpush1.bf16.msra.mxu0 0
        %1209 = vmatprep.subr.bf16.mxu0 0
        %1210 = vmatpush1.bf16.msra.mxu0 0
        %1211 = vmatprep.subr.bf16.mxu0 0
        %1212 = vmatpush1.bf16.msra.mxu0 0
        %1213 = vmatprep.subr.bf16.mxu0 0
        %1214 = vmatpush1.bf16.msra.mxu0 0
        %1215 = vmatprep.subr.bf16.mxu0 0
        %1216 = vmatpush1.bf16.msra.mxu0 0
        %1217 = vmatprep.subr.bf16.mxu0 0
        %1218 = vmatpush1.bf16.msra.mxu0 0
        %1219 = vmatprep.subr.bf16.mxu0 0
        %1220 = vmatpush1.bf16.msra.mxu0 0
        %1221 = vmatprep.subr.bf16.mxu0 0
        %1222 = vmatpush1.bf16.msra.mxu0 0
        %1223 = vmatprep.subr.bf16.mxu0 0
        %1224 = vmatpush1.bf16.msra.mxu0 0
        %1225 = vmatprep.subr.bf16.mxu0 0
        %1226 = vmatpush1.bf16.msra.mxu0 0
        %1227 = vmatprep.mubr.bf16.mxu0 0
        %1228 = vmatmul.mubr.bf16.gmra.mrb[0].mxu0 %v1190
        %v1229 = vpop.f32.mrb[0].mxu0
        %v1230 = vadd.f32 0.0, %v1229
        %v1231 = vpop.f32.mrb[0].mxu0
        %v1232 = vpop.f32.mrb[0].mxu0
        %v1233 = vpop.f32.mrb[0].mxu0
        %1234 = vdwg.mxu0
        %1236 = vrot.lane.b32.xlu0 %v1008, 32
        %v1237 = vpop.permute.xlu0 %1236
        %1240 = vrot.lane.b32.xlu0 %v1119, 64
        %v1241 = vpop.permute.xlu0 %1240
        %1244 = vrot.lane.b32.xlu0 %v1230, 96
        %v1245 = vpop.permute.xlu0 %1244
        %v1247 = vsel %vm791, %v894, %v1237
        %vm1248 = vcmask 523264
        %v1249 = vsel %vm1248, %v1247, %v1241
        %vm1250 = vcmask 785408
        %v1251 = vsel %vm1250, %v1249, %v1245
        %v1252 = vpack.c.bf16 %v1251, %v1251
        %v1253 = vld [vmem:[#allocation7] sm:$0xf]
        %v1254 = vld [vmem:[#allocation7 + $0x4] sm:$0xf]
        %v1255 = vld [vmem:[#allocation7 + $0x8] sm:$0xf]
        %v1256 = vld [vmem:[#allocation7 + $0xc] sm:$0xf]
        %v1257 = vld [vmem:[#allocation7 + $0x10] sm:$0xf]
        %v1258 = vld [vmem:[#allocation7 + $0x14] sm:$0xf]
        %v1259 = vld [vmem:[#allocation7 + $0x18] sm:$0xf]
        %v1260 = vld [vmem:[#allocation7 + $0x1c] sm:$0xf]
        %v1261 = vld [vmem:[#allocation7 + $0x20] sm:$0xf]
        %v1262 = vld [vmem:[#allocation7 + $0x24] sm:$0xf]
        %v1263 = vld [vmem:[#allocation7 + $0x28] sm:$0xf]
        %v1264 = vld [vmem:[#allocation7 + $0x2c] sm:$0xf]
        %v1265 = vld [vmem:[#allocation7 + $0x30] sm:$0xf]
        %v1266 = vld [vmem:[#allocation7 + $0x34] sm:$0xf]
        %v1267 = vld [vmem:[#allocation7 + $0x38] sm:$0xf]
        %v1268 = vld [vmem:[#allocation7 + $0x3c] sm:$0xf]
        %v1269 = vld [vmem:[%s5] sm:$0x1]
        %v1271 = vlaneseq
        %v1272 = vshrl.u32 %v1271, 7
        %v1273 = vsub.s32 0, %v1272
        %v1274 = vrot.slane %v1269, %v1273
        %v1292 = vunpack.c.l.b16 %v1253
        %v1293 = vunpack.c.l.b16 %v1254
        %v1294 = vunpack.c.l.b16 %v1255
        %v1295 = vunpack.c.l.b16 %v1256
        %v1296 = vunpack.c.l.b16 %v1257
        %v1297 = vunpack.c.l.b16 %v1258
        %v1298 = vunpack.c.l.b16 %v1259
        %v1299 = vunpack.c.l.b16 %v1260
        %v1300 = vunpack.c.l.b16 %v1261
        %v1301 = vunpack.c.l.b16 %v1262
        %v1302 = vunpack.c.l.b16 %v1263
        %v1303 = vunpack.c.l.b16 %v1264
        %v1304 = vunpack.c.l.b16 %v1265
        %v1305 = vunpack.c.l.b16 %v1266
        %v1306 = vunpack.c.l.b16 %v1267
        %v1307 = vunpack.c.l.b16 %v1268
        %v1308 = vpack.c.b16 %v1293, %v1292
        %v1309 = vpack.c.b16 %v1295, %v1294
        %v1310 = vpack.c.b16 %v1297, %v1296
        %v1311 = vpack.c.b16 %v1299, %v1298
        %v1312 = vpack.c.b16 %v1301, %v1300
        %v1313 = vpack.c.b16 %v1303, %v1302
        %v1314 = vpack.c.b16 %v1305, %v1304
        %v1315 = vpack.c.b16 %v1307, %v1306
        %1324 = vmatprep.subr.bf16.mxu0 0
        %1325 = vmatpush1.bf16.msra.mxu0 %v1308
        %1326 = vmatprep.subr.bf16.mxu0 0
        %1327 = vmatpush1.bf16.msra.mxu0 %v1309
        %1328 = vmatprep.subr.bf16.mxu0 0
        %1329 = vmatpush1.bf16.msra.mxu0 %v1310
        %1330 = vmatprep.subr.bf16.mxu0 0
        %1331 = vmatpush1.bf16.msra.mxu0 %v1311
        %1332 = vmatprep.subr.bf16.mxu0 0
        %1333 = vmatpush1.bf16.msra.mxu0 %v1312
        %1334 = vmatprep.subr.bf16.mxu0 0
        %1335 = vmatpush1.bf16.msra.mxu0 %v1313
        %1336 = vmatprep.subr.bf16.mxu0 0
        %1337 = vmatpush1.bf16.msra.mxu0 %v1314
        %1338 = vmatprep.subr.bf16.mxu0 0
        %1339 = vmatpush1.bf16.msra.mxu0 %v1315
        %1340 = vmatprep.subr.bf16.mxu0 0
        %1341 = vmatpush1.bf16.msra.mxu0 0
        %1342 = vmatprep.subr.bf16.mxu0 0
        %1343 = vmatpush1.bf16.msra.mxu0 0
        %1344 = vmatprep.subr.bf16.mxu0 0
        %1345 = vmatpush1.bf16.msra.mxu0 0
        %1346 = vmatprep.subr.bf16.mxu0 0
        %1347 = vmatpush1.bf16.msra.mxu0 0
        %1348 = vmatprep.subr.bf16.mxu0 0
        %1349 = vmatpush1.bf16.msra.mxu0 0
        %1350 = vmatprep.subr.bf16.mxu0 0
        %1351 = vmatpush1.bf16.msra.mxu0 0
        %1352 = vmatprep.subr.bf16.mxu0 0
        %1353 = vmatpush1.bf16.msra.mxu0 0
        %1354 = vmatprep.subr.bf16.mxu0 0
        %1355 = vmatpush1.bf16.msra.mxu0 0
        %1356 = vmatprep.mubr.bf16.mxu0 0
        %1357 = vmatmul.mubr.bf16.gmra.mrb[0].mxu0 %v1252
        %v1358 = vpop.f32.mrb[0].mxu0
        %v1359 = vadd.f32 %v1274, %v1358
        %v1360 = vpop.f32.mrb[0].mxu0
        %v1361 = vpop.f32.mrb[0].mxu0
        %v1362 = vpop.f32.mrb[0].mxu0
        %1363 = vdwg.mxu0
        %v1364 = vadd.f32 %v517, %v1359
        %v1365 = vld [vmem:[%s6] sm:$0x1]
        %v1366 = vld [vmem:[%s7] sm:$0x1]
        %1367 = vadd.xlane.f32.xlu0 %v1364
        %v1368 = vpop.xlane.xlu0 %1367
        %v1369 = vmul.f32 %v1368, %v522
        %v1370 = vsub.f32 %v1364, %v1369
        %v1371 = vmul.f32 %v1370, %v1370
        %1372 = vadd.xlane.f32.xlu0 %v1371
        %v1373 = vpop.xlane.xlu0 %1372
        %v1374 = vmul.f32 %v1373, %v522
        %v1375 = vadd.f32 %v1374, 1e-05
        %v1376 = vrsqrt.pop %v1375
        %v1377 = vmul.f32 %v1370, %v1376
        %v1379 = vlaneseq
        %v1380 = vshrl.u32 %v1379, 7
        %v1381 = vsub.s32 0, %v1380
        %v1382 = vrot.slane %v1365, %v1381
        %v1384 = vmul.f32 %v1377, %v1382
        %v1386 = vlaneseq
        %v1387 = vshrl.u32 %v1386, 7
        %v1388 = vsub.s32 0, %v1387
        %v1389 = vrot.slane %v1366, %v1388
        %v1391 = vadd.f32 %v1384, %v1389
        %v1392 = vpack.c.bf16 %v1391, %v1391
        %v1393 = vld [vmem:[#allocation8] sm:$0xff]
        %v1394 = vld [vmem:[#allocation8 + $0x8] sm:$0xff]
        %v1395 = vld [vmem:[#allocation8 + $0x10] sm:$0xff]
        %v1396 = vld [vmem:[#allocation8 + $0x18] sm:$0xff]
        %v1397 = vld [vmem:[#allocation8 + $0x20] sm:$0xff]
        %v1398 = vld [vmem:[#allocation8 + $0x28] sm:$0xff]
        %v1399 = vld [vmem:[#allocation8 + $0x30] sm:$0xff]
        %v1400 = vld [vmem:[#allocation8 + $0x38] sm:$0xff]
        %v1401 = vld [vmem:[#allocation8 + $0x40] sm:$0xff]
        %v1402 = vld [vmem:[#allocation8 + $0x48] sm:$0xff]
        %v1403 = vld [vmem:[#allocation8 + $0x50] sm:$0xff]
        %v1404 = vld [vmem:[#allocation8 + $0x58] sm:$0xff]
        %v1405 = vld [vmem:[#allocation8 + $0x60] sm:$0xff]
        %v1406 = vld [vmem:[#allocation8 + $0x68] sm:$0xff]
        %v1407 = vld [vmem:[#allocation8 + $0x70] sm:$0xff]
        %v1408 = vld [vmem:[#allocation8 + $0x78] sm:$0xff]
        %v1409 = vld [vmem:[#allocation10] sm:$0x3]
        %v1411 = vlaneseq
        %v1412 = vshrl.u32 %v1411, 7
        %v1413 = vsub.s32 0, %v1412
        %v1414 = vrot.slane %v1409, %v1413
        %v1415 = vlaneseq
        %v1416 = vshrl.u32 %v1415, 7
        %v1417 = vsub.s32 1, %v1416
        %v1418 = vrot.slane %v1409, %v1417
        %v1437 = vunpack.c.l.b16 %v1393
        %v1438 = vunpack.c.h.b16 %v1393
        %v1439 = vunpack.c.l.b16 %v1394
        %v1440 = vunpack.c.h.b16 %v1394
        %v1441 = vunpack.c.l.b16 %v1395
        %v1442 = vunpack.c.h.b16 %v1395
        %v1443 = vunpack.c.l.b16 %v1396
        %v1444 = vunpack.c.h.b16 %v1396
        %v1445 = vunpack.c.l.b16 %v1397
        %v1446 = vunpack.c.h.b16 %v1397
        %v1447 = vunpack.c.l.b16 %v1398
        %v1448 = vunpack.c.h.b16 %v1398
        %v1449 = vunpack.c.l.b16 %v1399
        %v1450 = vunpack.c.h.b16 %v1399
        %v1451 = vunpack.c.l.b16 %v1400
        %v1452 = vunpack.c.h.b16 %v1400
        %v1453 = vunpack.c.l.b16 %v1401
        %v1454 = vunpack.c.h.b16 %v1401
        %v1455 = vunpack.c.l.b16 %v1402
        %v1456 = vunpack.c.h.b16 %v1402
        %v1457 = vunpack.c.l.b16 %v1403
        %v1458 = vunpack.c.h.b16 %v1403
        %v1459 = vunpack.c.l.b16 %v1404
        %v1460 = vunpack.c.h.b16 %v1404
        %v1461 = vunpack.c.l.b16 %v1405
        %v1462 = vunpack.c.h.b16 %v1405
        %v1463 = vunpack.c.l.b16 %v1406
        %v1464 = vunpack.c.h.b16 %v1406
        %v1465 = vunpack.c.l.b16 %v1407
        %v1466 = vunpack.c.h.b16 %v1407
        %v1467 = vunpack.c.l.b16 %v1408
        %v1468 = vunpack.c.h.b16 %v1408
        %v1469 = vpack.c.b16 %v1439, %v1437
        %v1470 = vpack.c.b16 %v1440, %v1438
        %v1471 = vpack.c.b16 %v1443, %v1441
        %v1472 = vpack.c.b16 %v1444, %v1442
        %v1473 = vpack.c.b16 %v1447, %v1445
        %v1474 = vpack.c.b16 %v1448, %v1446
        %v1475 = vpack.c.b16 %v1451, %v1449
        %v1476 = vpack.c.b16 %v1452, %v1450
        %v1477 = vpack.c.b16 %v1455, %v1453
        %v1478 = vpack.c.b16 %v1456, %v1454
        %v1479 = vpack.c.b16 %v1459, %v1457
        %v1480 = vpack.c.b16 %v1460, %v1458
        %v1481 = vpack.c.b16 %v1463, %v1461
        %v1482 = vpack.c.b16 %v1464, %v1462
        %v1483 = vpack.c.b16 %v1467, %v1465
        %v1484 = vpack.c.b16 %v1468, %v1466
        %1501 = vmatprep.subr.bf16.mxu0 %v1470
        %1502 = vmatpush1.bf16.msra.mxu0 %v1469
        %1503 = vmatprep.subr.bf16.mxu0 %v1472
        %1504 = vmatpush1.bf16.msra.mxu0 %v1471
        %1505 = vmatprep.subr.bf16.mxu0 %v1474
        %1506 = vmatpush1.bf16.msra.mxu0 %v1473
        %1507 = vmatprep.subr.bf16.mxu0 %v1476
        %1508 = vmatpush1.bf16.msra.mxu0 %v1475
        %1509 = vmatprep.subr.bf16.mxu0 %v1478
        %1510 = vmatpush1.bf16.msra.mxu0 %v1477
        %1511 = vmatprep.subr.bf16.mxu0 %v1480
        %1512 = vmatpush1.bf16.msra.mxu0 %v1479
        %1513 = vmatprep.subr.bf16.mxu0 %v1482
        %1514 = vmatpush1.bf16.msra.mxu0 %v1481
        %1515 = vmatprep.subr.bf16.mxu0 %v1484
        %1516 = vmatpush1.bf16.msra.mxu0 %v1483
        %1517 = vmatprep.subr.bf16.mxu0 0
        %1518 = vmatpush1.bf16.msra.mxu0 0
        %1519 = vmatprep.subr.bf16.mxu0 0
        %1520 = vmatpush1.bf16.msra.mxu0 0
        %1521 = vmatprep.subr.bf16.mxu0 0
        %1522 = vmatpush1.bf16.msra.mxu0 0
        %1523 = vmatprep.subr.bf16.mxu0 0
        %1524 = vmatpush1.bf16.msra.mxu0 0
        %1525 = vmatprep.subr.bf16.mxu0 0
        %1526 = vmatpush1.bf16.msra.mxu0 0
        %1527 = vmatprep.subr.bf16.mxu0 0
        %1528 = vmatpush1.bf16.msra.mxu0 0
        %1529 = vmatprep.subr.bf16.mxu0 0
        %1530 = vmatpush1.bf16.msra.mxu0 0
        %1531 = vmatprep.subr.bf16.mxu0 0
        %1532 = vmatpush1.bf16.msra.mxu0 0
        %1533 = vmatprep.mubr.bf16.mxu0 0
        %1534 = vmatmul.mubr.bf16.gmra.mrb[0].mxu0 %v1392
        %v1535 = vpop.f32.mrb[0].mxu0
        %v1536 = vadd.f32 %v1414, %v1535
        %v1537 = vpop.f32.mrb[0].mxu0
        %v1538 = vadd.f32 %v1418, %v1537
        %v1539 = vpop.f32.mrb[0].mxu0
        %v1540 = vpop.f32.mrb[0].mxu0
        %1541 = vdwg.mxu0
        %v1542 = vmul.f32 %v1536, 0.5
        %v1543 = vmul.f32 %v1538, 0.5
        %v1544 = vmul.f32 %v1536, 0.044715
        %v1545 = vmul.f32 %v1538, 0.044715
        %v1546 = vmul.f32 %v1544, %v1536
        %v1547 = vmul.f32 %v1545, %v1538
        %v1548 = vmul.f32 %v1546, %v1536
        %v1549 = vmul.f32 %v1547, %v1538
        %v1550 = vadd.f32 %v1536, %v1548
        %v1551 = vadd.f32 %v1538, %v1549
        %v1552 = vmul.f32 %v1550, 0.7978846
        %v1553 = vmul.f32 %v1551, 0.7978846
        %v1554 = vtanh.pop %v1552
        %v1555 = vtanh.pop %v1553
        %v1556 = vadd.f32 %v1554, 1.0
        %v1557 = vadd.f32 %v1555, 1.0
        %v1558 = vmul.f32 %v1542, %v1556
        %v1559 = vmul.f32 %v1543, %v1557
        %v1560 = vpack.c.bf16 %v1558, %v1558
        %v1561 = vpack.c.bf16 %v1559, %v1559
        %v1562 = vld [vmem:[#allocation11] sm:$0xf]
        %v1563 = vld [vmem:[#allocation11 + $0x4] sm:$0xf]
        %v1564 = vld [vmem:[#allocation11 + $0x8] sm:$0xf]
        %v1565 = vld [vmem:[#allocation11 + $0xc] sm:$0xf]
        %v1566 = vld [vmem:[#allocation11 + $0x10] sm:$0xf]
        %v1567 = vld [vmem:[#allocation11 + $0x14] sm:$0xf]
        %v1568 = vld [vmem:[#allocation11 + $0x18] sm:$0xf]
        %v1569 = vld [vmem:[#allocation11 + $0x1c] sm:$0xf]
        %v1570 = vld [vmem:[#allocation11 + $0x20] sm:$0xf]
        %v1571 = vld [vmem:[#allocation11 + $0x24] sm:$0xf]
        %v1572 = vld [vmem:[#allocation11 + $0x28] sm:$0xf]
        %v1573 = vld [vmem:[#allocation11 + $0x2c] sm:$0xf]
        %v1574 = vld [vmem:[#allocation11 + $0x30] sm:$0xf]
        %v1575 = vld [vmem:[#allocation11 + $0x34] sm:$0xf]
        %v1576 = vld [vmem:[#allocation11 + $0x38] sm:$0xf]
        %v1577 = vld [vmem:[#allocation11 + $0x3c] sm:$0xf]
        %v1578 = vld [vmem:[#allocation11 + $0x40] sm:$0xf]
        %v1579 = vld [vmem:[#allocation11 + $0x44] sm:$0xf]
        %v1580 = vld [vmem:[#allocation11 + $0x48] sm:$0xf]
        %v1581 = vld [vmem:[#allocation11 + $0x4c] sm:$0xf]
        %v1582 = vld [vmem:[#allocation11 + $0x50] sm:$0xf]
        %v1583 = vld [vmem:[#allocation11 + $0x54] sm:$0xf]
        %v1584 = vld [vmem:[#allocation11 + $0x58] sm:$0xf]
        %v1585 = vld [vmem:[#allocation11 + $0x5c] sm:$0xf]
        %v1586 = vld [vmem:[#allocation11 + $0x60] sm:$0xf]
        %v1587 = vld [vmem:[#allocation11 + $0x64] sm:$0xf]
        %v1588 = vld [vmem:[#allocation11 + $0x68] sm:$0xf]
        %v1589 = vld [vmem:[#allocation11 + $0x6c] sm:$0xf]
        %v1590 = vld [vmem:[#allocation11 + $0x70] sm:$0xf]
        %v1591 = vld [vmem:[#allocation11 + $0x74] sm:$0xf]
        %v1592 = vld [vmem:[#allocation11 + $0x78] sm:$0xf]
        %v1593 = vld [vmem:[#allocation11 + $0x7c] sm:$0xf]
        %v1594 = vld [vmem:[#allocation13] sm:$0x1]
        %v1596 = vlaneseq
        %v1597 = vshrl.u32 %v1596, 7
        %v1598 = vsub.s32 0, %v1597
        %v1599 = vrot.slane %v1594, %v1598
        %v1633 = vunpack.c.l.b16 %v1562
        %v1634 = vunpack.c.l.b16 %v1563
        %v1635 = vunpack.c.l.b16 %v1564
        %v1636 = vunpack.c.l.b16 %v1565
        %v1637 = vunpack.c.l.b16 %v1566
        %v1638 = vunpack.c.l.b16 %v1567
        %v1639 = vunpack.c.l.b16 %v1568
        %v1640 = vunpack.c.l.b16 %v1569
        %v1641 = vunpack.c.l.b16 %v1570
        %v1642 = vunpack.c.l.b16 %v1571
        %v1643 = vunpack.c.l.b16 %v1572
        %v1644 = vunpack.c.l.b16 %v1573
        %v1645 = vunpack.c.l.b16 %v1574
        %v1646 = vunpack.c.l.b16 %v1575
        %v1647 = vunpack.c.l.b16 %v1576
        %v1648 = vunpack.c.l.b16 %v1577
        %v1649 = vunpack.c.l.b16 %v1578
        %v1650 = vunpack.c.l.b16 %v1579
        %v1651 = vunpack.c.l.b16 %v1580
        %v1652 = vunpack.c.l.b16 %v1581
        %v1653 = vunpack.c.l.b16 %v1582
        %v1654 = vunpack.c.l.b16 %v1583
        %v1655 = vunpack.c.l.b16 %v1584
        %v1656 = vunpack.c.l.b16 %v1585
        %v1657 = vunpack.c.l.b16 %v1586
        %v1658 = vunpack.c.l.b16 %v1587
        %v1659 = vunpack.c.l.b16 %v1588
        %v1660 = vunpack.c.l.b16 %v1589
        %v1661 = vunpack.c.l.b16 %v1590
        %v1662 = vunpack.c.l.b16 %v1591
        %v1663 = vunpack.c.l.b16 %v1592
        %v1664 = vunpack.c.l.b16 %v1593
        %v1665 = vpack.c.b16 %v1634, %v1633
        %v1666 = vpack.c.b16 %v1636, %v1635
        %v1667 = vpack.c.b16 %v1638, %v1637
        %v1668 = vpack.c.b16 %v1640, %v1639
        %v1669 = vpack.c.b16 %v1642, %v1641
        %v1670 = vpack.c.b16 %v1644, %v1643
        %v1671 = vpack.c.b16 %v1646, %v1645
        %v1672 = vpack.c.b16 %v1648, %v1647
        %v1673 = vpack.c.b16 %v1650, %v1649
        %v1674 = vpack.c.b16 %v1652, %v1651
        %v1675 = vpack.c.b16 %v1654, %v1653
        %v1676 = vpack.c.b16 %v1656, %v1655
        %v1677 = vpack.c.b16 %v1658, %v1657
        %v1678 = vpack.c.b16 %v1660, %v1659
        %v1679 = vpack.c.b16 %v1662, %v1661
        %v1680 = vpack.c.b16 %v1664, %v1663
        %1697 = vmatprep.subr.bf16.mxu0 0
        %1698 = vmatpush1.bf16.msra.mxu0 %v1665
        %1699 = vmatprep.subr.bf16.mxu0 0
        %1700 = vmatpush1.bf16.msra.mxu0 %v1666
        %1701 = vmatprep.subr.bf16.mxu0 0
        %1702 = vmatpush1.bf16.msra.mxu0 %v1667
        %1703 = vmatprep.subr.bf16.mxu0 0
        %1704 = vmatpush1.bf16.msra.mxu0 %v1668
        %1705 = vmatprep.subr.bf16.mxu0 0
        %1706 = vmatpush1.bf16.msra.mxu0 %v1669
        %1707 = vmatprep.subr.bf16.mxu0 0
        %1708 = vmatpush1.bf16.msra.mxu0 %v1670
        %1709 = vmatprep.subr.bf16.mxu0 0
        %1710 = vmatpush1.bf16.msra.mxu0 %v1671
        %1711 = vmatprep.subr.bf16.mxu0 0
        %1712 = vmatpush1.bf16.msra.mxu0 %v1672
        %1713 = vmatprep.subr.bf16.mxu0 0
        %1714 = vmatpush1.bf16.msra.mxu0 %v1673
        %1715 = vmatprep.subr.bf16.mxu0 0
        %1716 = vmatpush1.bf16.msra.mxu0 %v1674
        %1717 = vmatprep.subr.bf16.mxu0 0
        %1718 = vmatpush1.bf16.msra.mxu0 %v1675
        %1719 = vmatprep.subr.bf16.mxu0 0
        %1720 = vmatpush1.bf16.msra.mxu0 %v1676
        %1721 = vmatprep.subr.bf16.mxu0 0
        %1722 = vmatpush1.bf16.msra.mxu0 %v1677
        %1723 = vmatprep.subr.bf16.mxu0 0
        %1724 = vmatpush1.bf16.msra.mxu0 %v1678
        %1725 = vmatprep.subr.bf16.mxu0 0
        %1726 = vmatpush1.bf16.msra.mxu0 %v1679
        %1727 = vmatprep.subr.bf16.mxu0 0
        %1728 = vmatpush1.bf16.msra.mxu0 %v1680
        %1729 = vmatprep.mubr.bf16.mxu0 %v1561
        %1730 = vmatmul.mubr.bf16.gmra.mrb[0].mxu0 %v1560
        %v1731 = vpop.f32.mrb[0].mxu0
        %v1732 = vadd.f32 %v1599, %v1731
        %v1733 = vpop.f32.mrb[0].mxu0
        %v1734 = vpop.f32.mrb[0].mxu0
        %v1735 = vpop.f32.mrb[0].mxu0
        %1736 = vdwg.mxu0
        %v1737 = vadd.f32 %v1364, %v1732
        %s1738 = scalar_lea.vmem %s1, 1
        %v1739 = vld [vmem:[%s1738] sm:$0x1]
        %s1740 = scalar_lea.vmem %s2, 1
        %v1741 = vld [vmem:[%s1740] sm:$0x1]
        %1742 = vadd.xlane.f32.xlu0 %v1737
        %v1743 = vpop.xlane.xlu0 %1742
        %v1744 = vmul.f32 %v1743, %v522
        %v1745 = vsub.f32 %v1737, %v1744
        %v1746 = vmul.f32 %v1745, %v1745
        %1747 = vadd.xlane.f32.xlu0 %v1746
        %v1748 = vpop.xlane.xlu0 %1747
        %v1749 = vmul.f32 %v1748, %v522
        %v1750 = vadd.f32 %v1749, 1e-05
        %v1751 = vrsqrt.pop %v1750
        %v1752 = vmul.f32 %v1745, %v1751
        %v1754 = vlaneseq
        %v1755 = vshrl.u32 %v1754, 7
        %v1756 = vsub.s32 0, %v1755
        %v1757 = vrot.slane %v1739, %v1756
        %v1759 = vmul.f32 %v1752, %v1757
        %v1761 = vlaneseq
        %v1762 = vshrl.u32 %v1761, 7
        %v1763 = vsub.s32 0, %v1762
        %v1764 = vrot.slane %v1741, %v1763
        %v1766 = vadd.f32 %v1759, %v1764
        %v1767 = vpack.c.bf16 %v1766, %v1766
        %s1768 = scalar_lea.vmem [#allocation5], 192
        %v1769 = vld [vmem:[%s1768] sm:$0xff]
        %v1770 = vld [vmem:[%s1768 + $0x8] sm:$0xf]
        %v1771 = vld [vmem:[%s1768 + $0xc] sm:$0xff]
        %v1772 = vld [vmem:[%s1768 + $0x14] sm:$0xf]
        %v1773 = vld [vmem:[%s1768 + $0x18] sm:$0xff]
        %v1774 = vld [vmem:[%s1768 + $0x20] sm:$0xf]
        %v1775 = vld [vmem:[%s1768 + $0x24] sm:$0xff]
        %v1776 = vld [vmem:[%s1768 + $0x2c] sm:$0xf]
        %v1777 = vld [vmem:[%s1768 + $0x30] sm:$0xff]
        %v1778 = vld [vmem:[%s1768 + $0x38] sm:$0xf]
        %v1779 = vld [vmem:[%s1768 + $0x3c] sm:$0xff]
        %v1780 = vld [vmem:[%s1768 + $0x44] sm:$0xf]
        %v1781 = vld [vmem:[%s1768 + $0x48] sm:$0xff]
        %v1782 = vld [vmem:[%s1768 + $0x50] sm:$0xf]
        %v1783 = vld [vmem:[%s1768 + $0x54] sm:$0xff]
        %v1784 = vld [vmem:[%s1768 + $0x5c] sm:$0xf]
        %v1785 = vld [vmem:[%s1768 + $0x60] sm:$0xff]
        %v1786 = vld [vmem:[%s1768 + $0x68] sm:$0xf]
        %v1787 = vld [vmem:[%s1768 + $0x6c] sm:$0xff]
        %v1788 = vld [vmem:[%s1768 + $0x74] sm:$0xf]
        %v1789 = vld [vmem:[%s1768 + $0x78] sm:$0xff]
        %v1790 = vld [vmem:[%s1768 + $0x80] sm:$0xf]
        %v1791 = vld [vmem:[%s1768 + $0x84] sm:$0xff]
        %v1792 = vld [vmem:[%s1768 + $0x8c] sm:$0xf]
        %v1793 = vld [vmem:[%s1768 + $0x90] sm:$0xff]
        %v1794 = vld [vmem:[%s1768 + $0x98] sm:$0xf]
        %v1795 = vld [vmem:[%s1768 + $0x9c] sm:$0xff]
        %v1796 = vld [vmem:[%s1768 + $0xa4] sm:$0xf]
        %v1797 = vld [vmem:[%s1768 + $0xa8] sm:$0xff]
        %v1798 = vld [vmem:[%s1768 + $0xb0] sm:$0xf]
        %v1799 = vld [vmem:[%s1768 + $0xb4] sm:$0xff]
        %v1800 = vld [vmem:[%s1768 + $0xbc] sm:$0xf]
        %v1833 = vunpack.c.l.b16 %v1769
        %v1834 = vunpack.c.h.b16 %v1769
        %v1835 = vunpack.c.l.b16 %v1770
        %v1836 = vunpack.c.l.b16 %v1771
        %v1837 = vunpack.c.h.b16 %v1771
        %v1838 = vunpack.c.l.b16 %v1772
        %v1839 = vunpack.c.l.b16 %v1773
        %v1840 = vunpack.c.h.b16 %v1773
        %v1841 = vunpack.c.l.b16 %v1774
        %v1842 = vunpack.c.l.b16 %v1775
        %v1843 = vunpack.c.h.b16 %v1775
        %v1844 = vunpack.c.l.b16 %v1776
        %v1845 = vunpack.c.l.b16 %v1777
        %v1846 = vunpack.c.h.b16 %v1777
        %v1847 = vunpack.c.l.b16 %v1778
        %v1848 = vunpack.c.l.b16 %v1779
        %v1849 = vunpack.c.h.b16 %v1779
        %v1850 = vunpack.c.l.b16 %v1780
        %v1851 = vunpack.c.l.b16 %v1781
        %v1852 = vunpack.c.h.b16 %v1781
        %v1853 = vunpack.c.l.b16 %v1782
        %v1854 = vunpack.c.l.b16 %v1783
        %v1855 = vunpack.c.h.b16 %v1783
        %v1856 = vunpack.c.l.b16 %v1784
        %v1857 = vunpack.c.l.b16 %v1785
        %v1858 = vunpack.c.h.b16 %v1785
        %v1859 = vunpack.c.l.b16 %v1786
        %v1860 = vunpack.c.l.b16 %v1787
        %v1861 = vunpack.c.h.b16 %v1787
        %v1862 = vunpack.c.l.b16 %v1788
        %v1863 = vunpack.c.l.b16 %v1789
        %v1864 = vunpack.c.h.b16 %v1789
        %v1865 = vunpack.c.l.b16 %v1790
        %v1866 = vunpack.c.l.b16 %v1791
        %v1867 = vunpack.c.h.b16 %v1791
        %v1868 = vunpack.c.l.b16 %v1792
        %v1869 = vunpack.c.l.b16 %v1793
        %v1870 = vunpack.c.h.b16 %v1793
        %v1871 = vunpack.c.l.b16 %v1794
        %v1872 = vunpack.c.l.b16 %v1795
        %v1873 = vunpack.c.h.b16 %v1795
        %v1874 = vunpack.c.l.b16 %v1796
        %v1875 = vunpack.c.l.b16 %v1797
        %v1876 = vunpack.c.h.b16 %v1797
        %v1877 = vunpack.c.l.b16 %v1798
        %v1878 = vunpack.c.l.b16 %v1799
        %v1879 = vunpack.c.h.b16 %v1799
        %v1880 = vunpack.c.l.b16 %v1800
        %v1881 = vpack.c.b16 %v1836, %v1833
        %v1882 = vpack.c.b16 %v1837, %v1834
        %v1883 = vpack.c.b16 %v1838, %v1835
        %v1884 = vpack.c.b16 %v1842, %v1839
        %v1885 = vpack.c.b16 %v1843, %v1840
        %v1886 = vpack.c.b16 %v1844, %v1841
        %v1887 = vpack.c.b16 %v1848, %v1845
        %v1888 = vpack.c.b16 %v1849, %v1846
        %v1889 = vpack.c.b16 %v1850, %v1847
        %v1890 = vpack.c.b16 %v1854, %v1851
        %v1891 = vpack.c.b16 %v1855, %v1852
        %v1892 = vpack.c.b16 %v1856, %v1853
        %v1893 = vpack.c.b16 %v1860, %v1857
        %v1894 = vpack.c.b16 %v1861, %v1858
        %v1895 = vpack.c.b16 %v1862, %v1859
        %v1896 = vpack.c.b16 %v1866, %v1863
        %v1897 = vpack.c.b16 %v1867, %v1864
        %v1898 = vpack.c.b16 %v1868, %v1865
        %v1899 = vpack.c.b16 %v1872, %v1869
        %v1900 = vpack.c.b16 %v1873, %v1870
        %v1901 = vpack.c.b16 %v1874, %v1871
        %v1902 = vpack.c.b16 %v1878, %v1875
        %v1903 = vpack.c.b16 %v1879, %v1876
        %v1904 = vpack.c.b16 %v1880, %v1877
        %1929 = vmatprep.subr.bf16.mxu0 %v1882
        %1930 = vmatpush1.bf16.msra.mxu0 %v1881
        %1931 = vmatprep.subr.bf16.mxu0 %v1885
        %1932 = vmatpush1.bf16.msra.mxu0 %v1884
        %1933 = vmatprep.subr.bf16.mxu0 %v1888
        %1934 = vmatpush1.bf16.msra.mxu0 %v1887
        %1935 = vmatprep.subr.bf16.mxu0 %v1891
        %1936 = vmatpush1.bf16.msra.mxu0 %v1890
        %1937 = vmatprep.subr.bf16.mxu0 %v1894
        %1938 = vmatpush1.bf16.msra.mxu0 %v1893
        %1939 = vmatprep.subr.bf16.mxu0 %v1897
        %1940 = vmatpush1.bf16.msra.mxu0 %v1896
        %1941 = vmatprep.subr.bf16.mxu0 %v1900
        %1942 = vmatpush1.bf16.msra.mxu0 %v1899
        %1943 = vmatprep.subr.bf16.mxu0 %v1903
        %1944 = vmatpush1.bf16.msra.mxu0 %v1902
        %1945 = vmatprep.subr.bf16.mxu0 0
        %1946 = vmatpush1.bf16.msra.mxu0 0
        %1947 = vmatprep.subr.bf16.mxu0 0
        %1948 = vmatpush1.bf16.msra.mxu0 0
        %1949 = vmatprep.subr.bf16.mxu0 0
        %1950 = vmatpush1.bf16.msra.mxu0 0
        %1951 = vmatprep.subr.bf16.mxu0 0
        %1952 = vmatpush1.bf16.msra.mxu0 0
        %1953 = vmatprep.subr.bf16.mxu0 0
        %1954 = vmatpush1.bf16.msra.mxu0 0
        %1955 = vmatprep.subr.bf16.mxu0 0
        %1956 = vmatpush1.bf16.msra.mxu0 0
        %1957 = vmatprep.subr.bf16.mxu0 0
        %1958 = vmatpush1.bf16.msra.mxu0 0
        %1959 = vmatprep.subr.bf16.mxu0 0
        %1960 = vmatpush1.bf16.msra.mxu0 0
        %1961 = vmatprep.mubr.bf16.mxu0 0
        %1962 = vmatmul.mubr.bf16.gmra.mrb[0].mxu0 %v1767
        %v1963 = vpop.f32.mrb[0].mxu0
        %v1964 = vadd.f32 0.0, %v1963
        %v1965 = vpop.f32.mrb[0].mxu0
        %v1966 = vadd.f32 0.0, %v1965
        %v1967 = vpop.f32.mrb[0].mxu0
        %v1968 = vpop.f32.mrb[0].mxu0
        %1969 = vdwg.mxu0
        %1970 = vmatprep.subr.bf16.mxu0 0
        %1971 = vmatpush1.bf16.msra.mxu0 %v1883
        %1972 = vmatprep.subr.bf16.mxu0 0
        %1973 = vmatpush1.bf16.msra.mxu0 %v1886
        %1974 = vmatprep.subr.bf16.mxu0 0
        %1975 = vmatpush1.bf16.msra.mxu0 %v1889
        %1976 = vmatprep.subr.bf16.mxu0 0
        %1977 = vmatpush1.bf16.msra.mxu0 %v1892
        %1978 = vmatprep.subr.bf16.mxu0 0
        %1979 = vmatpush1.bf16.msra.mxu0 %v1895
        %1980 = vmatprep.subr.bf16.mxu0 0
        %1981 = vmatpush1.bf16.msra.mxu0 %v1898
        %1982 = vmatprep.subr.bf16.mxu0 0
        %1983 = vmatpush1.bf16.msra.mxu0 %v1901
        %1984 = vmatprep.subr.bf16.mxu0 0
        %1985 = vmatpush1.bf16.msra.mxu0 %v1904
        %1986 = vmatprep.subr.bf16.mxu0 0
        %1987 = vmatpush1.bf16.msra.mxu0 0
        %1988 = vmatprep.subr.bf16.mxu0 0
        %1989 = vmatpush1.bf16.msra.mxu0 0
        %1990 = vmatprep.subr.bf16.mxu0 0
        %1991 = vmatpush1.bf16.msra.mxu0 0
        %1992 = vmatprep.subr.bf16.mxu0 0
        %1993 = vmatpush1.bf16.msra.mxu0 0
        %1994 = vmatprep.subr.bf16.mxu0 0
        %1995 = vmatpush1.bf16.msra.mxu0 0
        %1996 = vmatprep.subr.bf16.mxu0 0
        %1997 = vmatpush1.bf16.msra.mxu0 0
        %1998 = vmatprep.subr.bf16.mxu0 0
        %1999 = vmatpush1.bf16.msra.mxu0 0
        %2000 = vmatprep.subr.bf16.mxu0 0
        %2001 = vmatpush1.bf16.msra.mxu0 0
        %2002 = vmatprep.mubr.bf16.mxu0 0
        %2003 = vmatmul.mubr.bf16.gmra.mrb[0].mxu0 %v1767
        %v2004 = vpop.f32.mrb[0].mxu0
        %v2005 = vadd.f32 0.0, %v2004
        %v2006 = vpop.f32.mrb[0].mxu0
        %v2007 = vpop.f32.mrb[0].mxu0
        %v2008 = vpop.f32.mrb[0].mxu0
        %2009 = vdwg.mxu0
        %v2010 = vpack.c.bf16 %v1964, %v1964
        %v2011 = vpack.c.bf16 %v1966, %v1966
        %v2012 = vpack.c.bf16 %v2005, %v2005
        %v2014 = vsel %vm791, %v2010, 0
        %v2017 = vsel %vm791, %v2011, 0
        %2019 = vmatprep.subr.bf16.mxu0 0
        %2020 = vmatpush1.bf16.xpose.msra.mxu0 %v2017
        %2021 = vmatprep.subr.bf16.mxu0 0
        %2022 = vmatpush1.bf16.xpose.msra.mxu0 0
        %2023 = vmatprep.subr.bf16.mxu0 0
        %2024 = vmatpush1.bf16.xpose.msra.mxu0 0
        %2025 = vmatprep.subr.bf16.mxu0 0
        %2026 = vmatpush1.bf16.xpose.msra.mxu0 0
        %2027 = vmatprep.subr.bf16.mxu0 0
        %2028 = vmatpush1.bf16.xpose.msra.mxu0 0
        %2029 = vmatprep.subr.bf16.mxu0 0
        %2030 = vmatpush1.bf16.xpose.msra.mxu0 0
        %2031 = vmatprep.subr.bf16.mxu0 0
        %2032 = vmatpush1.bf16.xpose.msra.mxu0 0
        %2033 = vmatprep.subr.bf16.mxu0 0
        %2034 = vmatpush1.bf16.xpose.msra.mxu0 0
        %2035 = vmatprep.subr.bf16.mxu0 0
        %2036 = vmatpush1.bf16.xpose.msra.mxu0 0
        %2037 = vmatprep.subr.bf16.mxu0 0
        %2038 = vmatpush1.bf16.xpose.msra.mxu0 0
        %2039 = vmatprep.subr.bf16.mxu0 0
        %2040 = vmatpush1.bf16.xpose.msra.mxu0 0
        %2041 = vmatprep.subr.bf16.mxu0 0
        %2042 = vmatpush1.bf16.xpose.msra.mxu0 0
        %2043 = vmatprep.subr.bf16.mxu0 0
        %2044 = vmatpush1.bf16.xpose.msra.mxu0 0
        %2045 = vmatprep.subr.bf16.mxu0 0
        %2046 = vmatpush1.bf16.xpose.msra.mxu0 0
        %2047 = vmatprep.subr.bf16.mxu0 0
        %2048 = vmatpush1.bf16.xpose.msra.mxu0 0
        %2049 = vmatprep.subr.bf16.mxu0 0
        %2050 = vmatpush1.bf16.xpose.msra.mxu0 0
        %2051 = vmatprep.mubr.bf16.mxu0 0
        %2052 = vmatmul.mubr.bf16.gmra.mrb[0].mxu0 %v2014
        %v2053 = vpop.f32.mrb[0].mxu0
        %v2054 = vadd.f32 0.0, %v2053
        %v2055 = vpop.f32.mrb[0].mxu0
        %v2056 = vpop.f32.mrb[0].mxu0
        %v2057 = vpop.f32.mrb[0].mxu0
        %2058 = vdwg.mxu0
        %v2059 = vmul.f32 %v2054, 0.088388346
        %v2060 = vsel %vm839, %v2059, -inf
        %2061 = vmax.xlane.f32.xlu0 %v2060
        %v2062 = vpop.xlane.xlu0 %2061
        %v2063 = vsub.f32 %v2059, %v2062
        %v2064 = vmul.f32 %v2063, 1.442695
        %v2065 = vpow.pop %v2064
        %v2066 = vsel %vm839, %v2065, 0.0
        %2067 = vadd.xlane.f32.xlu0 %v2066
        %v2068 = vpop.xlane.xlu0 %2067
        %v2069 = vrcp.pop %v2068
        %v2070 = vmul.f32 %v2065, %v2069
        %v2071 = vpack.c.bf16 %v2070, %v2070
        %v2073 = vsel %vm839, %v2071, 0
        %v2076 = vsel %vm855, %v2012, 0
        %2078 = vmatprep.subr.bf16.mxu0 0
        %2079 = vmatpush1.bf16.msra.mxu0 %v2076
        %2080 = vmatprep.subr.bf16.mxu0 0
        %2081 = vmatpush1.bf16.msra.mxu0 0
        %2082 = vmatprep.subr.bf16.mxu0 0
        %2083 = vmatpush1.bf16.msra.mxu0 0
        %2084 = vmatprep.subr.bf16.mxu0 0
        %2085 = vmatpush1.bf16.msra.mxu0 0
        %2086 = vmatprep.subr.bf16.mxu0 0
        %2087 = vmatpush1.bf16.msra.mxu0 0
        %2088 = vmatprep.subr.bf16.mxu0 0
        %2089 = vmatpush1.bf16.msra.mxu0 0
        %2090 = vmatprep.subr.bf16.mxu0 0
        %2091 = vmatpush1.bf16.msra.mxu0 0
        %2092 = vmatprep.subr.bf16.mxu0 0
        %2093 = vmatpush1.bf16.msra.mxu0 0
        %2094 = vmatprep.subr.bf16.mxu0 0
        %2095 = vmatpush1.bf16.msra.mxu0 0
        %2096 = vmatprep.subr.bf16.mxu0 0
        %2097 = vmatpush1.bf16.msra.mxu0 0
        %2098 = vmatprep.subr.bf16.mxu0 0
        %2099 = vmatpush1.bf16.msra.mxu0 0
        %2100 = vmatprep.subr.bf16.mxu0 0
        %2101 = vmatpush1.bf16.msra.mxu0 0
        %2102 = vmatprep.subr.bf16.mxu0 0
        %2103 = vmatpush1.bf16.msra.mxu0 0
        %2104 = vmatprep.subr.bf16.mxu0 0
        %2105 = vmatpush1.bf16.msra.mxu0 0
        %2106 = vmatprep.subr.bf16.mxu0 0
        %2107 = vmatpush1.bf16.msra.mxu0 0
        %2108 = vmatprep.subr.bf16.mxu0 0
        %2109 = vmatpush1.bf16.msra.mxu0 0
        %2110 = vmatprep.mubr.bf16.mxu0 0
        %2111 = vmatmul.mubr.bf16.gmra.mrb[0].mxu0 %v2073
        %v2112 = vpop.f32.mrb[0].mxu0
        %v2113 = vadd.f32 0.0, %v2112
        %v2114 = vpop.f32.mrb[0].mxu0
        %v2115 = vpop.f32.mrb[0].mxu0
        %v2116 = vpop.f32.mrb[0].mxu0
        %2117 = vdwg.mxu0
        %2119 = vrot.lane.b32.xlu0 %v2010, 96
        %v2120 = vpop.permute.xlu0 %2119
        %2122 = vrot.lane.b32.xlu0 %v2011, 96
        %v2123 = vpop.permute.xlu0 %2122
        %v2125 = vsel %vm791, %v2120, 0
        %v2128 = vsel %vm791, %v2123, 0
        %2130 = vmatprep.subr.bf16.mxu0 0
        %2131 = vmatpush1.bf16.xpose.msra.mxu0 %v2128
        %2132 = vmatprep.subr.bf16.mxu0 0
        %2133 = vmatpush1.bf16.xpose.msra.mxu0 0
        %2134 = vmatprep.subr.bf16.mxu0 0
        %2135 = vmatpush1.bf16.xpose.msra.mxu0 0
        %2136 = vmatprep.subr.bf16.mxu0 0
        %2137 = vmatpush1.bf16.xpose.msra.mxu0 0
        %2138 = vmatprep.subr.bf16.mxu0 0
        %2139 = vmatpush1.bf16.xpose.msra.mxu0 0
        %2140 = vmatprep.subr.bf16.mxu0 0
        %2141 = vmatpush1.bf16.xpose.msra.mxu0 0
        %2142 = vmatprep.subr.bf16.mxu0 0
        %2143 = vmatpush1.bf16.xpose.msra.mxu0 0
        %2144 = vmatprep.subr.bf16.mxu0 0
        %2145 = vmatpush1.bf16.xpose.msra.mxu0 0
        %2146 = vmatprep.subr.bf16.mxu0 0
        %2147 = vmatpush1.bf16.xpose.msra.mxu0 0
        %2148 = vmatprep.subr.bf16.mxu0 0
        %2149 = vmatpush1.bf16.xpose.msra.mxu0 0
        %2150 = vmatprep.subr.bf16.mxu0 0
        %2151 = vmatpush1.bf16.xpose.msra.mxu0 0
        %2152 = vmatprep.subr.bf16.mxu0 0
        %2153 = vmatpush1.bf16.xpose.msra.mxu0 0
        %2154 = vmatprep.subr.bf16.mxu0 0
        %2155 = vmatpush1.bf16.xpose.msra.mxu0 0
        %2156 = vmatprep.subr.bf16.mxu0 0
        %2157 = vmatpush1.bf16.xpose.msra.mxu0 0
        %2158 = vmatprep.subr.bf16.mxu0 0
        %2159 = vmatpush1.bf16.xpose.msra.mxu0 0
        %2160 = vmatprep.subr.bf16.mxu0 0
        %2161 = vmatpush1.bf16.xpose.msra.mxu0 0
        %2162 = vmatprep.mubr.bf16.mxu0 0
        %2163 = vmatmul.mubr.bf16.gmra.mrb[0].mxu0 %v2125
        %v2164 = vpop.f32.mrb[0].mxu0
        %v2165 = vadd.f32 0.0, %v2164
        %v2166 = vpop.f32.mrb[0].mxu0
        %v2167 = vpop.f32.mrb[0].mxu0
        %v2168 = vpop.f32.mrb[0].mxu0
        %2169 = vdwg.mxu0
        %v2170 = vmul.f32 %v2165, 0.088388346
        %v2171 = vsel %vm839, %v2170, -inf
        %2172 = vmax.xlane.f32.xlu0 %v2171
        %v2173 = vpop.xlane.xlu0 %2172
        %v2174 = vsub.f32 %v2170, %v2173
        %v2175 = vmul.f32 %v2174, 1.442695
        %v2176 = vpow.pop %v2175
        %v2177 = vsel %vm839, %v2176, 0.0
        %2178 = vadd.xlane.f32.xlu0 %v2177
        %v2179 = vpop.xlane.xlu0 %2178
        %v2180 = vrcp.pop %v2179
        %v2181 = vmul.f32 %v2176, %v2180
        %v2182 = vpack.c.bf16 %v2181, %v2181
        %2184 = vrot.lane.b32.xlu0 %v2012, 96
        %v2185 = vpop.permute.xlu0 %2184
        %v2187 = vsel %vm839, %v2182, 0
        %v2190 = vsel %vm855, %v2185, 0
        %2192 = vmatprep.subr.bf16.mxu0 0
        %2193 = vmatpush1.bf16.msra.mxu0 %v2190
        %2194 = vmatprep.subr.bf16.mxu0 0
        %2195 = vmatpush1.bf16.msra.mxu0 0
        %2196 = vmatprep.subr.bf16.mxu0 0
        %2197 = vmatpush1.bf16.msra.mxu0 0
        %2198 = vmatprep.subr.bf16.mxu0 0
        %2199 = vmatpush1.bf16.msra.mxu0 0
        %2200 = vmatprep.subr.bf16.mxu0 0
        %2201 = vmatpush1.bf16.msra.mxu0 0
        %2202 = vmatprep.subr.bf16.mxu0 0
        %2203 = vmatpush1.bf16.msra.mxu0 0
        %2204 = vmatprep.subr.bf16.mxu0 0
        %2205 = vmatpush1.bf16.msra.mxu0 0
        %2206 = vmatprep.subr.bf16.mxu0 0
        %2207 = vmatpush1.bf16.msra.mxu0 0
        %2208 = vmatprep.subr.bf16.mxu0 0
        %2209 = vmatpush1.bf16.msra.mxu0 0
        %2210 = vmatprep.subr.bf16.mxu0 0
        %2211 = vmatpush1.bf16.msra.mxu0 0
        %2212 = vmatprep.subr.bf16.mxu0 0
        %2213 = vmatpush1.bf16.msra.mxu0 0
        %2214 = vmatprep.subr.bf16.mxu0 0
        %2215 = vmatpush1.bf16.msra.mxu0 0
        %2216 = vmatprep.subr.bf16.mxu0 0
        %2217 = vmatpush1.bf16.msra.mxu0 0
        %2218 = vmatprep.subr.bf16.mxu0 0
        %2219 = vmatpush1.bf16.msra.mxu0 0
        %2220 = vmatprep.subr.bf16.mxu0 0
        %2221 = vmatpush1.bf16.msra.mxu0 0
        %2222 = vmatprep.subr.bf16.mxu0 0
        %2223 = vmatpush1.bf16.msra.mxu0 0
        %2224 = vmatprep.mubr.bf16.mxu0 0
        %2225 = vmatmul.mubr.bf16.gmra.mrb[0].mxu0 %v2187
        %v2226 = vpop.f32.mrb[0].mxu0
        %v2227 = vadd.f32 0.0, %v2226
        %v2228 = vpop.f32.mrb[0].mxu0
        %v2229 = vpop.f32.mrb[0].mxu0
        %v2230 = vpop.f32.mrb[0].mxu0
        %2231 = vdwg.mxu0
        %2232 = vrot.lane.b32.xlu0 %v2010, 64
        %v2233 = vpop.permute.xlu0 %2232
        %2234 = vrot.lane.b32.xlu0 %v2011, 64
        %v2235 = vpop.permute.xlu0 %2234
        %v2237 = vsel %vm791, %v2233, 0
        %v2240 = vsel %vm791, %v2235, 0
        %2242 = vmatprep.subr.bf16.mxu0 0
        %2243 = vmatpush1.bf16.xpose.msra.mxu0 %v2240
        %2244 = vmatprep.subr.bf16.mxu0 0
        %2245 = vmatpush1.bf16.xpose.msra.mxu0 0
        %2246 = vmatprep.subr.bf16.mxu0 0
        %2247 = vmatpush1.bf16.xpose.msra.mxu0 0
        %2248 = vmatprep.subr.bf16.mxu0 0
        %2249 = vmatpush1.bf16.xpose.msra.mxu0 0
        %2250 = vmatprep.subr.bf16.mxu0 0
        %2251 = vmatpush1.bf16.xpose.msra.mxu0 0
        %2252 = vmatprep.subr.bf16.mxu0 0
        %2253 = vmatpush1.bf16.xpose.msra.mxu0 0
        %2254 = vmatprep.subr.bf16.mxu0 0
        %2255 = vmatpush1.bf16.xpose.msra.mxu0 0
        %2256 = vmatprep.subr.bf16.mxu0 0
        %2257 = vmatpush1.bf16.xpose.msra.mxu0 0
        %2258 = vmatprep.subr.bf16.mxu0 0
        %2259 = vmatpush1.bf16.xpose.msra.mxu0 0
        %2260 = vmatprep.subr.bf16.mxu0 0
        %2261 = vmatpush1.bf16.xpose.msra.mxu0 0
        %2262 = vmatprep.subr.bf16.mxu0 0
        %2263 = vmatpush1.bf16.xpose.msra.mxu0 0
        %2264 = vmatprep.subr.bf16.mxu0 0
        %2265 = vmatpush1.bf16.xpose.msra.mxu0 0
        %2266 = vmatprep.subr.bf16.mxu0 0
        %2267 = vmatpush1.bf16.xpose.msra.mxu0 0
        %2268 = vmatprep.subr.bf16.mxu0 0
        %2269 = vmatpush1.bf16.xpose.msra.mxu0 0
        %2270 = vmatprep.subr.bf16.mxu0 0
        %2271 = vmatpush1.bf16.xpose.msra.mxu0 0
        %2272 = vmatprep.subr.bf16.mxu0 0
        %2273 = vmatpush1.bf16.xpose.msra.mxu0 0
        %2274 = vmatprep.mubr.bf16.mxu0 0
        %2275 = vmatmul.mubr.bf16.gmra.mrb[0].mxu0 %v2237
        %v2276 = vpop.f32.mrb[0].mxu0
        %v2277 = vadd.f32 0.0, %v2276
        %v2278 = vpop.f32.mrb[0].mxu0
        %v2279 = vpop.f32.mrb[0].mxu0
        %v2280 = vpop.f32.mrb[0].mxu0
        %2281 = vdwg.mxu0
        %v2282 = vmul.f32 %v2277, 0.088388346
        %v2283 = vsel %vm839, %v2282, -inf
        %2284 = vmax.xlane.f32.xlu0 %v2283
        %v2285 = vpop.xlane.xlu0 %2284
        %v2286 = vsub.f32 %v2282, %v2285
        %v2287 = vmul.f32 %v2286, 1.442695
        %v2288 = vpow.pop %v2287
        %v2289 = vsel %vm839, %v2288, 0.0
        %2290 = vadd.xlane.f32.xlu0 %v2289
        %v2291 = vpop.xlane.xlu0 %2290
        %v2292 = vrcp.pop %v2291
        %v2293 = vmul.f32 %v2288, %v2292
        %v2294 = vpack.c.bf16 %v2293, %v2293
        %2295 = vrot.lane.b32.xlu0 %v2012, 64
        %v2296 = vpop.permute.xlu0 %2295
        %v2298 = vsel %vm839, %v2294, 0
        %v2301 = vsel %vm855, %v2296, 0
        %2303 = vmatprep.subr.bf16.mxu0 0
        %2304 = vmatpush1.bf16.msra.mxu0 %v2301
        %2305 = vmatprep.subr.bf16.mxu0 0
        %2306 = vmatpush1.bf16.msra.mxu0 0
        %2307 = vmatprep.subr.bf16.mxu0 0
        %2308 = vmatpush1.bf16.msra.mxu0 0
        %2309 = vmatprep.subr.bf16.mxu0 0
        %2310 = vmatpush1.bf16.msra.mxu0 0
        %2311 = vmatprep.subr.bf16.mxu0 0
        %2312 = vmatpush1.bf16.msra.mxu0 0
        %2313 = vmatprep.subr.bf16.mxu0 0
        %2314 = vmatpush1.bf16.msra.mxu0 0
        %2315 = vmatprep.subr.bf16.mxu0 0
        %2316 = vmatpush1.bf16.msra.mxu0 0
        %2317 = vmatprep.subr.bf16.mxu0 0
        %2318 = vmatpush1.bf16.msra.mxu0 0
        %2319 = vmatprep.subr.bf16.mxu0 0
        %2320 = vmatpush1.bf16.msra.mxu0 0
        %2321 = vmatprep.subr.bf16.mxu0 0
        %2322 = vmatpush1.bf16.msra.mxu0 0
        %2323 = vmatprep.subr.bf16.mxu0 0
        %2324 = vmatpush1.bf16.msra.mxu0 0
        %2325 = vmatprep.subr.bf16.mxu0 0
        %2326 = vmatpush1.bf16.msra.mxu0 0
        %2327 = vmatprep.subr.bf16.mxu0 0
        %2328 = vmatpush1.bf16.msra.mxu0 0
        %2329 = vmatprep.subr.bf16.mxu0 0
        %2330 = vmatpush1.bf16.msra.mxu0 0
        %2331 = vmatprep.subr.bf16.mxu0 0
        %2332 = vmatpush1.bf16.msra.mxu0 0
        %2333 = vmatprep.subr.bf16.mxu0 0
        %2334 = vmatpush1.bf16.msra.mxu0 0
        %2335 = vmatprep.mubr.bf16.mxu0 0
        %2336 = vmatmul.mubr.bf16.gmra.mrb[0].mxu0 %v2298
        %v2337 = vpop.f32.mrb[0].mxu0
        %v2338 = vadd.f32 0.0, %v2337
        %v2339 = vpop.f32.mrb[0].mxu0
        %v2340 = vpop.f32.mrb[0].mxu0
        %v2341 = vpop.f32.mrb[0].mxu0
        %2342 = vdwg.mxu0
        %2343 = vrot.lane.b32.xlu0 %v2010, 32
        %v2344 = vpop.permute.xlu0 %2343
        %2345 = vrot.lane.b32.xlu0 %v2011, 32
        %v2346 = vpop.permute.xlu0 %2345
        %v2348 = vsel %vm791, %v2344, 0
        %v2351 = vsel %vm791, %v2346, 0
        %2353 = vmatprep.subr.bf16.mxu0 0
        %2354 = vmatpush1.bf16.xpose.msra.mxu0 %v2351
        %2355 = vmatprep.subr.bf16.mxu0 0
        %2356 = vmatpush1.bf16.xpose.msra.mxu0 0
        %2357 = vmatprep.subr.bf16.mxu0 0
        %2358 = vmatpush1.bf16.xpose.msra.mxu0 0
        %2359 = vmatprep.subr.bf16.mxu0 0
        %2360 = vmatpush1.bf16.xpose.msra.mxu0 0
        %2361 = vmatprep.subr.bf16.mxu0 0
        %2362 = vmatpush1.bf16.xpose.msra.mxu0 0
        %2363 = vmatprep.subr.bf16.mxu0 0
        %2364 = vmatpush1.bf16.xpose.msra.mxu0 0
        %2365 = vmatprep.subr.bf16.mxu0 0
        %2366 = vmatpush1.bf16.xpose.msra.mxu0 0
        %2367 = vmatprep.subr.bf16.mxu0 0
        %2368 = vmatpush1.bf16.xpose.msra.mxu0 0
        %2369 = vmatprep.subr.bf16.mxu0 0
        %2370 = vmatpush1.bf16.xpose.msra.mxu0 0
        %2371 = vmatprep.subr.bf16.mxu0 0
        %2372 = vmatpush1.bf16.xpose.msra.mxu0 0
        %2373 = vmatprep.subr.bf16.mxu0 0
        %2374 = vmatpush1.bf16.xpose.msra.mxu0 0
        %2375 = vmatprep.subr.bf16.mxu0 0
        %2376 = vmatpush1.bf16.xpose.msra.mxu0 0
        %2377 = vmatprep.subr.bf16.mxu0 0
        %2378 = vmatpush1.bf16.xpose.msra.mxu0 0
        %2379 = vmatprep.subr.bf16.mxu0 0
        %2380 = vmatpush1.bf16.xpose.msra.mxu0 0
        %2381 = vmatprep.subr.bf16.mxu0 0
        %2382 = vmatpush1.bf16.xpose.msra.mxu0 0
        %2383 = vmatprep.subr.bf16.mxu0 0
        %2384 = vmatpush1.bf16.xpose.msra.mxu0 0
        %2385 = vmatprep.mubr.bf16.mxu0 0
        %2386 = vmatmul.mubr.bf16.gmra.mrb[0].mxu0 %v2348
        %v2387 = vpop.f32.mrb[0].mxu0
        %v2388 = vadd.f32 0.0, %v2387
        %v2389 = vpop.f32.mrb[0].mxu0
        %v2390 = vpop.f32.mrb[0].mxu0
        %v2391 = vpop.f32.mrb[0].mxu0
        %2392 = vdwg.mxu0
        %v2393 = vmul.f32 %v2388, 0.088388346
        %v2394 = vsel %vm839, %v2393, -inf
        %2395 = vmax.xlane.f32.xlu0 %v2394
        %v2396 = vpop.xlane.xlu0 %2395
        %v2397 = vsub.f32 %v2393, %v2396
        %v2398 = vmul.f32 %v2397, 1.442695
        %v2399 = vpow.pop %v2398
        %v2400 = vsel %vm839, %v2399, 0.0
        %2401 = vadd.xlane.f32.xlu0 %v2400
        %v2402 = vpop.xlane.xlu0 %2401
        %v2403 = vrcp.pop %v2402
        %v2404 = vmul.f32 %v2399, %v2403
        %v2405 = vpack.c.bf16 %v2404, %v2404
        %2406 = vrot.lane.b32.xlu0 %v2012, 32
        %v2407 = vpop.permute.xlu0 %2406
        %v2409 = vsel %vm839, %v2405, 0
        %v2412 = vsel %vm855, %v2407, 0
        %2414 = vmatprep.subr.bf16.mxu0 0
        %2415 = vmatpush1.bf16.msra.mxu0 %v2412
        %2416 = vmatprep.subr.bf16.mxu0 0
        %2417 = vmatpush1.bf16.msra.mxu0 0
        %2418 = vmatprep.subr.bf16.mxu0 0
        %2419 = vmatpush1.bf16.msra.mxu0 0
        %2420 = vmatprep.subr.bf16.mxu0 0
        %2421 = vmatpush1.bf16.msra.mxu0 0
        %2422 = vmatprep.subr.bf16.mxu0 0
        %2423 = vmatpush1.bf16.msra.mxu0 0
        %2424 = vmatprep.subr.bf16.mxu0 0
        %2425 = vmatpush1.bf16.msra.mxu0 0
        %2426 = vmatprep.subr.bf16.mxu0 0
        %2427 = vmatpush1.bf16.msra.mxu0 0
        %2428 = vmatprep.subr.bf16.mxu0 0
        %2429 = vmatpush1.bf16.msra.mxu0 0
        %2430 = vmatprep.subr.bf16.mxu0 0
        %2431 = vmatpush1.bf16.msra.mxu0 0
        %2432 = vmatprep.subr.bf16.mxu0 0
        %2433 = vmatpush1.bf16.msra.mxu0 0
        %2434 = vmatprep.subr.bf16.mxu0 0
        %2435 = vmatpush1.bf16.msra.mxu0 0
        %2436 = vmatprep.subr.bf16.mxu0 0
        %2437 = vmatpush1.bf16.msra.mxu0 0
        %2438 = vmatprep.subr.bf16.mxu0 0
        %2439 = vmatpush1.bf16.msra.mxu0 0
        %2440 = vmatprep.subr.bf16.mxu0 0
        %2441 = vmatpush1.bf16.msra.mxu0 0
        %2442 = vmatprep.subr.bf16.mxu0 0
        %2443 = vmatpush1.bf16.msra.mxu0 0
        %2444 = vmatprep.subr.bf16.mxu0 0
        %2445 = vmatpush1.bf16.msra.mxu0 0
        %2446 = vmatprep.mubr.bf16.mxu0 0
        %2447 = vmatmul.mubr.bf16.gmra.mrb[0].mxu0 %v2409
        %v2448 = vpop.f32.mrb[0].mxu0
        %v2449 = vadd.f32 0.0, %v2448
        %v2450 = vpop.f32.mrb[0].mxu0
        %v2451 = vpop.f32.mrb[0].mxu0
        %v2452 = vpop.f32.mrb[0].mxu0
        %2453 = vdwg.mxu0
        %2455 = vrot.lane.b32.xlu0 %v2227, 32
        %v2456 = vpop.permute.xlu0 %2455
        %2459 = vrot.lane.b32.xlu0 %v2338, 64
        %v2460 = vpop.permute.xlu0 %2459
        %2463 = vrot.lane.b32.xlu0 %v2449, 96
        %v2464 = vpop.permute.xlu0 %2463
        %v2466 = vsel %vm791, %v2113, %v2456
        %v2467 = vsel %vm1248, %v2466, %v2460
        %v2468 = vsel %vm1250, %v2467, %v2464
        %v2469 = vpack.c.bf16 %v2468, %v2468
        %s2470 = scalar_lea.vmem [#allocation7], 64
        %v2471 = vld [vmem:[%s2470] sm:$0xf]
        %v2472 = vld [vmem:[%s2470 + $0x4] sm:$0xf]
        %v2473 = vld [vmem:[%s2470 + $0x8] sm:$0xf]
        %v2474 = vld [vmem:[%s2470 + $0xc] sm:$0xf]
        %v2475 = vld [vmem:[%s2470 + $0x10] sm:$0xf]
        %v2476 = vld [vmem:[%s2470 + $0x14] sm:$0xf]
        %v2477 = vld [vmem:[%s2470 + $0x18] sm:$0xf]
        %v2478 = vld [vmem:[%s2470 + $0x1c] sm:$0xf]
        %v2479 = vld [vmem:[%s2470 + $0x20] sm:$0xf]
        %v2480 = vld [vmem:[%s2470 + $0x24] sm:$0xf]
        %v2481 = vld [vmem:[%s2470 + $0x28] sm:$0xf]
        %v2482 = vld [vmem:[%s2470 + $0x2c] sm:$0xf]
        %v2483 = vld [vmem:[%s2470 + $0x30] sm:$0xf]
        %v2484 = vld [vmem:[%s2470 + $0x34] sm:$0xf]
        %v2485 = vld [vmem:[%s2470 + $0x38] sm:$0xf]
        %v2486 = vld [vmem:[%s2470 + $0x3c] sm:$0xf]
        %s2487 = scalar_lea.vmem %s5, 1
        %v2488 = vld [vmem:[%s2487] sm:$0x1]
        %v2490 = vlaneseq
        %v2491 = vshrl.u32 %v2490, 7
        %v2492 = vsub.s32 0, %v2491
        %v2493 = vrot.slane %v2488, %v2492
        %v2511 = vunpack.c.l.b16 %v2471
        %v2512 = vunpack.c.l.b16 %v2472
        %v2513 = vunpack.c.l.b16 %v2473
        %v2514 = vunpack.c.l.b16 %v2474
        %v2515 = vunpack.c.l.b16 %v2475
        %v2516 = vunpack.c.l.b16 %v2476
        %v2517 = vunpack.c.l.b16 %v2477
        %v2518 = vunpack.c.l.b16 %v2478
        %v2519 = vunpack.c.l.b16 %v2479
        %v2520 = vunpack.c.l.b16 %v2480
        %v2521 = vunpack.c.l.b16 %v2481
        %v2522 = vunpack.c.l.b16 %v2482
        %v2523 = vunpack.c.l.b16 %v2483
        %v2524 = vunpack.c.l.b16 %v2484
        %v2525 = vunpack.c.l.b16 %v2485
        %v2526 = vunpack.c.l.b16 %v2486
        %v2527 = vpack.c.b16 %v2512, %v2511
        %v2528 = vpack.c.b16 %v2514, %v2513
        %v2529 = vpack.c.b16 %v2516, %v2515
        %v2530 = vpack.c.b16 %v2518, %v2517
        %v2531 = vpack.c.b16 %v2520, %v2519
        %v2532 = vpack.c.b16 %v2522, %v2521
        %v2533 = vpack.c.b16 %v2524, %v2523
        %v2534 = vpack.c.b16 %v2526, %v2525
        %2543 = vmatprep.subr.bf16.mxu0 0
        %2544 = vmatpush1.bf16.msra.mxu0 %v2527
        %2545 = vmatprep.subr.bf16.mxu0 0
        %2546 = vmatpush1.bf16.msra.mxu0 %v2528
        %2547 = vmatprep.subr.bf16.mxu0 0
        %2548 = vmatpush1.bf16.msra.mxu0 %v2529
        %2549 = vmatprep.subr.bf16.mxu0 0
        %2550 = vmatpush1.bf16.msra.mxu0 %v2530
        %2551 = vmatprep.subr.bf16.mxu0 0
        %2552 = vmatpush1.bf16.msra.mxu0 %v2531
        %2553 = vmatprep.subr.bf16.mxu0 0
        %2554 = vmatpush1.bf16.msra.mxu0 %v2532
        %2555 = vmatprep.subr.bf16.mxu0 0
        %2556 = vmatpush1.bf16.msra.mxu0 %v2533
        %2557 = vmatprep.subr.bf16.mxu0 0
        %2558 = vmatpush1.bf16.msra.mxu0 %v2534
        %2559 = vmatprep.subr.bf16.mxu0 0
        %2560 = vmatpush1.bf16.msra.mxu0 0
        %2561 = vmatprep.subr.bf16.mxu0 0
        %2562 = vmatpush1.bf16.msra.mxu0 0
        %2563 = vmatprep.subr.bf16.mxu0 0
        %2564 = vmatpush1.bf16.msra.mxu0 0
        %2565 = vmatprep.subr.bf16.mxu0 0
        %2566 = vmatpush1.bf16.msra.mxu0 0
        %2567 = vmatprep.subr.bf16.mxu0 0
        %2568 = vmatpush1.bf16.msra.mxu0 0
        %2569 = vmatprep.subr.bf16.mxu0 0
        %2570 = vmatpush1.bf16.msra.mxu0 0
        %2571 = vmatprep.subr.bf16.mxu0 0
        %2572 = vmatpush1.bf16.msra.mxu0 0
        %2573 = vmatprep.subr.bf16.mxu0 0
        %2574 = vmatpush1.bf16.msra.mxu0 0
        %2575 = vmatprep.mubr.bf16.mxu0 0
        %2576 = vmatmul.mubr.bf16.gmra.mrb[0].mxu0 %v2469
        %v2577 = vpop.f32.mrb[0].mxu0
        %v2578 = vadd.f32 %v2493, %v2577
        %v2579 = vpop.f32.mrb[0].mxu0
        %v2580 = vpop.f32.mrb[0].mxu0
        %v2581 = vpop.f32.mrb[0].mxu0
        %2582 = vdwg.mxu0
        %v2583 = vadd.f32 %v1737, %v2578
        %s2584 = scalar_lea.vmem %s6, 1
        %v2585 = vld [vmem:[%s2584] sm:$0x1]
        %s2586 = scalar_lea.vmem %s7, 1
        %v2587 = vld [vmem:[%s2586] sm:$0x1]
        %2588 = vadd.xlane.f32.xlu0 %v2583
        %v2589 = vpop.xlane.xlu0 %2588
        %v2590 = vmul.f32 %v2589, %v522
        %v2591 = vsub.f32 %v2583, %v2590
        %v2592 = vmul.f32 %v2591, %v2591
        %2593 = vadd.xlane.f32.xlu0 %v2592
        %v2594 = vpop.xlane.xlu0 %2593
        %v2595 = vmul.f32 %v2594, %v522
        %v2596 = vadd.f32 %v2595, 1e-05
        %v2597 = vrsqrt.pop %v2596
        %v2598 = vmul.f32 %v2591, %v2597
        %v2600 = vlaneseq
        %v2601 = vshrl.u32 %v2600, 7
        %v2602 = vsub.s32 0, %v2601
        %v2603 = vrot.slane %v2585, %v2602
        %v2605 = vmul.f32 %v2598, %v2603
        %v2607 = vlaneseq
        %v2608 = vshrl.u32 %v2607, 7
        %v2609 = vsub.s32 0, %v2608
        %v2610 = vrot.slane %v2587, %v2609
        %v2612 = vadd.f32 %v2605, %v2610
        %v2613 = vpack.c.bf16 %v2612, %v2612
        %s2614 = scalar_lea.vmem [#allocation8], 128
        %v2615 = vld [vmem:[%s2614] sm:$0xff]
        %v2616 = vld [vmem:[%s2614 + $0x8] sm:$0xff]
        %v2617 = vld [vmem:[%s2614 + $0x10] sm:$0xff]
        %v2618 = vld [vmem:[%s2614 + $0x18] sm:$0xff]
        %v2619 = vld [vmem:[%s2614 + $0x20] sm:$0xff]
        %v2620 = vld [vmem:[%s2614 + $0x28] sm:$0xff]
        %v2621 = vld [vmem:[%s2614 + $0x30] sm:$0xff]
        %v2622 = vld [vmem:[%s2614 + $0x38] sm:$0xff]
        %v2623 = vld [vmem:[%s2614 + $0x40] sm:$0xff]
        %v2624 = vld [vmem:[%s2614 + $0x48] sm:$0xff]
        %v2625 = vld [vmem:[%s2614 + $0x50] sm:$0xff]
        %v2626 = vld [vmem:[%s2614 + $0x58] sm:$0xff]
        %v2627 = vld [vmem:[%s2614 + $0x60] sm:$0xff]
        %v2628 = vld [vmem:[%s2614 + $0x68] sm:$0xff]
        %v2629 = vld [vmem:[%s2614 + $0x70] sm:$0xff]
        %v2630 = vld [vmem:[%s2614 + $0x78] sm:$0xff]
        %s2631 = scalar_lea.vmem [#allocation10], 2
        %v2632 = vld [vmem:[%s2631] sm:$0x3]
        %v2634 = vlaneseq
        %v2635 = vshrl.u32 %v2634, 7
        %v2636 = vsub.s32 0, %v2635
        %v2637 = vrot.slane %v2632, %v2636
        %v2638 = vlaneseq
        %v2639 = vshrl.u32 %v2638, 7
        %v2640 = vsub.s32 1, %v2639
        %v2641 = vrot.slane %v2632, %v2640
        %v2660 = vunpack.c.l.b16 %v2615
        %v2661 = vunpack.c.h.b16 %v2615
        %v2662 = vunpack.c.l.b16 %v2616
        %v2663 = vunpack.c.h.b16 %v2616
        %v2664 = vunpack.c.l.b16 %v2617
        %v2665 = vunpack.c.h.b16 %v2617
        %v2666 = vunpack.c.l.b16 %v2618
        %v2667 = vunpack.c.h.b16 %v2618
        %v2668 = vunpack.c.l.b16 %v2619
        %v2669 = vunpack.c.h.b16 %v2619
        %v2670 = vunpack.c.l.b16 %v2620
        %v2671 = vunpack.c.h.b16 %v2620
        %v2672 = vunpack.c.l.b16 %v2621
        %v2673 = vunpack.c.h.b16 %v2621
        %v2674 = vunpack.c.l.b16 %v2622
        %v2675 = vunpack.c.h.b16 %v2622
        %v2676 = vunpack.c.l.b16 %v2623
        %v2677 = vunpack.c.h.b16 %v2623
        %v2678 = vunpack.c.l.b16 %v2624
        %v2679 = vunpack.c.h.b16 %v2624
        %v2680 = vunpack.c.l.b16 %v2625
        %v2681 = vunpack.c.h.b16 %v2625
        %v2682 = vunpack.c.l.b16 %v2626
        %v2683 = vunpack.c.h.b16 %v2626
        %v2684 = vunpack.c.l.b16 %v2627
        %v2685 = vunpack.c.h.b16 %v2627
        %v2686 = vunpack.c.l.b16 %v2628
        %v2687 = vunpack.c.h.b16 %v2628
        %v2688 = vunpack.c.l.b16 %v2629
        %v2689 = vunpack.c.h.b16 %v2629
        %v2690 = vunpack.c.l.b16 %v2630
        %v2691 = vunpack.c.h.b16 %v2630
        %v2692 = vpack.c.b16 %v2662, %v2660
        %v2693 = vpack.c.b16 %v2663, %v2661
        %v2694 = vpack.c.b16 %v2666, %v2664
        %v2695 = vpack.c.b16 %v2667, %v2665
        %v2696 = vpack.c.b16 %v2670, %v2668
        %v2697 = vpack.c.b16 %v2671, %v2669
        %v2698 = vpack.c.b16 %v2674, %v2672
        %v2699 = vpack.c.b16 %v2675, %v2673
        %v2700 = vpack.c.b16 %v2678, %v2676
        %v2701 = vpack.c.b16 %v2679, %v2677
        %v2702 = vpack.c.b16 %v2682, %v2680
        %v2703 = vpack.c.b16 %v2683, %v2681
        %v2704 = vpack.c.b16 %v2686, %v2684
        %v2705 = vpack.c.b16 %v2687, %v2685
        %v2706 = vpack.c.b16 %v2690, %v2688
        %v2707 = vpack.c.b16 %v2691, %v2689
        %2724 = vmatprep.subr.bf16.mxu0 %v2693
        %2725 = vmatpush1.bf16.msra.mxu0 %v2692
        %2726 = vmatprep.subr.bf16.mxu0 %v2695
        %2727 = vmatpush1.bf16.msra.mxu0 %v2694
        %2728 = vmatprep.subr.bf16.mxu0 %v2697
        %2729 = vmatpush1.bf16.msra.mxu0 %v2696
        %2730 = vmatprep.subr.bf16.mxu0 %v2699
        %2731 = vmatpush1.bf16.msra.mxu0 %v2698
        %2732 = vmatprep.subr.bf16.mxu0 %v2701
        %2733 = vmatpush1.bf16.msra.mxu0 %v2700
        %2734 = vmatprep.subr.bf16.mxu0 %v2703
        %2735 = vmatpush1.bf16.msra.mxu0 %v2702
        %2736 = vmatprep.subr.bf16.mxu0 %v2705
        %2737 = vmatpush1.bf16.msra.mxu0 %v2704
        %2738 = vmatprep.subr.bf16.mxu0 %v2707
        %2739 = vmatpush1.bf16.msra.mxu0 %v2706
        %2740 = vmatprep.subr.bf16.mxu0 0
        %2741 = vmatpush1.bf16.msra.mxu0 0
        %2742 = vmatprep.subr.bf16.mxu0 0
        %2743 = vmatpush1.bf16.msra.mxu0 0
        %2744 = vmatprep.subr.bf16.mxu0 0
        %2745 = vmatpush1.bf16.msra.mxu0 0
        %2746 = vmatprep.subr.bf16.mxu0 0
        %2747 = vmatpush1.bf16.msra.mxu0 0
        %2748 = vmatprep.subr.bf16.mxu0 0
        %2749 = vmatpush1.bf16.msra.mxu0 0
        %2750 = vmatprep.subr.bf16.mxu0 0
        %2751 = vmatpush1.bf16.msra.mxu0 0
        %2752 = vmatprep.subr.bf16.mxu0 0
        %2753 = vmatpush1.bf16.msra.mxu0 0
        %2754 = vmatprep.subr.bf16.mxu0 0
        %2755 = vmatpush1.bf16.msra.mxu0 0
        %2756 = vmatprep.mubr.bf16.mxu0 0
        %2757 = vmatmul.mubr.bf16.gmra.mrb[0].mxu0 %v2613
        %v2758 = vpop.f32.mrb[0].mxu0
        %v2759 = vadd.f32 %v2637, %v2758
        %v2760 = vpop.f32.mrb[0].mxu0
        %v2761 = vadd.f32 %v2641, %v2760
        %v2762 = vpop.f32.mrb[0].mxu0
        %v2763 = vpop.f32.mrb[0].mxu0
        %2764 = vdwg.mxu0
        %v2765 = vmul.f32 %v2759, 0.5
        %v2766 = vmul.f32 %v2761, 0.5
        %v2767 = vmul.f32 %v2759, 0.044715
        %v2768 = vmul.f32 %v2761, 0.044715
        %v2769 = vmul.f32 %v2767, %v2759
        %v2770 = vmul.f32 %v2768, %v2761
        %v2771 = vmul.f32 %v2769, %v2759
        %v2772 = vmul.f32 %v2770, %v2761
        %v2773 = vadd.f32 %v2759, %v2771
        %v2774 = vadd.f32 %v2761, %v2772
        %v2775 = vmul.f32 %v2773, 0.7978846
        %v2776 = vmul.f32 %v2774, 0.7978846
        %v2777 = vtanh.pop %v2775
        %v2778 = vtanh.pop %v2776
        %v2779 = vadd.f32 %v2777, 1.0
        %v2780 = vadd.f32 %v2778, 1.0
        %v2781 = vmul.f32 %v2765, %v2779
        %v2782 = vmul.f32 %v2766, %v2780
        %v2783 = vpack.c.bf16 %v2781, %v2781
        %v2784 = vpack.c.bf16 %v2782, %v2782
        %s2785 = scalar_lea.vmem [#allocation11], 128
        %v2786 = vld [vmem:[%s2785] sm:$0xf]
        %v2787 = vld [vmem:[%s2785 + $0x4] sm:$0xf]
        %v2788 = vld [vmem:[%s2785 + $0x8] sm:$0xf]
        %v2789 = vld [vmem:[%s2785 + $0xc] sm:$0xf]
        %v2790 = vld [vmem:[%s2785 + $0x10] sm:$0xf]
        %v2791 = vld [vmem:[%s2785 + $0x14] sm:$0xf]
        %v2792 = vld [vmem:[%s2785 + $0x18] sm:$0xf]
        %v2793 = vld [vmem:[%s2785 + $0x1c] sm:$0xf]
        %v2794 = vld [vmem:[%s2785 + $0x20] sm:$0xf]
        %v2795 = vld [vmem:[%s2785 + $0x24] sm:$0xf]
        %v2796 = vld [vmem:[%s2785 + $0x28] sm:$0xf]
        %v2797 = vld [vmem:[%s2785 + $0x2c] sm:$0xf]
        %v2798 = vld [vmem:[%s2785 + $0x30] sm:$0xf]
        %v2799 = vld [vmem:[%s2785 + $0x34] sm:$0xf]
        %v2800 = vld [vmem:[%s2785 + $0x38] sm:$0xf]
        %v2801 = vld [vmem:[%s2785 + $0x3c] sm:$0xf]
        %v2802 = vld [vmem:[%s2785 + $0x40] sm:$0xf]
        %v2803 = vld [vmem:[%s2785 + $0x44] sm:$0xf]
        %v2804 = vld [vmem:[%s2785 + $0x48] sm:$0xf]
        %v2805 = vld [vmem:[%s2785 + $0x4c] sm:$0xf]
        %v2806 = vld [vmem:[%s2785 + $0x50] sm:$0xf]
        %v2807 = vld [vmem:[%s2785 + $0x54] sm:$0xf]
        %v2808 = vld [vmem:[%s2785 + $0x58] sm:$0xf]
        %v2809 = vld [vmem:[%s2785 + $0x5c] sm:$0xf]
        %v2810 = vld [vmem:[%s2785 + $0x60] sm:$0xf]
        %v2811 = vld [vmem:[%s2785 + $0x64] sm:$0xf]
        %v2812 = vld [vmem:[%s2785 + $0x68] sm:$0xf]
        %v2813 = vld [vmem:[%s2785 + $0x6c] sm:$0xf]
        %v2814 = vld [vmem:[%s2785 + $0x70] sm:$0xf]
        %v2815 = vld [vmem:[%s2785 + $0x74] sm:$0xf]
        %v2816 = vld [vmem:[%s2785 + $0x78] sm:$0xf]
        %v2817 = vld [vmem:[%s2785 + $0x7c] sm:$0xf]
        %s2818 = scalar_lea.vmem [#allocation13], 1
        %v2819 = vld [vmem:[%s2818] sm:$0x1]
        %v2821 = vlaneseq
        %v2822 = vshrl.u32 %v2821, 7
        %v2823 = vsub.s32 0, %v2822
        %v2824 = vrot.slane %v2819, %v2823
        %v2858 = vunpack.c.l.b16 %v2786
        %v2859 = vunpack.c.l.b16 %v2787
        %v2860 = vunpack.c.l.b16 %v2788
        %v2861 = vunpack.c.l.b16 %v2789
        %v2862 = vunpack.c.l.b16 %v2790
        %v2863 = vunpack.c.l.b16 %v2791
        %v2864 = vunpack.c.l.b16 %v2792
        %v2865 = vunpack.c.l.b16 %v2793
        %v2866 = vunpack.c.l.b16 %v2794
        %v2867 = vunpack.c.l.b16 %v2795
        %v2868 = vunpack.c.l.b16 %v2796
        %v2869 = vunpack.c.l.b16 %v2797
        %v2870 = vunpack.c.l.b16 %v2798
        %v2871 = vunpack.c.l.b16 %v2799
        %v2872 = vunpack.c.l.b16 %v2800
        %v2873 = vunpack.c.l.b16 %v2801
        %v2874 = vunpack.c.l.b16 %v2802
        %v2875 = vunpack.c.l.b16 %v2803
        %v2876 = vunpack.c.l.b16 %v2804
        %v2877 = vunpack.c.l.b16 %v2805
        %v2878 = vunpack.c.l.b16 %v2806
        %v2879 = vunpack.c.l.b16 %v2807
        %v2880 = vunpack.c.l.b16 %v2808
        %v2881 = vunpack.c.l.b16 %v2809
        %v2882 = vunpack.c.l.b16 %v2810
        %v2883 = vunpack.c.l.b16 %v2811
        %v2884 = vunpack.c.l.b16 %v2812
        %v2885 = vunpack.c.l.b16 %v2813
        %v2886 = vunpack.c.l.b16 %v2814
        %v2887 = vunpack.c.l.b16 %v2815
        %v2888 = vunpack.c.l.b16 %v2816
        %v2889 = vunpack.c.l.b16 %v2817
        %v2890 = vpack.c.b16 %v2859, %v2858
        %v2891 = vpack.c.b16 %v2861, %v2860
        %v2892 = vpack.c.b16 %v2863, %v2862
        %v2893 = vpack.c.b16 %v2865, %v2864
        %v2894 = vpack.c.b16 %v2867, %v2866
        %v2895 = vpack.c.b16 %v2869, %v2868
        %v2896 = vpack.c.b16 %v2871, %v2870
        %v2897 = vpack.c.b16 %v2873, %v2872
        %v2898 = vpack.c.b16 %v2875, %v2874
        %v2899 = vpack.c.b16 %v2877, %v2876
        %v2900 = vpack.c.b16 %v2879, %v2878
        %v2901 = vpack.c.b16 %v2881, %v2880
        %v2902 = vpack.c.b16 %v2883, %v2882
        %v2903 = vpack.c.b16 %v2885, %v2884
        %v2904 = vpack.c.b16 %v2887, %v2886
        %v2905 = vpack.c.b16 %v2889, %v2888
        %2922 = vmatprep.subr.bf16.mxu0 0
        %2923 = vmatpush1.bf16.msra.mxu0 %v2890
        %2924 = vmatprep.subr.bf16.mxu0 0
        %2925 = vmatpush1.bf16.msra.mxu0 %v2891
        %2926 = vmatprep.subr.bf16.mxu0 0
        %2927 = vmatpush1.bf16.msra.mxu0 %v2892
        %2928 = vmatprep.subr.bf16.mxu0 0
        %2929 = vmatpush1.bf16.msra.mxu0 %v2893
        %2930 = vmatprep.subr.bf16.mxu0 0
        %2931 = vmatpush1.bf16.msra.mxu0 %v2894
        %2932 = vmatprep.subr.bf16.mxu0 0
        %2933 = vmatpush1.bf16.msra.mxu0 %v2895
        %2934 = vmatprep.subr.bf16.mxu0 0
        %2935 = vmatpush1.bf16.msra.mxu0 %v2896
        %2936 = vmatprep.subr.bf16.mxu0 0
        %2937 = vmatpush1.bf16.msra.mxu0 %v2897
        %2938 = vmatprep.subr.bf16.mxu0 0
        %2939 = vmatpush1.bf16.msra.mxu0 %v2898
        %2940 = vmatprep.subr.bf16.mxu0 0
        %2941 = vmatpush1.bf16.msra.mxu0 %v2899
        %2942 = vmatprep.subr.bf16.mxu0 0
        %2943 = vmatpush1.bf16.msra.mxu0 %v2900
        %2944 = vmatprep.subr.bf16.mxu0 0
        %2945 = vmatpush1.bf16.msra.mxu0 %v2901
        %2946 = vmatprep.subr.bf16.mxu0 0
        %2947 = vmatpush1.bf16.msra.mxu0 %v2902
        %2948 = vmatprep.subr.bf16.mxu0 0
        %2949 = vmatpush1.bf16.msra.mxu0 %v2903
        %2950 = vmatprep.subr.bf16.mxu0 0
        %2951 = vmatpush1.bf16.msra.mxu0 %v2904
        %2952 = vmatprep.subr.bf16.mxu0 0
        %2953 = vmatpush1.bf16.msra.mxu0 %v2905
        %2954 = vmatprep.mubr.bf16.mxu0 %v2784
        %2955 = vmatmul.mubr.bf16.gmra.mrb[0].mxu0 %v2783
        %v2956 = vpop.f32.mrb[0].mxu0
        %v2957 = vadd.f32 %v2824, %v2956
        %v2958 = vpop.f32.mrb[0].mxu0
        %v2959 = vpop.f32.mrb[0].mxu0
        %v2960 = vpop.f32.mrb[0].mxu0
        %2961 = vdwg.mxu0
        %v2962 = vadd.f32 %v2583, %v2957
        %2963 = vst [vmem:[%s515] sm:$0xff] %v2962
        %s2964 = sand.u32 %s297, 1
        %s2965 = scalar_lea.sflag [#allocation4], %s2964
        %s2966 = sand.u32 %s297, 1
        %s2967 = smul.addr %s2966, 8
        %s2968 = scalar_lea.vmem [#allocation14], %s2967
        // Predicated region
        $region97: #{transformer_forward.1} parent=67 // pred_check
          %p2969 = pneg %p307
        $region98: #{transformer_forward.1} parent=67 // pred_check_branch
          %2971 = sbr.rel (%p2969) target = $region100
        $region99: #{transformer_forward.1} parent=67 // pred_region
          %s2973 = ssub.s32 128, 128
          %2974 = vsyncadd %s2965, %s2973
          %s2975 = smul.addr %s32, 128
          %s2976 = scalar_lea.hbm %s12, %s2975
          %s2978 = sshll.u32 %s2968, 4
          %s2979 = int_to_ptr.vmem [resolvable:$true] %s2978
          %2981 = dma.vmem_to_hbm [thread:$0]  %s2979, 128, %s2976, %s2965
        $region100: #{transformer_forward.1} parent=67 // pred_fallthru
          _
      $region68: #{transformer_forward.1} parent=5 // pred_fallthru
        _
      %p2982 = scmp.le.s32.totalorder 2, %s27
      // Predicated region
      $region101: #{transformer_forward.1} parent=5 // pred_check
        %p2983 = pneg %p2982
      $region102: #{transformer_forward.1} parent=5 // pred_check_branch
        %2985 = sbr.rel (%p2983) target = $region104
      $region103: #{transformer_forward.1} parent=5 // pred_region
        %s2986 = ssub.s32 %s27, 2
        // Predicated region
        $region105: #{transformer_forward.1} parent=103 // pred_check
          %p2987 = pneg %p313
        $region106: #{transformer_forward.1} parent=103 // pred_check_branch
          %2989 = sbr.rel (%p2987) target = $region108
        $region107: #{transformer_forward.1} parent=103 // pred_region
          %s2990 = sand.u32 %s298, 1
          %s2991 = scalar_lea.sflag [#allocation4], %s2990
          %s2992 = sand.u32 %s298, 1
          %s2993 = smul.addr %s2992, 8
          %s2994 = scalar_lea.vmem [#allocation14], %s2993
          %2995 = dma.done %s2991, 128
        $region108: #{transformer_forward.1} parent=103 // pred_fallthru
          _
      $region104: #{transformer_forward.1} parent=5 // pred_fallthru
        _
    $region6: #{transformer_forward.1} parent=1 // loop_footer
      %s31 = sadd.s32 1, %s27
    $region7: #{transformer_forward.1} parent=1 // loop_footer_branch
      %26 = sbr.rel target = $region3
    $region8: #{transformer_forward.1} parent=1 // loop_exit
      _
    %2996 = vsyncpa [#allocation3], 1
    %s2997 = scalar_lea.sflag [#allocation3], 1
    %2998 = vsyncpa %s2997, 1
    %2999 = vsyncpa [#allocation6], 1
    %3000 = vsyncpa [#allocation9], 1
    %3001 = vsyncpa [#allocation12], 1
    %3002 = vsyncpa [#allocation4], 1
    %s3003 = scalar_lea.sflag [#allocation4], 1
    %3004 = vsyncpa %s3003, 1

</llo_original>
